<compile_context>
chip_gen: v5e
topology: v5e:2x2
jax: 0.10.0
libtpu: 0.0.40
codegen_flags: <defaults>
</compile_context>

<pallas_src>
import functools

import jax
import jax.numpy as jnp
from jax.experimental import pallas as pl
from jax.experimental.pallas import tpu as pltpu

LANES = 128


def hw_kernel(x_ref, hs_ref, w_ref, b_ref, out_ref, *, s):
    x = x_ref[...].astype(jnp.float32)          # (TN, 2*ln)
    h_s = hs_ref[...].astype(jnp.float32)       # (TN, s), already scaled by mu/(s*dg)

    # Single fused MXU call: cols [:s*s] -> Xi, cols [s*s:s*s+s] -> Rou,
    # remaining columns are zero padding (tanh(0 + 0) = 0, sliced away).
    y = jnp.tanh(
        jnp.dot(x, w_ref[...], preferred_element_type=jnp.float32)
        + b_ref[...])                           # (TN, pad_w)

    xi = y[:, : s * s]                          # (TN, s*s)
    rou = y[:, s * s : s * s + s]               # (TN, s)

    # Batched matvec: out[n, i] = sum_j xi[n, i*s + j] * h_s[n, j]
    tn = x.shape[0]
    matvec = (xi.reshape(tn, s, s) * h_s[:, None, :]).sum(axis=-1)  # (TN, s)

    res = matvec + rou                          # (TN, s)

    # Lane-dense writeback: (TN, s) -> (TN // (128//s), 128)
    out_ref[...] = res.reshape(out_ref.shape).astype(out_ref.dtype)


def hw_forward(x, h, dg, wxi, bxi, wrou, brou, *, ln, s, mu=0.9, tile_n=None):
    n = x.shape[0]
    assert x.shape[1] == 2 * ln
    assert LANES % s == 0, "lane-dense output packing requires s | 128"
    npr = LANES // s                # nodes packed per 128-lane output row
    assert n % npr == 0

    # Fold the per-node scale mu/(s*dg) into H (drops the (N,1) dg stream).
    h_scaled = (h.astype(jnp.float32) * (mu / float(s))
                / dg.astype(jnp.float32).reshape(n, 1)).astype(x.dtype)

    # Fuse the two Linears into one lane-padded weight matrix.
    out_w = s * s + s
    pad_w = pl.cdiv(out_w, LANES) * LANES
    w_cat = jnp.zeros((2 * ln, pad_w), jnp.float32)
    w_cat = w_cat.at[:, : s * s].set(wxi.astype(jnp.float32))
    # Rou only sees the first half of X -> rows [ln:2*ln] stay zero.
    w_cat = w_cat.at[:ln, s * s : out_w].set(wrou.astype(jnp.float32))
    b_cat = jnp.zeros((1, pad_w), jnp.float32)
    b_cat = b_cat.at[:, : s * s].set(bxi.reshape(1, -1).astype(jnp.float32))
    b_cat = b_cat.at[:, s * s : out_w].set(brou.reshape(1, -1).astype(jnp.float32))

    # Pick the node-tile size: as large as possible, but prefer >= 2 grid
    # steps when the tile can stay >= 1024 rows (keeps both v7x TCs busy).
    if tile_n is None:
        candidates = (8192, 4096, 2048, 1024, 512, 256, 128, 64, 32, 16)

        def ok(c):
            return (c <= n and n % c == 0 and c % npr == 0
                    and (c % (8 * npr) == 0 or c == n))

        for c in candidates:
            if c >= 1024 and c < n and ok(c):
                tile_n = c
                break
        if tile_n is None:
            for c in candidates:
                if ok(c):
                    tile_n = c
                    break
        if tile_n is None:
            tile_n = n
    assert n % tile_n == 0 and tile_n % npr == 0

    grid = (n // tile_n,)
    kernel = functools.partial(hw_kernel, s=s)

    out_dense = pl.pallas_call(
        kernel,
        out_shape=jax.ShapeDtypeStruct((n // npr, LANES), x.dtype),
        grid_spec=pltpu.PrefetchScalarGridSpec(
            num_scalar_prefetch=0,
            grid=grid,
            in_specs=[
                pl.BlockSpec((tile_n, 2 * ln), lambda i: (i, 0)),      # X tile
                pl.BlockSpec((tile_n, s), lambda i: (i, 0)),           # scaled H
                pl.BlockSpec((2 * ln, pad_w), lambda i: (0, 0)),       # fused W
                pl.BlockSpec((1, pad_w), lambda i: (0, 0)),            # fused b
            ],
            out_specs=pl.BlockSpec((tile_n // npr, LANES), lambda i: (i, 0)),
        ),
        compiler_params=pltpu.CompilerParams(
            dimension_semantics=("parallel",)),
    )(x, h_scaled, w_cat, b_cat)

    return out_dense.reshape(n, s)


def hw_reference(x, h, dg, wxi, bxi, wrou, brou, *, ln, s, mu=0.9):
    xi = jnp.tanh(x @ wxi + bxi[0])                       # (N, s*s)
    A = (xi * mu / s / dg).reshape(-1, s, s)              # (N, s, s)
    rou = jnp.tanh(x[:, :ln] @ wrou + brou[0])            # (N, s)
    matvec = jnp.squeeze(A @ h[:, :, None], -1)           # (N, s)
    return matvec + rou


if __name__ == "__main__":
    ln, s, mu = 16, 8, 0.9
    n = 128

    key = jax.random.PRNGKey(0)
    kx, kh, kdg, k1, k2, k3, k4 = jax.random.split(key, 7)

    x = jax.random.normal(kx, (n, 2 * ln), dtype=jnp.float32)
    h = jax.random.normal(kh, (n, s), dtype=jnp.float32)
    dg = jax.random.randint(kdg, (n, 1), 1, 6).astype(jnp.float32)

    # Deterministic parameter init (synthetic; mimics nn.Linear scale).
    wxi = jax.random.uniform(k1, (2 * ln, s * s), jnp.float32,
                             -1.0 / (2 * ln) ** 0.5, 1.0 / (2 * ln) ** 0.5)
    bxi = jax.random.uniform(k2, (1, s * s), jnp.float32,
                             -1.0 / (2 * ln) ** 0.5, 1.0 / (2 * ln) ** 0.5)
    wrou = jax.random.uniform(k3, (ln, s), jnp.float32,
                              -1.0 / ln ** 0.5, 1.0 / ln ** 0.5)
    brou = jax.random.uniform(k4, (1, s), jnp.float32,
                              -1.0 / ln ** 0.5, 1.0 / ln ** 0.5)

    out = hw_forward(x, h, dg, wxi, bxi, wrou, brou, ln=ln, s=s, mu=mu)
    out = jax.block_until_ready(out)

    ref = hw_reference(x, h, dg, wxi, bxi, wrou, brou, ln=ln, s=s, mu=mu)
    assert out.shape == (n, s)
    assert jnp.allclose(out, ref, atol=1e-4, rtol=1e-4)

    print("KERNEL_OK")
</pallas_src>

<mosaic_0001>
module attributes {stable_mosaic.version = 11 : i64} {
  func.func @hw_kernel(%arg0: i32, %arg1: memref<128x32xf32, #tpu.memory_space<vmem>>, %arg2: memref<128x8xf32, #tpu.memory_space<vmem>>, %arg3: memref<32x128xf32, #tpu.memory_space<vmem>>, %arg4: memref<1x128xf32, #tpu.memory_space<vmem>>, %arg5: memref<8x128xf32, #tpu.memory_space<vmem>>) attributes {dimension_semantics = [#tpu.dimension_semantics<parallel>], iteration_bounds = array<i64: 1>, scalar_prefetch = 0 : i64, scratch_operands = 0 : i64, tpu.core_type = #tpu.core_type<tc>, window_params = [{transform_indices = @transform_0, window_bounds = array<i64: 128, 32>}, {transform_indices = @transform_1, window_bounds = array<i64: 128, 8>}, {pipeline_mode = #tpu.pipeline_mode<synchronous>, transform_indices = @transform_2, window_bounds = array<i64: 32, 128>}, {pipeline_mode = #tpu.pipeline_mode<synchronous>, transform_indices = @transform_3, window_bounds = array<i64: 1, 128>}, {transform_indices = @transform_4, window_bounds = array<i64: 8, 128>}]} {
    %c0 = arith.constant 0 : index
    %c0_0 = arith.constant 0 : index
    %0 = vector.load %arg1[%c0, %c0_0] : memref<128x32xf32, #tpu.memory_space<vmem>>, vector<128x32xf32>
    %c0_1 = arith.constant 0 : index
    %c0_2 = arith.constant 0 : index
    %1 = vector.load %arg2[%c0_1, %c0_2] : memref<128x8xf32, #tpu.memory_space<vmem>>, vector<128x8xf32>
    %c0_3 = arith.constant 0 : index
    %c0_4 = arith.constant 0 : index
    %2 = vector.load %arg3[%c0_3, %c0_4] : memref<32x128xf32, #tpu.memory_space<vmem>>, vector<32x128xf32>
    %cst = arith.constant dense<0.000000e+00> : vector<128x128xf32>
    %3 = tpu.matmul %0, %2, %cst {dimension_numbers = #tpu.dot_dimension_numbers<[1], [0], [0], [1], [0, 0, 1, 1], [], []>} : vector<128x32xf32>, vector<32x128xf32>, vector<128x128xf32> -> vector<128x128xf32>
    %c0_5 = arith.constant 0 : index
    %c0_6 = arith.constant 0 : index
    %4 = vector.load %arg4[%c0_5, %c0_6] : memref<1x128xf32, #tpu.memory_space<vmem>>, vector<1x128xf32>
    %5 = vector.broadcast %4 : vector<1x128xf32> to vector<128x128xf32>
    %6 = arith.addf %3, %5 : vector<128x128xf32>
    %7 = math.tanh %6 : vector<128x128xf32>
    %8 = vector.extract_strided_slice %7 {offsets = [0, 0], sizes = [128, 64], strides = [1, 1]} : vector<128x128xf32> to vector<128x64xf32>
    %9 = vector.extract_strided_slice %7 {offsets = [0, 64], sizes = [128, 8], strides = [1, 1]} : vector<128x128xf32> to vector<128x8xf32>
    %10 = vector.shape_cast %8 : vector<128x64xf32> to vector<128x8x8xf32>
    %11 = vector.shape_cast %1 : vector<128x8xf32> to vector<128x1x8xf32>
    %12 = vector.broadcast %11 : vector<128x1x8xf32> to vector<128x8x8xf32>
    %13 = arith.mulf %10, %12 : vector<128x8x8xf32>
    %cst_7 = arith.constant dense<0.000000e+00> : vector<128x8xf32>
    %14 = vector.multi_reduction <add>, %13, %cst_7 [2] : vector<128x8x8xf32> to vector<128x8xf32>
    %15 = arith.addf %14, %9 : vector<128x8xf32>
    %16 = vector.shape_cast %15 : vector<128x8xf32> to vector<8x128xf32>
    %c0_8 = arith.constant 0 : index
    %c0_9 = arith.constant 0 : index
    %17 = vector.load %arg5[%c0_8, %c0_9] : memref<8x128xf32, #tpu.memory_space<vmem>>, vector<8x128xf32>
    tpu.vector_store %arg5[%c0_8, %c0_9], %16 {strides = array<i32>} : memref<8x128xf32, #tpu.memory_space<vmem>>, vector<8x128xf32>,
    return
  }
  func.func @transform_0(%arg0: i32) -> (i32, i32) {
    %c0_i32 = arith.constant 0 : i32
    %c0_i32_0 = arith.constant 0 : i32
    return %arg0, %c0_i32 : i32, i32
  }
  func.func @transform_1(%arg0: i32) -> (i32, i32) {
    %c0_i32 = arith.constant 0 : i32
    %c0_i32_0 = arith.constant 0 : i32
    return %arg0, %c0_i32 : i32, i32
  }
  func.func @transform_2(%arg0: i32) -> (i32, i32) {
    %c0_i32 = arith.constant 0 : i32
    %c0_i32_0 = arith.constant 0 : i32
    %c0_i32_1 = arith.constant 0 : i32
    return %c0_i32, %c0_i32_0 : i32, i32
  }
  func.func @transform_3(%arg0: i32) -> (i32, i32) {
    %c0_i32 = arith.constant 0 : i32
    %c0_i32_0 = arith.constant 0 : i32
    %c0_i32_1 = arith.constant 0 : i32
    return %c0_i32, %c0_i32_0 : i32, i32
  }
  func.func @transform_4(%arg0: i32) -> (i32, i32) {
    %c0_i32 = arith.constant 0 : i32
    %c0_i32_0 = arith.constant 0 : i32
    return %arg0, %c0_i32 : i32, i32
  }
}

</mosaic_0001>

<llo_original>
// kernel: tpu_custom_call.1
$region0: #{tpu_custom_call.1}
  #allocation0 [shape = 'u32[]', space=smem, size = 0x4, offset = 0x4, fixed_abs, tag = 'smem constant byte address 0x4 - core index']
  #allocation1 [shape = 'u32[72,128]{1,0:T(1,128)}', space=vmem, size = 0x9000, scoped, tag = 'internal scratch']
  %s0 = inlined_call_operand.vmem [shape: f32[128,32], index: 0, kind: input, shape index: {}]
  %s1 = inlined_call_operand.vmem [shape: f32[128,8], index: 1, kind: input, shape index: {}]
  %s2 = inlined_call_operand.vmem [shape: f32[32,128], index: 2, kind: input, shape index: {}]
  %s3 = inlined_call_operand.vmem [shape: f32[1,128], index: 3, kind: input, shape index: {}]
  %s4 = inlined_call_operand.hbm [shape: f32[8,128], index: 4, kind: output, shape index: {}]
  %s5 = sld [smem:[#allocation0]]
  $region26: #{tpu_custom_call.1} parent=0
    _
  %s7 = ssub.s32 1, %s5
  %s8 = scalar_select 0, %s7, %s5
  $region1: #{tpu_custom_call.1} parent=0
    #allocation2 [shape = 'u8[4096]{0}', space=vmem, size = 0x1000, scoped, tag = 'output window, operand 0, single buffered']
    #allocation3 [shape = 's32[1]{0}', space=sflag, size = 0x4, scoped, tag = 'scoped memory for tpu_custom_call.1']
    %9 = vsyncpa [#allocation3], 0
    // Predicated region
    $region2: #{tpu_custom_call.1} parent=1 // pred_check
      _
    $region3: #{tpu_custom_call.1} parent=1 // pred_check_branch
      %11 = sbr.rel (0) target = $region5
    $region4: #{tpu_custom_call.1} parent=1 // pred_region
      _
    $region5: #{tpu_custom_call.1} parent=1 // pred_fallthru
      _
    // Predicated region
    $region6: #{tpu_custom_call.1} parent=1 // pred_check
      _
    $region7: #{tpu_custom_call.1} parent=1 // pred_check_branch
      %13 = sbr.rel (0) target = $region9
    $region8: #{tpu_custom_call.1} parent=1 // pred_region
      _
    $region9: #{tpu_custom_call.1} parent=1 // pred_fallthru
      _
    // Predicated region
    $region10: #{tpu_custom_call.1} parent=1 // pred_check
      _
    $region11: #{tpu_custom_call.1} parent=1 // pred_check_branch
      %15 = sbr.rel (0) target = $region13
    $region12: #{tpu_custom_call.1} parent=1 // pred_region
      _
    $region13: #{tpu_custom_call.1} parent=1 // pred_fallthru
      _
    // Predicated region
    $region14: #{tpu_custom_call.1} parent=1 // pred_check
      _
    $region15: #{tpu_custom_call.1} parent=1 // pred_check_branch
      %17 = sbr.rel (0) target = $region17
    $region16: #{tpu_custom_call.1} parent=1 // pred_region
      _
    $region17: #{tpu_custom_call.1} parent=1 // pred_fallthru
      _
    %v18 = vld [vmem:[%s0] sm:$0xff]
    %v19 = vld [vmem:[%s0 + $0x8] sm:$0xff]
    %v20 = vld [vmem:[%s0 + $0x10] sm:$0xff]
    %v21 = vld [vmem:[%s0 + $0x18] sm:$0xff]
    %v22 = vld [vmem:[%s0 + $0x20] sm:$0xff]
    %v23 = vld [vmem:[%s0 + $0x28] sm:$0xff]
    %v24 = vld [vmem:[%s0 + $0x30] sm:$0xff]
    %v25 = vld [vmem:[%s0 + $0x38] sm:$0xff]
    %v26 = vld [vmem:[%s0 + $0x40] sm:$0xff]
    %v27 = vld [vmem:[%s0 + $0x48] sm:$0xff]
    %v28 = vld [vmem:[%s0 + $0x50] sm:$0xff]
    %v29 = vld [vmem:[%s0 + $0x58] sm:$0xff]
    %v30 = vld [vmem:[%s0 + $0x60] sm:$0xff]
    %v31 = vld [vmem:[%s0 + $0x68] sm:$0xff]
    %v32 = vld [vmem:[%s0 + $0x70] sm:$0xff]
    %v33 = vld [vmem:[%s0 + $0x78] sm:$0xff]
    %v34 = vld [vmem:[%s1] sm:$0xff]
    %v35 = vld [vmem:[%s1 + $0x8] sm:$0xff]
    %v36 = vld [vmem:[%s1 + $0x10] sm:$0xff]
    %v37 = vld [vmem:[%s1 + $0x18] sm:$0xff]
    %v38 = vld [vmem:[%s1 + $0x20] sm:$0xff]
    %v39 = vld [vmem:[%s1 + $0x28] sm:$0xff]
    %v40 = vld [vmem:[%s1 + $0x30] sm:$0xff]
    %v41 = vld [vmem:[%s1 + $0x38] sm:$0xff]
    %v42 = vld [vmem:[%s1 + $0x40] sm:$0xff]
    %v43 = vld [vmem:[%s1 + $0x48] sm:$0xff]
    %v44 = vld [vmem:[%s1 + $0x50] sm:$0xff]
    %v45 = vld [vmem:[%s1 + $0x58] sm:$0xff]
    %v46 = vld [vmem:[%s1 + $0x60] sm:$0xff]
    %v47 = vld [vmem:[%s1 + $0x68] sm:$0xff]
    %v48 = vld [vmem:[%s1 + $0x70] sm:$0xff]
    %v49 = vld [vmem:[%s1 + $0x78] sm:$0xff]
    %v50 = vld [vmem:[%s2] sm:$0xff]
    %v51 = vld [vmem:[%s2 + $0x8] sm:$0xff]
    %v52 = vld [vmem:[%s2 + $0x10] sm:$0xff]
    %v53 = vld [vmem:[%s2 + $0x18] sm:$0xff]
    %v54 = vld [vmem:[%s3] sm:$0x1]
    %v56 = vperm.slane %v54, 0
    %vm58 = vcmask 261120
    %v60 = vsel %vm58, %v18, 0
    %v63 = vsel %vm58, %v19, 0
    %v66 = vsel %vm58, %v20, 0
    %v69 = vsel %vm58, %v21, 0
    %v72 = vsel %vm58, %v22, 0
    %v75 = vsel %vm58, %v23, 0
    %v78 = vsel %vm58, %v24, 0
    %v81 = vsel %vm58, %v25, 0
    %v84 = vsel %vm58, %v26, 0
    %v87 = vsel %vm58, %v27, 0
    %v90 = vsel %vm58, %v28, 0
    %v93 = vsel %vm58, %v29, 0
    %v96 = vsel %vm58, %v30, 0
    %v99 = vsel %vm58, %v31, 0
    %v102 = vsel %vm58, %v32, 0
    %v105 = vsel %vm58, %v33, 0
    %107 = vmatpush.msra.mxu0 0.0
    %108 = vmatpush.msra.mxu0 0.0
    %109 = vmatpush.msra.mxu0 0.0
    %110 = vmatpush.msra.mxu0 0.0
    %111 = vmatpush.msra.mxu0 0.0
    %112 = vmatpush.msra.mxu0 0.0
    %113 = vmatpush.msra.mxu0 0.0
    %114 = vmatpush.msra.mxu0 0.0
    %115 = vmatpush.msra.mxu0 0.0
    %116 = vmatpush.msra.mxu0 0.0
    %117 = vmatpush.msra.mxu0 0.0
    %118 = vmatpush.msra.mxu0 0.0
    %119 = vmatpush.msra.mxu0 %v53
    %120 = vmatpush.msra.mxu0 %v52
    %121 = vmatpush.msra.mxu0 %v51
    %122 = vmatpush.msra.mxu0 %v50
    %123 = vmatmul.f32.gmra.mxu0 %v60
    %v124 = vpop.f32.mrf.mxu0
    %v125 = vadd.f32 %v56, %v124
    %126 = vmatmul.f32.gmra.mxu0 %v63
    %v127 = vpop.f32.mrf.mxu0
    %v128 = vadd.f32 %v56, %v127
    %129 = vmatmul.f32.gmra.mxu0 %v66
    %v130 = vpop.f32.mrf.mxu0
    %v131 = vadd.f32 %v56, %v130
    %132 = vmatmul.f32.gmra.mxu0 %v69
    %v133 = vpop.f32.mrf.mxu0
    %v134 = vadd.f32 %v56, %v133
    %135 = vmatmul.f32.gmra.mxu0 %v72
    %v136 = vpop.f32.mrf.mxu0
    %v137 = vadd.f32 %v56, %v136
    %138 = vmatmul.f32.gmra.mxu0 %v75
    %v139 = vpop.f32.mrf.mxu0
    %v140 = vadd.f32 %v56, %v139
    %141 = vmatmul.f32.gmra.mxu0 %v78
    %v142 = vpop.f32.mrf.mxu0
    %v143 = vadd.f32 %v56, %v142
    %144 = vmatmul.f32.gmra.mxu0 %v81
    %v145 = vpop.f32.mrf.mxu0
    %v146 = vadd.f32 %v56, %v145
    %147 = vmatmul.f32.gmra.mxu0 %v84
    %v148 = vpop.f32.mrf.mxu0
    %v149 = vadd.f32 %v56, %v148
    %150 = vmatmul.f32.gmra.mxu0 %v87
    %v151 = vpop.f32.mrf.mxu0
    %v152 = vadd.f32 %v56, %v151
    %153 = vmatmul.f32.gmra.mxu0 %v90
    %v154 = vpop.f32.mrf.mxu0
    %v155 = vadd.f32 %v56, %v154
    %156 = vmatmul.f32.gmra.mxu0 %v93
    %v157 = vpop.f32.mrf.mxu0
    %v158 = vadd.f32 %v56, %v157
    %159 = vmatmul.f32.gmra.mxu0 %v96
    %v160 = vpop.f32.mrf.mxu0
    %v161 = vadd.f32 %v56, %v160
    %162 = vmatmul.f32.gmra.mxu0 %v99
    %v163 = vpop.f32.mrf.mxu0
    %v164 = vadd.f32 %v56, %v163
    %165 = vmatmul.f32.gmra.mxu0 %v102
    %v166 = vpop.f32.mrf.mxu0
    %v167 = vadd.f32 %v56, %v166
    %168 = vmatmul.f32.gmra.mxu0 %v105
    %v169 = vpop.f32.mrf.mxu0
    %v170 = vadd.f32 %v56, %v169
    %171 = vdwg.mxu0
    %v172 = vtanh.pop %v125
    %v173 = vtanh.pop %v128
    %v174 = vtanh.pop %v131
    %v175 = vtanh.pop %v134
    %v176 = vtanh.pop %v137
    %v177 = vtanh.pop %v140
    %v178 = vtanh.pop %v143
    %v179 = vtanh.pop %v146
    %v180 = vtanh.pop %v149
    %v181 = vtanh.pop %v152
    %v182 = vtanh.pop %v155
    %v183 = vtanh.pop %v158
    %v184 = vtanh.pop %v161
    %v185 = vtanh.pop %v164
    %v186 = vtanh.pop %v167
    %v187 = vtanh.pop %v170
    %204 = vrot.lane.b32.xlu0 %v172, 120
    %v205 = vpop.permute.xlu0 %204
    %206 = vrot.lane.b32.xlu0 %v173, 120
    %v207 = vpop.permute.xlu0 %206
    %208 = vrot.lane.b32.xlu0 %v174, 120
    %v209 = vpop.permute.xlu0 %208
    %210 = vrot.lane.b32.xlu0 %v175, 120
    %v211 = vpop.permute.xlu0 %210
    %212 = vrot.lane.b32.xlu0 %v176, 120
    %v213 = vpop.permute.xlu0 %212
    %214 = vrot.lane.b32.xlu0 %v177, 120
    %v215 = vpop.permute.xlu0 %214
    %216 = vrot.lane.b32.xlu0 %v178, 120
    %v217 = vpop.permute.xlu0 %216
    %218 = vrot.lane.b32.xlu0 %v179, 120
    %v219 = vpop.permute.xlu0 %218
    %220 = vrot.lane.b32.xlu0 %v180, 120
    %v221 = vpop.permute.xlu0 %220
    %222 = vrot.lane.b32.xlu0 %v181, 120
    %v223 = vpop.permute.xlu0 %222
    %224 = vrot.lane.b32.xlu0 %v182, 120
    %v225 = vpop.permute.xlu0 %224
    %226 = vrot.lane.b32.xlu0 %v183, 120
    %v227 = vpop.permute.xlu0 %226
    %228 = vrot.lane.b32.xlu0 %v184, 120
    %v229 = vpop.permute.xlu0 %228
    %230 = vrot.lane.b32.xlu0 %v185, 120
    %v231 = vpop.permute.xlu0 %230
    %232 = vrot.lane.b32.xlu0 %v186, 120
    %v233 = vpop.permute.xlu0 %232
    %234 = vrot.lane.b32.xlu0 %v187, 120
    %v235 = vpop.permute.xlu0 %234
    %252 = vrot.lane.b32.xlu0 %v172, 112
    %v253 = vpop.permute.xlu0 %252
    %254 = vrot.lane.b32.xlu0 %v173, 112
    %v255 = vpop.permute.xlu0 %254
    %256 = vrot.lane.b32.xlu0 %v174, 112
    %v257 = vpop.permute.xlu0 %256
    %258 = vrot.lane.b32.xlu0 %v175, 112
    %v259 = vpop.permute.xlu0 %258
    %260 = vrot.lane.b32.xlu0 %v176, 112
    %v261 = vpop.permute.xlu0 %260
    %262 = vrot.lane.b32.xlu0 %v177, 112
    %v263 = vpop.permute.xlu0 %262
    %264 = vrot.lane.b32.xlu0 %v178, 112
    %v265 = vpop.permute.xlu0 %264
    %266 = vrot.lane.b32.xlu0 %v179, 112
    %v267 = vpop.permute.xlu0 %266
    %268 = vrot.lane.b32.xlu0 %v180, 112
    %v269 = vpop.permute.xlu0 %268
    %270 = vrot.lane.b32.xlu0 %v181, 112
    %v271 = vpop.permute.xlu0 %270
    %272 = vrot.lane.b32.xlu0 %v182, 112
    %v273 = vpop.permute.xlu0 %272
    %274 = vrot.lane.b32.xlu0 %v183, 112
    %v275 = vpop.permute.xlu0 %274
    %276 = vrot.lane.b32.xlu0 %v184, 112
    %v277 = vpop.permute.xlu0 %276
    %278 = vrot.lane.b32.xlu0 %v185, 112
    %v279 = vpop.permute.xlu0 %278
    %280 = vrot.lane.b32.xlu0 %v186, 112
    %v281 = vpop.permute.xlu0 %280
    %282 = vrot.lane.b32.xlu0 %v187, 112
    %v283 = vpop.permute.xlu0 %282
    %300 = vrot.lane.b32.xlu0 %v172, 104
    %v301 = vpop.permute.xlu0 %300
    %302 = vrot.lane.b32.xlu0 %v173, 104
    %v303 = vpop.permute.xlu0 %302
    %304 = vrot.lane.b32.xlu0 %v174, 104
    %v305 = vpop.permute.xlu0 %304
    %306 = vrot.lane.b32.xlu0 %v175, 104
    %v307 = vpop.permute.xlu0 %306
    %308 = vrot.lane.b32.xlu0 %v176, 104
    %v309 = vpop.permute.xlu0 %308
    %310 = vrot.lane.b32.xlu0 %v177, 104
    %v311 = vpop.permute.xlu0 %310
    %312 = vrot.lane.b32.xlu0 %v178, 104
    %v313 = vpop.permute.xlu0 %312
    %314 = vrot.lane.b32.xlu0 %v179, 104
    %v315 = vpop.permute.xlu0 %314
    %316 = vrot.lane.b32.xlu0 %v180, 104
    %v317 = vpop.permute.xlu0 %316
    %318 = vrot.lane.b32.xlu0 %v181, 104
    %v319 = vpop.permute.xlu0 %318
    %320 = vrot.lane.b32.xlu0 %v182, 104
    %v321 = vpop.permute.xlu0 %320
    %322 = vrot.lane.b32.xlu0 %v183, 104
    %v323 = vpop.permute.xlu0 %322
    %324 = vrot.lane.b32.xlu0 %v184, 104
    %v325 = vpop.permute.xlu0 %324
    %326 = vrot.lane.b32.xlu0 %v185, 104
    %v327 = vpop.permute.xlu0 %326
    %328 = vrot.lane.b32.xlu0 %v186, 104
    %v329 = vpop.permute.xlu0 %328
    %330 = vrot.lane.b32.xlu0 %v187, 104
    %v331 = vpop.permute.xlu0 %330
    %348 = vrot.lane.b32.xlu0 %v172, 96
    %v349 = vpop.permute.xlu0 %348
    %350 = vrot.lane.b32.xlu0 %v173, 96
    %v351 = vpop.permute.xlu0 %350
    %352 = vrot.lane.b32.xlu0 %v174, 96
    %v353 = vpop.permute.xlu0 %352
    %354 = vrot.lane.b32.xlu0 %v175, 96
    %v355 = vpop.permute.xlu0 %354
    %356 = vrot.lane.b32.xlu0 %v176, 96
    %v357 = vpop.permute.xlu0 %356
    %358 = vrot.lane.b32.xlu0 %v177, 96
    %v359 = vpop.permute.xlu0 %358
    %360 = vrot.lane.b32.xlu0 %v178, 96
    %v361 = vpop.permute.xlu0 %360
    %362 = vrot.lane.b32.xlu0 %v179, 96
    %v363 = vpop.permute.xlu0 %362
    %364 = vrot.lane.b32.xlu0 %v180, 96
    %v365 = vpop.permute.xlu0 %364
    %366 = vrot.lane.b32.xlu0 %v181, 96
    %v367 = vpop.permute.xlu0 %366
    %368 = vrot.lane.b32.xlu0 %v182, 96
    %v369 = vpop.permute.xlu0 %368
    %370 = vrot.lane.b32.xlu0 %v183, 96
    %v371 = vpop.permute.xlu0 %370
    %372 = vrot.lane.b32.xlu0 %v184, 96
    %v373 = vpop.permute.xlu0 %372
    %374 = vrot.lane.b32.xlu0 %v185, 96
    %v375 = vpop.permute.xlu0 %374
    %376 = vrot.lane.b32.xlu0 %v186, 96
    %v377 = vpop.permute.xlu0 %376
    %378 = vrot.lane.b32.xlu0 %v187, 96
    %v379 = vpop.permute.xlu0 %378
    %396 = vrot.lane.b32.xlu0 %v172, 88
    %v397 = vpop.permute.xlu0 %396
    %398 = vrot.lane.b32.xlu0 %v173, 88
    %v399 = vpop.permute.xlu0 %398
    %400 = vrot.lane.b32.xlu0 %v174, 88
    %v401 = vpop.permute.xlu0 %400
    %402 = vrot.lane.b32.xlu0 %v175, 88
    %v403 = vpop.permute.xlu0 %402
    %404 = vrot.lane.b32.xlu0 %v176, 88
    %v405 = vpop.permute.xlu0 %404
    %406 = vrot.lane.b32.xlu0 %v177, 88
    %v407 = vpop.permute.xlu0 %406
    %408 = vrot.lane.b32.xlu0 %v178, 88
    %v409 = vpop.permute.xlu0 %408
    %410 = vrot.lane.b32.xlu0 %v179, 88
    %v411 = vpop.permute.xlu0 %410
    %412 = vrot.lane.b32.xlu0 %v180, 88
    %v413 = vpop.permute.xlu0 %412
    %414 = vrot.lane.b32.xlu0 %v181, 88
    %v415 = vpop.permute.xlu0 %414
    %416 = vrot.lane.b32.xlu0 %v182, 88
    %v417 = vpop.permute.xlu0 %416
    %418 = vrot.lane.b32.xlu0 %v183, 88
    %v419 = vpop.permute.xlu0 %418
    %420 = vrot.lane.b32.xlu0 %v184, 88
    %v421 = vpop.permute.xlu0 %420
    %422 = vrot.lane.b32.xlu0 %v185, 88
    %v423 = vpop.permute.xlu0 %422
    %424 = vrot.lane.b32.xlu0 %v186, 88
    %v425 = vpop.permute.xlu0 %424
    %426 = vrot.lane.b32.xlu0 %v187, 88
    %v427 = vpop.permute.xlu0 %426
    %444 = vrot.lane.b32.xlu0 %v172, 80
    %v445 = vpop.permute.xlu0 %444
    %446 = vrot.lane.b32.xlu0 %v173, 80
    %v447 = vpop.permute.xlu0 %446
    %448 = vrot.lane.b32.xlu0 %v174, 80
    %v449 = vpop.permute.xlu0 %448
    %450 = vrot.lane.b32.xlu0 %v175, 80
    %v451 = vpop.permute.xlu0 %450
    %452 = vrot.lane.b32.xlu0 %v176, 80
    %v453 = vpop.permute.xlu0 %452
    %454 = vrot.lane.b32.xlu0 %v177, 80
    %v455 = vpop.permute.xlu0 %454
    %456 = vrot.lane.b32.xlu0 %v178, 80
    %v457 = vpop.permute.xlu0 %456
    %458 = vrot.lane.b32.xlu0 %v179, 80
    %v459 = vpop.permute.xlu0 %458
    %460 = vrot.lane.b32.xlu0 %v180, 80
    %v461 = vpop.permute.xlu0 %460
    %462 = vrot.lane.b32.xlu0 %v181, 80
    %v463 = vpop.permute.xlu0 %462
    %464 = vrot.lane.b32.xlu0 %v182, 80
    %v465 = vpop.permute.xlu0 %464
    %466 = vrot.lane.b32.xlu0 %v183, 80
    %v467 = vpop.permute.xlu0 %466
    %468 = vrot.lane.b32.xlu0 %v184, 80
    %v469 = vpop.permute.xlu0 %468
    %470 = vrot.lane.b32.xlu0 %v185, 80
    %v471 = vpop.permute.xlu0 %470
    %472 = vrot.lane.b32.xlu0 %v186, 80
    %v473 = vpop.permute.xlu0 %472
    %474 = vrot.lane.b32.xlu0 %v187, 80
    %v475 = vpop.permute.xlu0 %474
    %492 = vrot.lane.b32.xlu0 %v172, 72
    %v493 = vpop.permute.xlu0 %492
    %494 = vrot.lane.b32.xlu0 %v173, 72
    %v495 = vpop.permute.xlu0 %494
    %496 = vrot.lane.b32.xlu0 %v174, 72
    %v497 = vpop.permute.xlu0 %496
    %498 = vrot.lane.b32.xlu0 %v175, 72
    %v499 = vpop.permute.xlu0 %498
    %500 = vrot.lane.b32.xlu0 %v176, 72
    %v501 = vpop.permute.xlu0 %500
    %502 = vrot.lane.b32.xlu0 %v177, 72
    %v503 = vpop.permute.xlu0 %502
    %504 = vrot.lane.b32.xlu0 %v178, 72
    %v505 = vpop.permute.xlu0 %504
    %506 = vrot.lane.b32.xlu0 %v179, 72
    %v507 = vpop.permute.xlu0 %506
    %508 = vrot.lane.b32.xlu0 %v180, 72
    %v509 = vpop.permute.xlu0 %508
    %510 = vrot.lane.b32.xlu0 %v181, 72
    %v511 = vpop.permute.xlu0 %510
    %512 = vrot.lane.b32.xlu0 %v182, 72
    %v513 = vpop.permute.xlu0 %512
    %514 = vrot.lane.b32.xlu0 %v183, 72
    %v515 = vpop.permute.xlu0 %514
    %516 = vrot.lane.b32.xlu0 %v184, 72
    %v517 = vpop.permute.xlu0 %516
    %518 = vrot.lane.b32.xlu0 %v185, 72
    %v519 = vpop.permute.xlu0 %518
    %520 = vrot.lane.b32.xlu0 %v186, 72
    %v521 = vpop.permute.xlu0 %520
    %522 = vrot.lane.b32.xlu0 %v187, 72
    %v523 = vpop.permute.xlu0 %522
    %v540 = vrot.slane %v253, 4
    %vm541 = vcmask 1047556
    %v542 = vsel %vm541, %v540, %v172
    %v543 = vrot.slane %v172, 4
    %v544 = vsel %vm541, %v253, %v543
    %v546 = vunpack.c.l.s4 1983009808
    %v547 = vunpack.c.0.s8 %v546
    %v548 = vperm.slane %v542, %v547
    %v550 = vunpack.c.l.s4 1983009808
    %v551 = vunpack.c.0.s8 %v550
    %v552 = vperm.slane %v544, %v551
    %v553 = vrot.slane %v301, 4
    %v554 = vsel %vm541, %v553, %v205
    %v555 = vrot.slane %v205, 4
    %v556 = vsel %vm541, %v301, %v555
    %v558 = vunpack.c.l.s4 1983009808
    %v559 = vunpack.c.0.s8 %v558
    %v560 = vperm.slane %v554, %v559
    %v562 = vunpack.c.l.s4 1983009808
    %v563 = vunpack.c.0.s8 %v562
    %v564 = vperm.slane %v556, %v563
    %v565 = vrot.slane %v445, 4
    %v566 = vsel %vm541, %v565, %v349
    %v567 = vrot.slane %v349, 4
    %v568 = vsel %vm541, %v445, %v567
    %v570 = vunpack.c.l.s4 1983009808
    %v571 = vunpack.c.0.s8 %v570
    %v572 = vperm.slane %v566, %v571
    %v574 = vunpack.c.l.s4 1983009808
    %v575 = vunpack.c.0.s8 %v574
    %v576 = vperm.slane %v568, %v575
    %v577 = vrot.slane %v493, 4
    %v578 = vsel %vm541, %v577, %v397
    %v579 = vrot.slane %v397, 4
    %v580 = vsel %vm541, %v493, %v579
    %v582 = vunpack.c.l.s4 1983009808
    %v583 = vunpack.c.0.s8 %v582
    %v584 = vperm.slane %v578, %v583
    %v586 = vunpack.c.l.s4 1983009808
    %v587 = vunpack.c.0.s8 %v586
    %v588 = vperm.slane %v580, %v587
    %v589 = vrot.slane %v560, 4
    %v590 = vsel %vm541, %v589, %v548
    %v591 = vrot.slane %v548, 4
    %v592 = vsel %vm541, %v560, %v591
    %v594 = vunpack.c.l.s4 1934713408
    %v595 = vunpack.c.0.s8 %v594
    %v596 = vperm.slane %v590, %v595
    %v598 = vunpack.c.l.s4 1934713408
    %v599 = vunpack.c.0.s8 %v598
    %v600 = vperm.slane %v592, %v599
    %v601 = vrot.slane %v564, 4
    %v602 = vsel %vm541, %v601, %v552
    %v603 = vrot.slane %v552, 4
    %v604 = vsel %vm541, %v564, %v603
    %v606 = vunpack.c.l.s4 1934713408
    %v607 = vunpack.c.0.s8 %v606
    %v608 = vperm.slane %v602, %v607
    %v610 = vunpack.c.l.s4 1934713408
    %v611 = vunpack.c.0.s8 %v610
    %v612 = vperm.slane %v604, %v611
    %v613 = vrot.slane %v584, 4
    %v614 = vsel %vm541, %v613, %v572
    %v615 = vrot.slane %v572, 4
    %v616 = vsel %vm541, %v584, %v615
    %v618 = vunpack.c.l.s4 1934713408
    %v619 = vunpack.c.0.s8 %v618
    %v620 = vperm.slane %v614, %v619
    %v622 = vunpack.c.l.s4 1934713408
    %v623 = vunpack.c.0.s8 %v622
    %v624 = vperm.slane %v616, %v623
    %v625 = vrot.slane %v588, 4
    %v626 = vsel %vm541, %v625, %v576
    %v627 = vrot.slane %v576, 4
    %v628 = vsel %vm541, %v588, %v627
    %v630 = vunpack.c.l.s4 1934713408
    %v631 = vunpack.c.0.s8 %v630
    %v632 = vperm.slane %v626, %v631
    %v634 = vunpack.c.l.s4 1934713408
    %v635 = vunpack.c.0.s8 %v634
    %v636 = vperm.slane %v628, %v635
    %v637 = vrot.slane %v620, 4
    %v638 = vsel %vm541, %v637, %v596
    %v639 = vrot.slane %v596, 4
    %v640 = vsel %vm541, %v620, %v639
    %v641 = vrot.slane %v624, 4
    %v642 = vsel %vm541, %v641, %v600
    %v643 = vrot.slane %v600, 4
    %v644 = vsel %vm541, %v624, %v643
    %v645 = vrot.slane %v632, 4
    %v646 = vsel %vm541, %v645, %v608
    %v647 = vrot.slane %v608, 4
    %v648 = vsel %vm541, %v632, %v647
    %v649 = vrot.slane %v636, 4
    %v650 = vsel %vm541, %v649, %v612
    %v651 = vrot.slane %v612, 4
    %v652 = vsel %vm541, %v636, %v651
    %v653 = vrot.slane %v255, 4
    %v654 = vsel %vm541, %v653, %v173
    %v655 = vrot.slane %v173, 4
    %v656 = vsel %vm541, %v255, %v655
    %v658 = vunpack.c.l.s4 1983009808
    %v659 = vunpack.c.0.s8 %v658
    %v660 = vperm.slane %v654, %v659
    %v662 = vunpack.c.l.s4 1983009808
    %v663 = vunpack.c.0.s8 %v662
    %v664 = vperm.slane %v656, %v663
    %v665 = vrot.slane %v303, 4
    %v666 = vsel %vm541, %v665, %v207
    %v667 = vrot.slane %v207, 4
    %v668 = vsel %vm541, %v303, %v667
    %v670 = vunpack.c.l.s4 1983009808
    %v671 = vunpack.c.0.s8 %v670
    %v672 = vperm.slane %v666, %v671
    %v674 = vunpack.c.l.s4 1983009808
    %v675 = vunpack.c.0.s8 %v674
    %v676 = vperm.slane %v668, %v675
    %v677 = vrot.slane %v447, 4
    %v678 = vsel %vm541, %v677, %v351
    %v679 = vrot.slane %v351, 4
    %v680 = vsel %vm541, %v447, %v679
    %v682 = vunpack.c.l.s4 1983009808
    %v683 = vunpack.c.0.s8 %v682
    %v684 = vperm.slane %v678, %v683
    %v686 = vunpack.c.l.s4 1983009808
    %v687 = vunpack.c.0.s8 %v686
    %v688 = vperm.slane %v680, %v687
    %v689 = vrot.slane %v495, 4
    %v690 = vsel %vm541, %v689, %v399
    %v691 = vrot.slane %v399, 4
    %v692 = vsel %vm541, %v495, %v691
    %v694 = vunpack.c.l.s4 1983009808
    %v695 = vunpack.c.0.s8 %v694
    %v696 = vperm.slane %v690, %v695
    %v698 = vunpack.c.l.s4 1983009808
    %v699 = vunpack.c.0.s8 %v698
    %v700 = vperm.slane %v692, %v699
    %v701 = vrot.slane %v672, 4
    %v702 = vsel %vm541, %v701, %v660
    %v703 = vrot.slane %v660, 4
    %v704 = vsel %vm541, %v672, %v703
    %v706 = vunpack.c.l.s4 1934713408
    %v707 = vunpack.c.0.s8 %v706
    %v708 = vperm.slane %v702, %v707
    %v710 = vunpack.c.l.s4 1934713408
    %v711 = vunpack.c.0.s8 %v710
    %v712 = vperm.slane %v704, %v711
    %v713 = vrot.slane %v676, 4
    %v714 = vsel %vm541, %v713, %v664
    %v715 = vrot.slane %v664, 4
    %v716 = vsel %vm541, %v676, %v715
    %v718 = vunpack.c.l.s4 1934713408
    %v719 = vunpack.c.0.s8 %v718
    %v720 = vperm.slane %v714, %v719
    %v722 = vunpack.c.l.s4 1934713408
    %v723 = vunpack.c.0.s8 %v722
    %v724 = vperm.slane %v716, %v723
    %v725 = vrot.slane %v696, 4
    %v726 = vsel %vm541, %v725, %v684
    %v727 = vrot.slane %v684, 4
    %v728 = vsel %vm541, %v696, %v727
    %v730 = vunpack.c.l.s4 1934713408
    %v731 = vunpack.c.0.s8 %v730
    %v732 = vperm.slane %v726, %v731
    %v734 = vunpack.c.l.s4 1934713408
    %v735 = vunpack.c.0.s8 %v734
    %v736 = vperm.slane %v728, %v735
    %v737 = vrot.slane %v700, 4
    %v738 = vsel %vm541, %v737, %v688
    %v739 = vrot.slane %v688, 4
    %v740 = vsel %vm541, %v700, %v739
    %v742 = vunpack.c.l.s4 1934713408
    %v743 = vunpack.c.0.s8 %v742
    %v744 = vperm.slane %v738, %v743
    %v746 = vunpack.c.l.s4 1934713408
    %v747 = vunpack.c.0.s8 %v746
    %v748 = vperm.slane %v740, %v747
    %v749 = vrot.slane %v732, 4
    %v750 = vsel %vm541, %v749, %v708
    %v751 = vrot.slane %v708, 4
    %v752 = vsel %vm541, %v732, %v751
    %v753 = vrot.slane %v736, 4
    %v754 = vsel %vm541, %v753, %v712
    %v755 = vrot.slane %v712, 4
    %v756 = vsel %vm541, %v736, %v755
    %v757 = vrot.slane %v744, 4
    %v758 = vsel %vm541, %v757, %v720
    %v759 = vrot.slane %v720, 4
    %v760 = vsel %vm541, %v744, %v759
    %v761 = vrot.slane %v748, 4
    %v762 = vsel %vm541, %v761, %v724
    %v763 = vrot.slane %v724, 4
    %v764 = vsel %vm541, %v748, %v763
    %v765 = vrot.slane %v257, 4
    %v766 = vsel %vm541, %v765, %v174
    %v767 = vrot.slane %v174, 4
    %v768 = vsel %vm541, %v257, %v767
    %v770 = vunpack.c.l.s4 1983009808
    %v771 = vunpack.c.0.s8 %v770
    %v772 = vperm.slane %v766, %v771
    %v774 = vunpack.c.l.s4 1983009808
    %v775 = vunpack.c.0.s8 %v774
    %v776 = vperm.slane %v768, %v775
    %v777 = vrot.slane %v305, 4
    %v778 = vsel %vm541, %v777, %v209
    %v779 = vrot.slane %v209, 4
    %v780 = vsel %vm541, %v305, %v779
    %v782 = vunpack.c.l.s4 1983009808
    %v783 = vunpack.c.0.s8 %v782
    %v784 = vperm.slane %v778, %v783
    %v786 = vunpack.c.l.s4 1983009808
    %v787 = vunpack.c.0.s8 %v786
    %v788 = vperm.slane %v780, %v787
    %v789 = vrot.slane %v449, 4
    %v790 = vsel %vm541, %v789, %v353
    %v791 = vrot.slane %v353, 4
    %v792 = vsel %vm541, %v449, %v791
    %v794 = vunpack.c.l.s4 1983009808
    %v795 = vunpack.c.0.s8 %v794
    %v796 = vperm.slane %v790, %v795
    %v798 = vunpack.c.l.s4 1983009808
    %v799 = vunpack.c.0.s8 %v798
    %v800 = vperm.slane %v792, %v799
    %v801 = vrot.slane %v497, 4
    %v802 = vsel %vm541, %v801, %v401
    %v803 = vrot.slane %v401, 4
    %v804 = vsel %vm541, %v497, %v803
    %v806 = vunpack.c.l.s4 1983009808
    %v807 = vunpack.c.0.s8 %v806
    %v808 = vperm.slane %v802, %v807
    %v810 = vunpack.c.l.s4 1983009808
    %v811 = vunpack.c.0.s8 %v810
    %v812 = vperm.slane %v804, %v811
    %v813 = vrot.slane %v784, 4
    %v814 = vsel %vm541, %v813, %v772
    %v815 = vrot.slane %v772, 4
    %v816 = vsel %vm541, %v784, %v815
    %v818 = vunpack.c.l.s4 1934713408
    %v819 = vunpack.c.0.s8 %v818
    %v820 = vperm.slane %v814, %v819
    %v822 = vunpack.c.l.s4 1934713408
    %v823 = vunpack.c.0.s8 %v822
    %v824 = vperm.slane %v816, %v823
    %v825 = vrot.slane %v788, 4
    %v826 = vsel %vm541, %v825, %v776
    %v827 = vrot.slane %v776, 4
    %v828 = vsel %vm541, %v788, %v827
    %v830 = vunpack.c.l.s4 1934713408
    %v831 = vunpack.c.0.s8 %v830
    %v832 = vperm.slane %v826, %v831
    %v834 = vunpack.c.l.s4 1934713408
    %v835 = vunpack.c.0.s8 %v834
    %v836 = vperm.slane %v828, %v835
    %v837 = vrot.slane %v808, 4
    %v838 = vsel %vm541, %v837, %v796
    %v839 = vrot.slane %v796, 4
    %v840 = vsel %vm541, %v808, %v839
    %v842 = vunpack.c.l.s4 1934713408
    %v843 = vunpack.c.0.s8 %v842
    %v844 = vperm.slane %v838, %v843
    %v846 = vunpack.c.l.s4 1934713408
    %v847 = vunpack.c.0.s8 %v846
    %v848 = vperm.slane %v840, %v847
    %v849 = vrot.slane %v812, 4
    %v850 = vsel %vm541, %v849, %v800
    %v851 = vrot.slane %v800, 4
    %v852 = vsel %vm541, %v812, %v851
    %v854 = vunpack.c.l.s4 1934713408
    %v855 = vunpack.c.0.s8 %v854
    %v856 = vperm.slane %v850, %v855
    %v858 = vunpack.c.l.s4 1934713408
    %v859 = vunpack.c.0.s8 %v858
    %v860 = vperm.slane %v852, %v859
    %v861 = vrot.slane %v844, 4
    %v862 = vsel %vm541, %v861, %v820
    %v863 = vrot.slane %v820, 4
    %v864 = vsel %vm541, %v844, %v863
    %v865 = vrot.slane %v848, 4
    %v866 = vsel %vm541, %v865, %v824
    %v867 = vrot.slane %v824, 4
    %v868 = vsel %vm541, %v848, %v867
    %v869 = vrot.slane %v856, 4
    %v870 = vsel %vm541, %v869, %v832
    %v871 = vrot.slane %v832, 4
    %v872 = vsel %vm541, %v856, %v871
    %v873 = vrot.slane %v860, 4
    %v874 = vsel %vm541, %v873, %v836
    %v875 = vrot.slane %v836, 4
    %v876 = vsel %vm541, %v860, %v875
    %v877 = vrot.slane %v259, 4
    %v878 = vsel %vm541, %v877, %v175
    %v879 = vrot.slane %v175, 4
    %v880 = vsel %vm541, %v259, %v879
    %v882 = vunpack.c.l.s4 1983009808
    %v883 = vunpack.c.0.s8 %v882
    %v884 = vperm.slane %v878, %v883
    %v886 = vunpack.c.l.s4 1983009808
    %v887 = vunpack.c.0.s8 %v886
    %v888 = vperm.slane %v880, %v887
    %v889 = vrot.slane %v307, 4
    %v890 = vsel %vm541, %v889, %v211
    %v891 = vrot.slane %v211, 4
    %v892 = vsel %vm541, %v307, %v891
    %v894 = vunpack.c.l.s4 1983009808
    %v895 = vunpack.c.0.s8 %v894
    %v896 = vperm.slane %v890, %v895
    %v898 = vunpack.c.l.s4 1983009808
    %v899 = vunpack.c.0.s8 %v898
    %v900 = vperm.slane %v892, %v899
    %v901 = vrot.slane %v451, 4
    %v902 = vsel %vm541, %v901, %v355
    %v903 = vrot.slane %v355, 4
    %v904 = vsel %vm541, %v451, %v903
    %v906 = vunpack.c.l.s4 1983009808
    %v907 = vunpack.c.0.s8 %v906
    %v908 = vperm.slane %v902, %v907
    %v910 = vunpack.c.l.s4 1983009808
    %v911 = vunpack.c.0.s8 %v910
    %v912 = vperm.slane %v904, %v911
    %v913 = vrot.slane %v499, 4
    %v914 = vsel %vm541, %v913, %v403
    %v915 = vrot.slane %v403, 4
    %v916 = vsel %vm541, %v499, %v915
    %v918 = vunpack.c.l.s4 1983009808
    %v919 = vunpack.c.0.s8 %v918
    %v920 = vperm.slane %v914, %v919
    %v922 = vunpack.c.l.s4 1983009808
    %v923 = vunpack.c.0.s8 %v922
    %v924 = vperm.slane %v916, %v923
    %v925 = vrot.slane %v896, 4
    %v926 = vsel %vm541, %v925, %v884
    %v927 = vrot.slane %v884, 4
    %v928 = vsel %vm541, %v896, %v927
    %v930 = vunpack.c.l.s4 1934713408
    %v931 = vunpack.c.0.s8 %v930
    %v932 = vperm.slane %v926, %v931
    %v934 = vunpack.c.l.s4 1934713408
    %v935 = vunpack.c.0.s8 %v934
    %v936 = vperm.slane %v928, %v935
    %v937 = vrot.slane %v900, 4
    %v938 = vsel %vm541, %v937, %v888
    %v939 = vrot.slane %v888, 4
    %v940 = vsel %vm541, %v900, %v939
    %v942 = vunpack.c.l.s4 1934713408
    %v943 = vunpack.c.0.s8 %v942
    %v944 = vperm.slane %v938, %v943
    %v946 = vunpack.c.l.s4 1934713408
    %v947 = vunpack.c.0.s8 %v946
    %v948 = vperm.slane %v940, %v947
    %v949 = vrot.slane %v920, 4
    %v950 = vsel %vm541, %v949, %v908
    %v951 = vrot.slane %v908, 4
    %v952 = vsel %vm541, %v920, %v951
    %v954 = vunpack.c.l.s4 1934713408
    %v955 = vunpack.c.0.s8 %v954
    %v956 = vperm.slane %v950, %v955
    %v958 = vunpack.c.l.s4 1934713408
    %v959 = vunpack.c.0.s8 %v958
    %v960 = vperm.slane %v952, %v959
    %v961 = vrot.slane %v924, 4
    %v962 = vsel %vm541, %v961, %v912
    %v963 = vrot.slane %v912, 4
    %v964 = vsel %vm541, %v924, %v963
    %v966 = vunpack.c.l.s4 1934713408
    %v967 = vunpack.c.0.s8 %v966
    %v968 = vperm.slane %v962, %v967
    %v970 = vunpack.c.l.s4 1934713408
    %v971 = vunpack.c.0.s8 %v970
    %v972 = vperm.slane %v964, %v971
    %v973 = vrot.slane %v956, 4
    %v974 = vsel %vm541, %v973, %v932
    %v975 = vrot.slane %v932, 4
    %v976 = vsel %vm541, %v956, %v975
    %v977 = vrot.slane %v960, 4
    %v978 = vsel %vm541, %v977, %v936
    %v979 = vrot.slane %v936, 4
    %v980 = vsel %vm541, %v960, %v979
    %v981 = vrot.slane %v968, 4
    %v982 = vsel %vm541, %v981, %v944
    %v983 = vrot.slane %v944, 4
    %v984 = vsel %vm541, %v968, %v983
    %v985 = vrot.slane %v972, 4
    %v986 = vsel %vm541, %v985, %v948
    %v987 = vrot.slane %v948, 4
    %v988 = vsel %vm541, %v972, %v987
    %v989 = vrot.slane %v261, 4
    %v990 = vsel %vm541, %v989, %v176
    %v991 = vrot.slane %v176, 4
    %v992 = vsel %vm541, %v261, %v991
    %v994 = vunpack.c.l.s4 1983009808
    %v995 = vunpack.c.0.s8 %v994
    %v996 = vperm.slane %v990, %v995
    %v998 = vunpack.c.l.s4 1983009808
    %v999 = vunpack.c.0.s8 %v998
    %v1000 = vperm.slane %v992, %v999
    %v1001 = vrot.slane %v309, 4
    %v1002 = vsel %vm541, %v1001, %v213
    %v1003 = vrot.slane %v213, 4
    %v1004 = vsel %vm541, %v309, %v1003
    %v1006 = vunpack.c.l.s4 1983009808
    %v1007 = vunpack.c.0.s8 %v1006
    %v1008 = vperm.slane %v1002, %v1007
    %v1010 = vunpack.c.l.s4 1983009808
    %v1011 = vunpack.c.0.s8 %v1010
    %v1012 = vperm.slane %v1004, %v1011
    %v1013 = vrot.slane %v453, 4
    %v1014 = vsel %vm541, %v1013, %v357
    %v1015 = vrot.slane %v357, 4
    %v1016 = vsel %vm541, %v453, %v1015
    %v1018 = vunpack.c.l.s4 1983009808
    %v1019 = vunpack.c.0.s8 %v1018
    %v1020 = vperm.slane %v1014, %v1019
    %v1022 = vunpack.c.l.s4 1983009808
    %v1023 = vunpack.c.0.s8 %v1022
    %v1024 = vperm.slane %v1016, %v1023
    %v1025 = vrot.slane %v501, 4
    %v1026 = vsel %vm541, %v1025, %v405
    %v1027 = vrot.slane %v405, 4
    %v1028 = vsel %vm541, %v501, %v1027
    %v1030 = vunpack.c.l.s4 1983009808
    %v1031 = vunpack.c.0.s8 %v1030
    %v1032 = vperm.slane %v1026, %v1031
    %v1034 = vunpack.c.l.s4 1983009808
    %v1035 = vunpack.c.0.s8 %v1034
    %v1036 = vperm.slane %v1028, %v1035
    %v1037 = vrot.slane %v1008, 4
    %v1038 = vsel %vm541, %v1037, %v996
    %v1039 = vrot.slane %v996, 4
    %v1040 = vsel %vm541, %v1008, %v1039
    %v1042 = vunpack.c.l.s4 1934713408
    %v1043 = vunpack.c.0.s8 %v1042
    %v1044 = vperm.slane %v1038, %v1043
    %v1046 = vunpack.c.l.s4 1934713408
    %v1047 = vunpack.c.0.s8 %v1046
    %v1048 = vperm.slane %v1040, %v1047
    %v1049 = vrot.slane %v1012, 4
    %v1050 = vsel %vm541, %v1049, %v1000
    %v1051 = vrot.slane %v1000, 4
    %v1052 = vsel %vm541, %v1012, %v1051
    %v1054 = vunpack.c.l.s4 1934713408
    %v1055 = vunpack.c.0.s8 %v1054
    %v1056 = vperm.slane %v1050, %v1055
    %v1058 = vunpack.c.l.s4 1934713408
    %v1059 = vunpack.c.0.s8 %v1058
    %v1060 = vperm.slane %v1052, %v1059
    %v1061 = vrot.slane %v1032, 4
    %v1062 = vsel %vm541, %v1061, %v1020
    %v1063 = vrot.slane %v1020, 4
    %v1064 = vsel %vm541, %v1032, %v1063
    %v1066 = vunpack.c.l.s4 1934713408
    %v1067 = vunpack.c.0.s8 %v1066
    %v1068 = vperm.slane %v1062, %v1067
    %v1070 = vunpack.c.l.s4 1934713408
    %v1071 = vunpack.c.0.s8 %v1070
    %v1072 = vperm.slane %v1064, %v1071
    %v1073 = vrot.slane %v1036, 4
    %v1074 = vsel %vm541, %v1073, %v1024
    %v1075 = vrot.slane %v1024, 4
    %v1076 = vsel %vm541, %v1036, %v1075
    %v1078 = vunpack.c.l.s4 1934713408
    %v1079 = vunpack.c.0.s8 %v1078
    %v1080 = vperm.slane %v1074, %v1079
    %v1082 = vunpack.c.l.s4 1934713408
    %v1083 = vunpack.c.0.s8 %v1082
    %v1084 = vperm.slane %v1076, %v1083
    %v1085 = vrot.slane %v1068, 4
    %v1086 = vsel %vm541, %v1085, %v1044
    %v1087 = vrot.slane %v1044, 4
    %v1088 = vsel %vm541, %v1068, %v1087
    %v1089 = vrot.slane %v1072, 4
    %v1090 = vsel %vm541, %v1089, %v1048
    %v1091 = vrot.slane %v1048, 4
    %v1092 = vsel %vm541, %v1072, %v1091
    %v1093 = vrot.slane %v1080, 4
    %v1094 = vsel %vm541, %v1093, %v1056
    %v1095 = vrot.slane %v1056, 4
    %v1096 = vsel %vm541, %v1080, %v1095
    %v1097 = vrot.slane %v1084, 4
    %v1098 = vsel %vm541, %v1097, %v1060
    %v1099 = vrot.slane %v1060, 4
    %v1100 = vsel %vm541, %v1084, %v1099
    %v1101 = vrot.slane %v263, 4
    %v1102 = vsel %vm541, %v1101, %v177
    %v1103 = vrot.slane %v177, 4
    %v1104 = vsel %vm541, %v263, %v1103
    %v1106 = vunpack.c.l.s4 1983009808
    %v1107 = vunpack.c.0.s8 %v1106
    %v1108 = vperm.slane %v1102, %v1107
    %v1110 = vunpack.c.l.s4 1983009808
    %v1111 = vunpack.c.0.s8 %v1110
    %v1112 = vperm.slane %v1104, %v1111
    %v1113 = vrot.slane %v311, 4
    %v1114 = vsel %vm541, %v1113, %v215
    %v1115 = vrot.slane %v215, 4
    %v1116 = vsel %vm541, %v311, %v1115
    %v1118 = vunpack.c.l.s4 1983009808
    %v1119 = vunpack.c.0.s8 %v1118
    %v1120 = vperm.slane %v1114, %v1119
    %v1122 = vunpack.c.l.s4 1983009808
    %v1123 = vunpack.c.0.s8 %v1122
    %v1124 = vperm.slane %v1116, %v1123
    %v1125 = vrot.slane %v455, 4
    %v1126 = vsel %vm541, %v1125, %v359
    %v1127 = vrot.slane %v359, 4
    %v1128 = vsel %vm541, %v455, %v1127
    %v1130 = vunpack.c.l.s4 1983009808
    %v1131 = vunpack.c.0.s8 %v1130
    %v1132 = vperm.slane %v1126, %v1131
    %v1134 = vunpack.c.l.s4 1983009808
    %v1135 = vunpack.c.0.s8 %v1134
    %v1136 = vperm.slane %v1128, %v1135
    %v1137 = vrot.slane %v503, 4
    %v1138 = vsel %vm541, %v1137, %v407
    %v1139 = vrot.slane %v407, 4
    %v1140 = vsel %vm541, %v503, %v1139
    %v1142 = vunpack.c.l.s4 1983009808
    %v1143 = vunpack.c.0.s8 %v1142
    %v1144 = vperm.slane %v1138, %v1143
    %v1146 = vunpack.c.l.s4 1983009808
    %v1147 = vunpack.c.0.s8 %v1146
    %v1148 = vperm.slane %v1140, %v1147
    %v1149 = vrot.slane %v1120, 4
    %v1150 = vsel %vm541, %v1149, %v1108
    %v1151 = vrot.slane %v1108, 4
    %v1152 = vsel %vm541, %v1120, %v1151
    %v1154 = vunpack.c.l.s4 1934713408
    %v1155 = vunpack.c.0.s8 %v1154
    %v1156 = vperm.slane %v1150, %v1155
    %v1158 = vunpack.c.l.s4 1934713408
    %v1159 = vunpack.c.0.s8 %v1158
    %v1160 = vperm.slane %v1152, %v1159
    %v1161 = vrot.slane %v1124, 4
    %v1162 = vsel %vm541, %v1161, %v1112
    %v1163 = vrot.slane %v1112, 4
    %v1164 = vsel %vm541, %v1124, %v1163
    %v1166 = vunpack.c.l.s4 1934713408
    %v1167 = vunpack.c.0.s8 %v1166
    %v1168 = vperm.slane %v1162, %v1167
    %v1170 = vunpack.c.l.s4 1934713408
    %v1171 = vunpack.c.0.s8 %v1170
    %v1172 = vperm.slane %v1164, %v1171
    %v1173 = vrot.slane %v1144, 4
    %v1174 = vsel %vm541, %v1173, %v1132
    %v1175 = vrot.slane %v1132, 4
    %v1176 = vsel %vm541, %v1144, %v1175
    %v1178 = vunpack.c.l.s4 1934713408
    %v1179 = vunpack.c.0.s8 %v1178
    %v1180 = vperm.slane %v1174, %v1179
    %v1182 = vunpack.c.l.s4 1934713408
    %v1183 = vunpack.c.0.s8 %v1182
    %v1184 = vperm.slane %v1176, %v1183
    %v1185 = vrot.slane %v1148, 4
    %v1186 = vsel %vm541, %v1185, %v1136
    %v1187 = vrot.slane %v1136, 4
    %v1188 = vsel %vm541, %v1148, %v1187
    %v1190 = vunpack.c.l.s4 1934713408
    %v1191 = vunpack.c.0.s8 %v1190
    %v1192 = vperm.slane %v1186, %v1191
    %v1194 = vunpack.c.l.s4 1934713408
    %v1195 = vunpack.c.0.s8 %v1194
    %v1196 = vperm.slane %v1188, %v1195
    %v1197 = vrot.slane %v1180, 4
    %v1198 = vsel %vm541, %v1197, %v1156
    %v1199 = vrot.slane %v1156, 4
    %v1200 = vsel %vm541, %v1180, %v1199
    %v1201 = vrot.slane %v1184, 4
    %v1202 = vsel %vm541, %v1201, %v1160
    %v1203 = vrot.slane %v1160, 4
    %v1204 = vsel %vm541, %v1184, %v1203
    %v1205 = vrot.slane %v1192, 4
    %v1206 = vsel %vm541, %v1205, %v1168
    %v1207 = vrot.slane %v1168, 4
    %v1208 = vsel %vm541, %v1192, %v1207
    %v1209 = vrot.slane %v1196, 4
    %v1210 = vsel %vm541, %v1209, %v1172
    %v1211 = vrot.slane %v1172, 4
    %v1212 = vsel %vm541, %v1196, %v1211
    %v1213 = vrot.slane %v265, 4
    %v1214 = vsel %vm541, %v1213, %v178
    %v1215 = vrot.slane %v178, 4
    %v1216 = vsel %vm541, %v265, %v1215
    %v1218 = vunpack.c.l.s4 1983009808
    %v1219 = vunpack.c.0.s8 %v1218
    %v1220 = vperm.slane %v1214, %v1219
    %v1222 = vunpack.c.l.s4 1983009808
    %v1223 = vunpack.c.0.s8 %v1222
    %v1224 = vperm.slane %v1216, %v1223
    %v1225 = vrot.slane %v313, 4
    %v1226 = vsel %vm541, %v1225, %v217
    %v1227 = vrot.slane %v217, 4
    %v1228 = vsel %vm541, %v313, %v1227
    %v1230 = vunpack.c.l.s4 1983009808
    %v1231 = vunpack.c.0.s8 %v1230
    %v1232 = vperm.slane %v1226, %v1231
    %v1234 = vunpack.c.l.s4 1983009808
    %v1235 = vunpack.c.0.s8 %v1234
    %v1236 = vperm.slane %v1228, %v1235
    %v1237 = vrot.slane %v457, 4
    %v1238 = vsel %vm541, %v1237, %v361
    %v1239 = vrot.slane %v361, 4
    %v1240 = vsel %vm541, %v457, %v1239
    %v1242 = vunpack.c.l.s4 1983009808
    %v1243 = vunpack.c.0.s8 %v1242
    %v1244 = vperm.slane %v1238, %v1243
    %v1246 = vunpack.c.l.s4 1983009808
    %v1247 = vunpack.c.0.s8 %v1246
    %v1248 = vperm.slane %v1240, %v1247
    %v1249 = vrot.slane %v505, 4
    %v1250 = vsel %vm541, %v1249, %v409
    %v1251 = vrot.slane %v409, 4
    %v1252 = vsel %vm541, %v505, %v1251
    %v1254 = vunpack.c.l.s4 1983009808
    %v1255 = vunpack.c.0.s8 %v1254
    %v1256 = vperm.slane %v1250, %v1255
    %v1258 = vunpack.c.l.s4 1983009808
    %v1259 = vunpack.c.0.s8 %v1258
    %v1260 = vperm.slane %v1252, %v1259
    %v1261 = vrot.slane %v1232, 4
    %v1262 = vsel %vm541, %v1261, %v1220
    %v1263 = vrot.slane %v1220, 4
    %v1264 = vsel %vm541, %v1232, %v1263
    %v1266 = vunpack.c.l.s4 1934713408
    %v1267 = vunpack.c.0.s8 %v1266
    %v1268 = vperm.slane %v1262, %v1267
    %v1270 = vunpack.c.l.s4 1934713408
    %v1271 = vunpack.c.0.s8 %v1270
    %v1272 = vperm.slane %v1264, %v1271
    %v1273 = vrot.slane %v1236, 4
    %v1274 = vsel %vm541, %v1273, %v1224
    %v1275 = vrot.slane %v1224, 4
    %v1276 = vsel %vm541, %v1236, %v1275
    %v1278 = vunpack.c.l.s4 1934713408
    %v1279 = vunpack.c.0.s8 %v1278
    %v1280 = vperm.slane %v1274, %v1279
    %v1282 = vunpack.c.l.s4 1934713408
    %v1283 = vunpack.c.0.s8 %v1282
    %v1284 = vperm.slane %v1276, %v1283
    %v1285 = vrot.slane %v1256, 4
    %v1286 = vsel %vm541, %v1285, %v1244
    %v1287 = vrot.slane %v1244, 4
    %v1288 = vsel %vm541, %v1256, %v1287
    %v1290 = vunpack.c.l.s4 1934713408
    %v1291 = vunpack.c.0.s8 %v1290
    %v1292 = vperm.slane %v1286, %v1291
    %v1294 = vunpack.c.l.s4 1934713408
    %v1295 = vunpack.c.0.s8 %v1294
    %v1296 = vperm.slane %v1288, %v1295
    %v1297 = vrot.slane %v1260, 4
    %v1298 = vsel %vm541, %v1297, %v1248
    %v1299 = vrot.slane %v1248, 4
    %v1300 = vsel %vm541, %v1260, %v1299
    %v1302 = vunpack.c.l.s4 1934713408
    %v1303 = vunpack.c.0.s8 %v1302
    %v1304 = vperm.slane %v1298, %v1303
    %v1306 = vunpack.c.l.s4 1934713408
    %v1307 = vunpack.c.0.s8 %v1306
    %v1308 = vperm.slane %v1300, %v1307
    %v1309 = vrot.slane %v1292, 4
    %v1310 = vsel %vm541, %v1309, %v1268
    %v1311 = vrot.slane %v1268, 4
    %v1312 = vsel %vm541, %v1292, %v1311
    %v1313 = vrot.slane %v1296, 4
    %v1314 = vsel %vm541, %v1313, %v1272
    %v1315 = vrot.slane %v1272, 4
    %v1316 = vsel %vm541, %v1296, %v1315
    %v1317 = vrot.slane %v1304, 4
    %v1318 = vsel %vm541, %v1317, %v1280
    %v1319 = vrot.slane %v1280, 4
    %v1320 = vsel %vm541, %v1304, %v1319
    %v1321 = vrot.slane %v1308, 4
    %v1322 = vsel %vm541, %v1321, %v1284
    %v1323 = vrot.slane %v1284, 4
    %v1324 = vsel %vm541, %v1308, %v1323
    %v1325 = vrot.slane %v267, 4
    %v1326 = vsel %vm541, %v1325, %v179
    %v1327 = vrot.slane %v179, 4
    %v1328 = vsel %vm541, %v267, %v1327
    %v1330 = vunpack.c.l.s4 1983009808
    %v1331 = vunpack.c.0.s8 %v1330
    %v1332 = vperm.slane %v1326, %v1331
    %v1334 = vunpack.c.l.s4 1983009808
    %v1335 = vunpack.c.0.s8 %v1334
    %v1336 = vperm.slane %v1328, %v1335
    %v1337 = vrot.slane %v315, 4
    %v1338 = vsel %vm541, %v1337, %v219
    %v1339 = vrot.slane %v219, 4
    %v1340 = vsel %vm541, %v315, %v1339
    %v1342 = vunpack.c.l.s4 1983009808
    %v1343 = vunpack.c.0.s8 %v1342
    %v1344 = vperm.slane %v1338, %v1343
    %v1346 = vunpack.c.l.s4 1983009808
    %v1347 = vunpack.c.0.s8 %v1346
    %v1348 = vperm.slane %v1340, %v1347
    %v1349 = vrot.slane %v459, 4
    %v1350 = vsel %vm541, %v1349, %v363
    %v1351 = vrot.slane %v363, 4
    %v1352 = vsel %vm541, %v459, %v1351
    %v1354 = vunpack.c.l.s4 1983009808
    %v1355 = vunpack.c.0.s8 %v1354
    %v1356 = vperm.slane %v1350, %v1355
    %v1358 = vunpack.c.l.s4 1983009808
    %v1359 = vunpack.c.0.s8 %v1358
    %v1360 = vperm.slane %v1352, %v1359
    %v1361 = vrot.slane %v507, 4
    %v1362 = vsel %vm541, %v1361, %v411
    %v1363 = vrot.slane %v411, 4
    %v1364 = vsel %vm541, %v507, %v1363
    %v1366 = vunpack.c.l.s4 1983009808
    %v1367 = vunpack.c.0.s8 %v1366
    %v1368 = vperm.slane %v1362, %v1367
    %v1370 = vunpack.c.l.s4 1983009808
    %v1371 = vunpack.c.0.s8 %v1370
    %v1372 = vperm.slane %v1364, %v1371
    %v1373 = vrot.slane %v1344, 4
    %v1374 = vsel %vm541, %v1373, %v1332
    %v1375 = vrot.slane %v1332, 4
    %v1376 = vsel %vm541, %v1344, %v1375
    %v1378 = vunpack.c.l.s4 1934713408
    %v1379 = vunpack.c.0.s8 %v1378
    %v1380 = vperm.slane %v1374, %v1379
    %v1382 = vunpack.c.l.s4 1934713408
    %v1383 = vunpack.c.0.s8 %v1382
    %v1384 = vperm.slane %v1376, %v1383
    %v1385 = vrot.slane %v1348, 4
    %v1386 = vsel %vm541, %v1385, %v1336
    %v1387 = vrot.slane %v1336, 4
    %v1388 = vsel %vm541, %v1348, %v1387
    %v1390 = vunpack.c.l.s4 1934713408
    %v1391 = vunpack.c.0.s8 %v1390
    %v1392 = vperm.slane %v1386, %v1391
    %v1394 = vunpack.c.l.s4 1934713408
    %v1395 = vunpack.c.0.s8 %v1394
    %v1396 = vperm.slane %v1388, %v1395
    %v1397 = vrot.slane %v1368, 4
    %v1398 = vsel %vm541, %v1397, %v1356
    %v1399 = vrot.slane %v1356, 4
    %v1400 = vsel %vm541, %v1368, %v1399
    %v1402 = vunpack.c.l.s4 1934713408
    %v1403 = vunpack.c.0.s8 %v1402
    %v1404 = vperm.slane %v1398, %v1403
    %v1406 = vunpack.c.l.s4 1934713408
    %v1407 = vunpack.c.0.s8 %v1406
    %v1408 = vperm.slane %v1400, %v1407
    %v1409 = vrot.slane %v1372, 4
    %v1410 = vsel %vm541, %v1409, %v1360
    %v1411 = vrot.slane %v1360, 4
    %v1412 = vsel %vm541, %v1372, %v1411
    %v1414 = vunpack.c.l.s4 1934713408
    %v1415 = vunpack.c.0.s8 %v1414
    %v1416 = vperm.slane %v1410, %v1415
    %v1418 = vunpack.c.l.s4 1934713408
    %v1419 = vunpack.c.0.s8 %v1418
    %v1420 = vperm.slane %v1412, %v1419
    %v1421 = vrot.slane %v1404, 4
    %v1422 = vsel %vm541, %v1421, %v1380
    %v1423 = vrot.slane %v1380, 4
    %v1424 = vsel %vm541, %v1404, %v1423
    %v1425 = vrot.slane %v1408, 4
    %v1426 = vsel %vm541, %v1425, %v1384
    %v1427 = vrot.slane %v1384, 4
    %v1428 = vsel %vm541, %v1408, %v1427
    %v1429 = vrot.slane %v1416, 4
    %v1430 = vsel %vm541, %v1429, %v1392
    %v1431 = vrot.slane %v1392, 4
    %v1432 = vsel %vm541, %v1416, %v1431
    %v1433 = vrot.slane %v1420, 4
    %v1434 = vsel %vm541, %v1433, %v1396
    %v1435 = vrot.slane %v1396, 4
    %v1436 = vsel %vm541, %v1420, %v1435
    %v1437 = vrot.slane %v269, 4
    %v1438 = vsel %vm541, %v1437, %v180
    %v1439 = vrot.slane %v180, 4
    %v1440 = vsel %vm541, %v269, %v1439
    %v1442 = vunpack.c.l.s4 1983009808
    %v1443 = vunpack.c.0.s8 %v1442
    %v1444 = vperm.slane %v1438, %v1443
    %v1446 = vunpack.c.l.s4 1983009808
    %v1447 = vunpack.c.0.s8 %v1446
    %v1448 = vperm.slane %v1440, %v1447
    %v1449 = vrot.slane %v317, 4
    %v1450 = vsel %vm541, %v1449, %v221
    %v1451 = vrot.slane %v221, 4
    %v1452 = vsel %vm541, %v317, %v1451
    %v1454 = vunpack.c.l.s4 1983009808
    %v1455 = vunpack.c.0.s8 %v1454
    %v1456 = vperm.slane %v1450, %v1455
    %v1458 = vunpack.c.l.s4 1983009808
    %v1459 = vunpack.c.0.s8 %v1458
    %v1460 = vperm.slane %v1452, %v1459
    %v1461 = vrot.slane %v461, 4
    %v1462 = vsel %vm541, %v1461, %v365
    %v1463 = vrot.slane %v365, 4
    %v1464 = vsel %vm541, %v461, %v1463
    %v1466 = vunpack.c.l.s4 1983009808
    %v1467 = vunpack.c.0.s8 %v1466
    %v1468 = vperm.slane %v1462, %v1467
    %v1470 = vunpack.c.l.s4 1983009808
    %v1471 = vunpack.c.0.s8 %v1470
    %v1472 = vperm.slane %v1464, %v1471
    %v1473 = vrot.slane %v509, 4
    %v1474 = vsel %vm541, %v1473, %v413
    %v1475 = vrot.slane %v413, 4
    %v1476 = vsel %vm541, %v509, %v1475
    %v1478 = vunpack.c.l.s4 1983009808
    %v1479 = vunpack.c.0.s8 %v1478
    %v1480 = vperm.slane %v1474, %v1479
    %v1482 = vunpack.c.l.s4 1983009808
    %v1483 = vunpack.c.0.s8 %v1482
    %v1484 = vperm.slane %v1476, %v1483
    %v1485 = vrot.slane %v1456, 4
    %v1486 = vsel %vm541, %v1485, %v1444
    %v1487 = vrot.slane %v1444, 4
    %v1488 = vsel %vm541, %v1456, %v1487
    %v1490 = vunpack.c.l.s4 1934713408
    %v1491 = vunpack.c.0.s8 %v1490
    %v1492 = vperm.slane %v1486, %v1491
    %v1494 = vunpack.c.l.s4 1934713408
    %v1495 = vunpack.c.0.s8 %v1494
    %v1496 = vperm.slane %v1488, %v1495
    %v1497 = vrot.slane %v1460, 4
    %v1498 = vsel %vm541, %v1497, %v1448
    %v1499 = vrot.slane %v1448, 4
    %v1500 = vsel %vm541, %v1460, %v1499
    %v1502 = vunpack.c.l.s4 1934713408
    %v1503 = vunpack.c.0.s8 %v1502
    %v1504 = vperm.slane %v1498, %v1503
    %v1506 = vunpack.c.l.s4 1934713408
    %v1507 = vunpack.c.0.s8 %v1506
    %v1508 = vperm.slane %v1500, %v1507
    %v1509 = vrot.slane %v1480, 4
    %v1510 = vsel %vm541, %v1509, %v1468
    %v1511 = vrot.slane %v1468, 4
    %v1512 = vsel %vm541, %v1480, %v1511
    %v1514 = vunpack.c.l.s4 1934713408
    %v1515 = vunpack.c.0.s8 %v1514
    %v1516 = vperm.slane %v1510, %v1515
    %v1518 = vunpack.c.l.s4 1934713408
    %v1519 = vunpack.c.0.s8 %v1518
    %v1520 = vperm.slane %v1512, %v1519
    %v1521 = vrot.slane %v1484, 4
    %v1522 = vsel %vm541, %v1521, %v1472
    %v1523 = vrot.slane %v1472, 4
    %v1524 = vsel %vm541, %v1484, %v1523
    %v1526 = vunpack.c.l.s4 1934713408
    %v1527 = vunpack.c.0.s8 %v1526
    %v1528 = vperm.slane %v1522, %v1527
    %v1530 = vunpack.c.l.s4 1934713408
    %v1531 = vunpack.c.0.s8 %v1530
    %v1532 = vperm.slane %v1524, %v1531
    %v1533 = vrot.slane %v1516, 4
    %v1534 = vsel %vm541, %v1533, %v1492
    %v1535 = vrot.slane %v1492, 4
    %v1536 = vsel %vm541, %v1516, %v1535
    %v1537 = vrot.slane %v1520, 4
    %v1538 = vsel %vm541, %v1537, %v1496
    %v1539 = vrot.slane %v1496, 4
    %v1540 = vsel %vm541, %v1520, %v1539
    %v1541 = vrot.slane %v1528, 4
    %v1542 = vsel %vm541, %v1541, %v1504
    %v1543 = vrot.slane %v1504, 4
    %v1544 = vsel %vm541, %v1528, %v1543
    %v1545 = vrot.slane %v1532, 4
    %v1546 = vsel %vm541, %v1545, %v1508
    %v1547 = vrot.slane %v1508, 4
    %v1548 = vsel %vm541, %v1532, %v1547
    %v1549 = vrot.slane %v271, 4
    %v1550 = vsel %vm541, %v1549, %v181
    %v1551 = vrot.slane %v181, 4
    %v1552 = vsel %vm541, %v271, %v1551
    %v1554 = vunpack.c.l.s4 1983009808
    %v1555 = vunpack.c.0.s8 %v1554
    %v1556 = vperm.slane %v1550, %v1555
    %v1558 = vunpack.c.l.s4 1983009808
    %v1559 = vunpack.c.0.s8 %v1558
    %v1560 = vperm.slane %v1552, %v1559
    %v1561 = vrot.slane %v319, 4
    %v1562 = vsel %vm541, %v1561, %v223
    %v1563 = vrot.slane %v223, 4
    %v1564 = vsel %vm541, %v319, %v1563
    %v1566 = vunpack.c.l.s4 1983009808
    %v1567 = vunpack.c.0.s8 %v1566
    %v1568 = vperm.slane %v1562, %v1567
    %v1570 = vunpack.c.l.s4 1983009808
    %v1571 = vunpack.c.0.s8 %v1570
    %v1572 = vperm.slane %v1564, %v1571
    %v1573 = vrot.slane %v463, 4
    %v1574 = vsel %vm541, %v1573, %v367
    %v1575 = vrot.slane %v367, 4
    %v1576 = vsel %vm541, %v463, %v1575
    %v1578 = vunpack.c.l.s4 1983009808
    %v1579 = vunpack.c.0.s8 %v1578
    %v1580 = vperm.slane %v1574, %v1579
    %v1582 = vunpack.c.l.s4 1983009808
    %v1583 = vunpack.c.0.s8 %v1582
    %v1584 = vperm.slane %v1576, %v1583
    %v1585 = vrot.slane %v511, 4
    %v1586 = vsel %vm541, %v1585, %v415
    %v1587 = vrot.slane %v415, 4
    %v1588 = vsel %vm541, %v511, %v1587
    %v1590 = vunpack.c.l.s4 1983009808
    %v1591 = vunpack.c.0.s8 %v1590
    %v1592 = vperm.slane %v1586, %v1591
    %v1594 = vunpack.c.l.s4 1983009808
    %v1595 = vunpack.c.0.s8 %v1594
    %v1596 = vperm.slane %v1588, %v1595
    %v1597 = vrot.slane %v1568, 4
    %v1598 = vsel %vm541, %v1597, %v1556
    %v1599 = vrot.slane %v1556, 4
    %v1600 = vsel %vm541, %v1568, %v1599
    %v1602 = vunpack.c.l.s4 1934713408
    %v1603 = vunpack.c.0.s8 %v1602
    %v1604 = vperm.slane %v1598, %v1603
    %v1606 = vunpack.c.l.s4 1934713408
    %v1607 = vunpack.c.0.s8 %v1606
    %v1608 = vperm.slane %v1600, %v1607
    %v1609 = vrot.slane %v1572, 4
    %v1610 = vsel %vm541, %v1609, %v1560
    %v1611 = vrot.slane %v1560, 4
    %v1612 = vsel %vm541, %v1572, %v1611
    %v1614 = vunpack.c.l.s4 1934713408
    %v1615 = vunpack.c.0.s8 %v1614
    %v1616 = vperm.slane %v1610, %v1615
    %v1618 = vunpack.c.l.s4 1934713408
    %v1619 = vunpack.c.0.s8 %v1618
    %v1620 = vperm.slane %v1612, %v1619
    %v1621 = vrot.slane %v1592, 4
    %v1622 = vsel %vm541, %v1621, %v1580
    %v1623 = vrot.slane %v1580, 4
    %v1624 = vsel %vm541, %v1592, %v1623
    %v1626 = vunpack.c.l.s4 1934713408
    %v1627 = vunpack.c.0.s8 %v1626
    %v1628 = vperm.slane %v1622, %v1627
    %v1630 = vunpack.c.l.s4 1934713408
    %v1631 = vunpack.c.0.s8 %v1630
    %v1632 = vperm.slane %v1624, %v1631
    %v1633 = vrot.slane %v1596, 4
    %v1634 = vsel %vm541, %v1633, %v1584
    %v1635 = vrot.slane %v1584, 4
    %v1636 = vsel %vm541, %v1596, %v1635
    %v1638 = vunpack.c.l.s4 1934713408
    %v1639 = vunpack.c.0.s8 %v1638
    %v1640 = vperm.slane %v1634, %v1639
    %v1642 = vunpack.c.l.s4 1934713408
    %v1643 = vunpack.c.0.s8 %v1642
    %v1644 = vperm.slane %v1636, %v1643
    %v1645 = vrot.slane %v1628, 4
    %v1646 = vsel %vm541, %v1645, %v1604
    %v1647 = vrot.slane %v1604, 4
    %v1648 = vsel %vm541, %v1628, %v1647
    %v1649 = vrot.slane %v1632, 4
    %v1650 = vsel %vm541, %v1649, %v1608
    %v1651 = vrot.slane %v1608, 4
    %v1652 = vsel %vm541, %v1632, %v1651
    %v1653 = vrot.slane %v1640, 4
    %v1654 = vsel %vm541, %v1653, %v1616
    %v1655 = vrot.slane %v1616, 4
    %v1656 = vsel %vm541, %v1640, %v1655
    %v1657 = vrot.slane %v1644, 4
    %v1658 = vsel %vm541, %v1657, %v1620
    %v1659 = vrot.slane %v1620, 4
    %v1660 = vsel %vm541, %v1644, %v1659
    %v1661 = vrot.slane %v273, 4
    %v1662 = vsel %vm541, %v1661, %v182
    %v1663 = vrot.slane %v182, 4
    %v1664 = vsel %vm541, %v273, %v1663
    %v1666 = vunpack.c.l.s4 1983009808
    %v1667 = vunpack.c.0.s8 %v1666
    %v1668 = vperm.slane %v1662, %v1667
    %v1670 = vunpack.c.l.s4 1983009808
    %v1671 = vunpack.c.0.s8 %v1670
    %v1672 = vperm.slane %v1664, %v1671
    %v1673 = vrot.slane %v321, 4
    %v1674 = vsel %vm541, %v1673, %v225
    %v1675 = vrot.slane %v225, 4
    %v1676 = vsel %vm541, %v321, %v1675
    %v1678 = vunpack.c.l.s4 1983009808
    %v1679 = vunpack.c.0.s8 %v1678
    %v1680 = vperm.slane %v1674, %v1679
    %v1682 = vunpack.c.l.s4 1983009808
    %v1683 = vunpack.c.0.s8 %v1682
    %v1684 = vperm.slane %v1676, %v1683
    %v1685 = vrot.slane %v465, 4
    %v1686 = vsel %vm541, %v1685, %v369
    %v1687 = vrot.slane %v369, 4
    %v1688 = vsel %vm541, %v465, %v1687
    %v1690 = vunpack.c.l.s4 1983009808
    %v1691 = vunpack.c.0.s8 %v1690
    %v1692 = vperm.slane %v1686, %v1691
    %v1694 = vunpack.c.l.s4 1983009808
    %v1695 = vunpack.c.0.s8 %v1694
    %v1696 = vperm.slane %v1688, %v1695
    %v1697 = vrot.slane %v513, 4
    %v1698 = vsel %vm541, %v1697, %v417
    %v1699 = vrot.slane %v417, 4
    %v1700 = vsel %vm541, %v513, %v1699
    %v1702 = vunpack.c.l.s4 1983009808
    %v1703 = vunpack.c.0.s8 %v1702
    %v1704 = vperm.slane %v1698, %v1703
    %v1706 = vunpack.c.l.s4 1983009808
    %v1707 = vunpack.c.0.s8 %v1706
    %v1708 = vperm.slane %v1700, %v1707
    %v1709 = vrot.slane %v1680, 4
    %v1710 = vsel %vm541, %v1709, %v1668
    %v1711 = vrot.slane %v1668, 4
    %v1712 = vsel %vm541, %v1680, %v1711
    %v1714 = vunpack.c.l.s4 1934713408
    %v1715 = vunpack.c.0.s8 %v1714
    %v1716 = vperm.slane %v1710, %v1715
    %v1718 = vunpack.c.l.s4 1934713408
    %v1719 = vunpack.c.0.s8 %v1718
    %v1720 = vperm.slane %v1712, %v1719
    %v1721 = vrot.slane %v1684, 4
    %v1722 = vsel %vm541, %v1721, %v1672
    %v1723 = vrot.slane %v1672, 4
    %v1724 = vsel %vm541, %v1684, %v1723
    %v1726 = vunpack.c.l.s4 1934713408
    %v1727 = vunpack.c.0.s8 %v1726
    %v1728 = vperm.slane %v1722, %v1727
    %v1730 = vunpack.c.l.s4 1934713408
    %v1731 = vunpack.c.0.s8 %v1730
    %v1732 = vperm.slane %v1724, %v1731
    %v1733 = vrot.slane %v1704, 4
    %v1734 = vsel %vm541, %v1733, %v1692
    %v1735 = vrot.slane %v1692, 4
    %v1736 = vsel %vm541, %v1704, %v1735
    %v1738 = vunpack.c.l.s4 1934713408
    %v1739 = vunpack.c.0.s8 %v1738
    %v1740 = vperm.slane %v1734, %v1739
    %v1742 = vunpack.c.l.s4 1934713408
    %v1743 = vunpack.c.0.s8 %v1742
    %v1744 = vperm.slane %v1736, %v1743
    %v1745 = vrot.slane %v1708, 4
    %v1746 = vsel %vm541, %v1745, %v1696
    %v1747 = vrot.slane %v1696, 4
    %v1748 = vsel %vm541, %v1708, %v1747
    %v1750 = vunpack.c.l.s4 1934713408
    %v1751 = vunpack.c.0.s8 %v1750
    %v1752 = vperm.slane %v1746, %v1751
    %v1754 = vunpack.c.l.s4 1934713408
    %v1755 = vunpack.c.0.s8 %v1754
    %v1756 = vperm.slane %v1748, %v1755
    %v1757 = vrot.slane %v1740, 4
    %v1758 = vsel %vm541, %v1757, %v1716
    %v1759 = vrot.slane %v1716, 4
    %v1760 = vsel %vm541, %v1740, %v1759
    %v1761 = vrot.slane %v1744, 4
    %v1762 = vsel %vm541, %v1761, %v1720
    %v1763 = vrot.slane %v1720, 4
    %v1764 = vsel %vm541, %v1744, %v1763
    %v1765 = vrot.slane %v1752, 4
    %v1766 = vsel %vm541, %v1765, %v1728
    %v1767 = vrot.slane %v1728, 4
    %v1768 = vsel %vm541, %v1752, %v1767
    %v1769 = vrot.slane %v1756, 4
    %v1770 = vsel %vm541, %v1769, %v1732
    %v1771 = vrot.slane %v1732, 4
    %v1772 = vsel %vm541, %v1756, %v1771
    %v1773 = vrot.slane %v275, 4
    %v1774 = vsel %vm541, %v1773, %v183
    %v1775 = vrot.slane %v183, 4
    %v1776 = vsel %vm541, %v275, %v1775
    %v1778 = vunpack.c.l.s4 1983009808
    %v1779 = vunpack.c.0.s8 %v1778
    %v1780 = vperm.slane %v1774, %v1779
    %v1782 = vunpack.c.l.s4 1983009808
    %v1783 = vunpack.c.0.s8 %v1782
    %v1784 = vperm.slane %v1776, %v1783
    %v1785 = vrot.slane %v323, 4
    %v1786 = vsel %vm541, %v1785, %v227
    %v1787 = vrot.slane %v227, 4
    %v1788 = vsel %vm541, %v323, %v1787
    %v1790 = vunpack.c.l.s4 1983009808
    %v1791 = vunpack.c.0.s8 %v1790
    %v1792 = vperm.slane %v1786, %v1791
    %v1794 = vunpack.c.l.s4 1983009808
    %v1795 = vunpack.c.0.s8 %v1794
    %v1796 = vperm.slane %v1788, %v1795
    %v1797 = vrot.slane %v467, 4
    %v1798 = vsel %vm541, %v1797, %v371
    %v1799 = vrot.slane %v371, 4
    %v1800 = vsel %vm541, %v467, %v1799
    %v1802 = vunpack.c.l.s4 1983009808
    %v1803 = vunpack.c.0.s8 %v1802
    %v1804 = vperm.slane %v1798, %v1803
    %v1806 = vunpack.c.l.s4 1983009808
    %v1807 = vunpack.c.0.s8 %v1806
    %v1808 = vperm.slane %v1800, %v1807
    %v1809 = vrot.slane %v515, 4
    %v1810 = vsel %vm541, %v1809, %v419
    %v1811 = vrot.slane %v419, 4
    %v1812 = vsel %vm541, %v515, %v1811
    %v1814 = vunpack.c.l.s4 1983009808
    %v1815 = vunpack.c.0.s8 %v1814
    %v1816 = vperm.slane %v1810, %v1815
    %v1818 = vunpack.c.l.s4 1983009808
    %v1819 = vunpack.c.0.s8 %v1818
    %v1820 = vperm.slane %v1812, %v1819
    %v1821 = vrot.slane %v1792, 4
    %v1822 = vsel %vm541, %v1821, %v1780
    %v1823 = vrot.slane %v1780, 4
    %v1824 = vsel %vm541, %v1792, %v1823
    %v1826 = vunpack.c.l.s4 1934713408
    %v1827 = vunpack.c.0.s8 %v1826
    %v1828 = vperm.slane %v1822, %v1827
    %v1830 = vunpack.c.l.s4 1934713408
    %v1831 = vunpack.c.0.s8 %v1830
    %v1832 = vperm.slane %v1824, %v1831
    %v1833 = vrot.slane %v1796, 4
    %v1834 = vsel %vm541, %v1833, %v1784
    %v1835 = vrot.slane %v1784, 4
    %v1836 = vsel %vm541, %v1796, %v1835
    %v1838 = vunpack.c.l.s4 1934713408
    %v1839 = vunpack.c.0.s8 %v1838
    %v1840 = vperm.slane %v1834, %v1839
    %v1842 = vunpack.c.l.s4 1934713408
    %v1843 = vunpack.c.0.s8 %v1842
    %v1844 = vperm.slane %v1836, %v1843
    %v1845 = vrot.slane %v1816, 4
    %v1846 = vsel %vm541, %v1845, %v1804
    %v1847 = vrot.slane %v1804, 4
    %v1848 = vsel %vm541, %v1816, %v1847
    %v1850 = vunpack.c.l.s4 1934713408
    %v1851 = vunpack.c.0.s8 %v1850
    %v1852 = vperm.slane %v1846, %v1851
    %v1854 = vunpack.c.l.s4 1934713408
    %v1855 = vunpack.c.0.s8 %v1854
    %v1856 = vperm.slane %v1848, %v1855
    %v1857 = vrot.slane %v1820, 4
    %v1858 = vsel %vm541, %v1857, %v1808
    %v1859 = vrot.slane %v1808, 4
    %v1860 = vsel %vm541, %v1820, %v1859
    %v1862 = vunpack.c.l.s4 1934713408
    %v1863 = vunpack.c.0.s8 %v1862
    %v1864 = vperm.slane %v1858, %v1863
    %v1866 = vunpack.c.l.s4 1934713408
    %v1867 = vunpack.c.0.s8 %v1866
    %v1868 = vperm.slane %v1860, %v1867
    %v1869 = vrot.slane %v1852, 4
    %v1870 = vsel %vm541, %v1869, %v1828
    %v1871 = vrot.slane %v1828, 4
    %v1872 = vsel %vm541, %v1852, %v1871
    %v1873 = vrot.slane %v1856, 4
    %v1874 = vsel %vm541, %v1873, %v1832
    %v1875 = vrot.slane %v1832, 4
    %v1876 = vsel %vm541, %v1856, %v1875
    %v1877 = vrot.slane %v1864, 4
    %v1878 = vsel %vm541, %v1877, %v1840
    %v1879 = vrot.slane %v1840, 4
    %v1880 = vsel %vm541, %v1864, %v1879
    %v1881 = vrot.slane %v1868, 4
    %v1882 = vsel %vm541, %v1881, %v1844
    %v1883 = vrot.slane %v1844, 4
    %v1884 = vsel %vm541, %v1868, %v1883
    %v1885 = vrot.slane %v277, 4
    %v1886 = vsel %vm541, %v1885, %v184
    %v1887 = vrot.slane %v184, 4
    %v1888 = vsel %vm541, %v277, %v1887
    %v1890 = vunpack.c.l.s4 1983009808
    %v1891 = vunpack.c.0.s8 %v1890
    %v1892 = vperm.slane %v1886, %v1891
    %v1894 = vunpack.c.l.s4 1983009808
    %v1895 = vunpack.c.0.s8 %v1894
    %v1896 = vperm.slane %v1888, %v1895
    %v1897 = vrot.slane %v325, 4
    %v1898 = vsel %vm541, %v1897, %v229
    %v1899 = vrot.slane %v229, 4
    %v1900 = vsel %vm541, %v325, %v1899
    %v1902 = vunpack.c.l.s4 1983009808
    %v1903 = vunpack.c.0.s8 %v1902
    %v1904 = vperm.slane %v1898, %v1903
    %v1906 = vunpack.c.l.s4 1983009808
    %v1907 = vunpack.c.0.s8 %v1906
    %v1908 = vperm.slane %v1900, %v1907
    %v1909 = vrot.slane %v469, 4
    %v1910 = vsel %vm541, %v1909, %v373
    %v1911 = vrot.slane %v373, 4
    %v1912 = vsel %vm541, %v469, %v1911
    %v1914 = vunpack.c.l.s4 1983009808
    %v1915 = vunpack.c.0.s8 %v1914
    %v1916 = vperm.slane %v1910, %v1915
    %v1918 = vunpack.c.l.s4 1983009808
    %v1919 = vunpack.c.0.s8 %v1918
    %v1920 = vperm.slane %v1912, %v1919
    %v1921 = vrot.slane %v517, 4
    %v1922 = vsel %vm541, %v1921, %v421
    %v1923 = vrot.slane %v421, 4
    %v1924 = vsel %vm541, %v517, %v1923
    %v1926 = vunpack.c.l.s4 1983009808
    %v1927 = vunpack.c.0.s8 %v1926
    %v1928 = vperm.slane %v1922, %v1927
    %v1930 = vunpack.c.l.s4 1983009808
    %v1931 = vunpack.c.0.s8 %v1930
    %v1932 = vperm.slane %v1924, %v1931
    %v1933 = vrot.slane %v1904, 4
    %v1934 = vsel %vm541, %v1933, %v1892
    %v1935 = vrot.slane %v1892, 4
    %v1936 = vsel %vm541, %v1904, %v1935
    %v1938 = vunpack.c.l.s4 1934713408
    %v1939 = vunpack.c.0.s8 %v1938
    %v1940 = vperm.slane %v1934, %v1939
    %v1942 = vunpack.c.l.s4 1934713408
    %v1943 = vunpack.c.0.s8 %v1942
    %v1944 = vperm.slane %v1936, %v1943
    %v1945 = vrot.slane %v1908, 4
    %v1946 = vsel %vm541, %v1945, %v1896
    %v1947 = vrot.slane %v1896, 4
    %v1948 = vsel %vm541, %v1908, %v1947
    %v1950 = vunpack.c.l.s4 1934713408
    %v1951 = vunpack.c.0.s8 %v1950
    %v1952 = vperm.slane %v1946, %v1951
    %v1954 = vunpack.c.l.s4 1934713408
    %v1955 = vunpack.c.0.s8 %v1954
    %v1956 = vperm.slane %v1948, %v1955
    %v1957 = vrot.slane %v1928, 4
    %v1958 = vsel %vm541, %v1957, %v1916
    %v1959 = vrot.slane %v1916, 4
    %v1960 = vsel %vm541, %v1928, %v1959
    %v1962 = vunpack.c.l.s4 1934713408
    %v1963 = vunpack.c.0.s8 %v1962
    %v1964 = vperm.slane %v1958, %v1963
    %v1966 = vunpack.c.l.s4 1934713408
    %v1967 = vunpack.c.0.s8 %v1966
    %v1968 = vperm.slane %v1960, %v1967
    %v1969 = vrot.slane %v1932, 4
    %v1970 = vsel %vm541, %v1969, %v1920
    %v1971 = vrot.slane %v1920, 4
    %v1972 = vsel %vm541, %v1932, %v1971
    %v1974 = vunpack.c.l.s4 1934713408
    %v1975 = vunpack.c.0.s8 %v1974
    %v1976 = vperm.slane %v1970, %v1975
    %v1978 = vunpack.c.l.s4 1934713408
    %v1979 = vunpack.c.0.s8 %v1978
    %v1980 = vperm.slane %v1972, %v1979
    %v1981 = vrot.slane %v1964, 4
    %v1982 = vsel %vm541, %v1981, %v1940
    %v1983 = vrot.slane %v1940, 4
    %v1984 = vsel %vm541, %v1964, %v1983
    %v1985 = vrot.slane %v1968, 4
    %v1986 = vsel %vm541, %v1985, %v1944
    %v1987 = vrot.slane %v1944, 4
    %v1988 = vsel %vm541, %v1968, %v1987
    %v1989 = vrot.slane %v1976, 4
    %v1990 = vsel %vm541, %v1989, %v1952
    %v1991 = vrot.slane %v1952, 4
    %v1992 = vsel %vm541, %v1976, %v1991
    %v1993 = vrot.slane %v1980, 4
    %v1994 = vsel %vm541, %v1993, %v1956
    %v1995 = vrot.slane %v1956, 4
    %v1996 = vsel %vm541, %v1980, %v1995
    %v1997 = vrot.slane %v279, 4
    %v1998 = vsel %vm541, %v1997, %v185
    %v1999 = vrot.slane %v185, 4
    %v2000 = vsel %vm541, %v279, %v1999
    %v2002 = vunpack.c.l.s4 1983009808
    %v2003 = vunpack.c.0.s8 %v2002
    %v2004 = vperm.slane %v1998, %v2003
    %v2006 = vunpack.c.l.s4 1983009808
    %v2007 = vunpack.c.0.s8 %v2006
    %v2008 = vperm.slane %v2000, %v2007
    %v2009 = vrot.slane %v327, 4
    %v2010 = vsel %vm541, %v2009, %v231
    %v2011 = vrot.slane %v231, 4
    %v2012 = vsel %vm541, %v327, %v2011
    %v2014 = vunpack.c.l.s4 1983009808
    %v2015 = vunpack.c.0.s8 %v2014
    %v2016 = vperm.slane %v2010, %v2015
    %v2018 = vunpack.c.l.s4 1983009808
    %v2019 = vunpack.c.0.s8 %v2018
    %v2020 = vperm.slane %v2012, %v2019
    %v2021 = vrot.slane %v471, 4
    %v2022 = vsel %vm541, %v2021, %v375
    %v2023 = vrot.slane %v375, 4
    %v2024 = vsel %vm541, %v471, %v2023
    %v2026 = vunpack.c.l.s4 1983009808
    %v2027 = vunpack.c.0.s8 %v2026
    %v2028 = vperm.slane %v2022, %v2027
    %v2030 = vunpack.c.l.s4 1983009808
    %v2031 = vunpack.c.0.s8 %v2030
    %v2032 = vperm.slane %v2024, %v2031
    %v2033 = vrot.slane %v519, 4
    %v2034 = vsel %vm541, %v2033, %v423
    %v2035 = vrot.slane %v423, 4
    %v2036 = vsel %vm541, %v519, %v2035
    %v2038 = vunpack.c.l.s4 1983009808
    %v2039 = vunpack.c.0.s8 %v2038
    %v2040 = vperm.slane %v2034, %v2039
    %v2042 = vunpack.c.l.s4 1983009808
    %v2043 = vunpack.c.0.s8 %v2042
    %v2044 = vperm.slane %v2036, %v2043
    %v2045 = vrot.slane %v2016, 4
    %v2046 = vsel %vm541, %v2045, %v2004
    %v2047 = vrot.slane %v2004, 4
    %v2048 = vsel %vm541, %v2016, %v2047
    %v2050 = vunpack.c.l.s4 1934713408
    %v2051 = vunpack.c.0.s8 %v2050
    %v2052 = vperm.slane %v2046, %v2051
    %v2054 = vunpack.c.l.s4 1934713408
    %v2055 = vunpack.c.0.s8 %v2054
    %v2056 = vperm.slane %v2048, %v2055
    %v2057 = vrot.slane %v2020, 4
    %v2058 = vsel %vm541, %v2057, %v2008
    %v2059 = vrot.slane %v2008, 4
    %v2060 = vsel %vm541, %v2020, %v2059
    %v2062 = vunpack.c.l.s4 1934713408
    %v2063 = vunpack.c.0.s8 %v2062
    %v2064 = vperm.slane %v2058, %v2063
    %v2066 = vunpack.c.l.s4 1934713408
    %v2067 = vunpack.c.0.s8 %v2066
    %v2068 = vperm.slane %v2060, %v2067
    %v2069 = vrot.slane %v2040, 4
    %v2070 = vsel %vm541, %v2069, %v2028
    %v2071 = vrot.slane %v2028, 4
    %v2072 = vsel %vm541, %v2040, %v2071
    %v2074 = vunpack.c.l.s4 1934713408
    %v2075 = vunpack.c.0.s8 %v2074
    %v2076 = vperm.slane %v2070, %v2075
    %v2078 = vunpack.c.l.s4 1934713408
    %v2079 = vunpack.c.0.s8 %v2078
    %v2080 = vperm.slane %v2072, %v2079
    %v2081 = vrot.slane %v2044, 4
    %v2082 = vsel %vm541, %v2081, %v2032
    %v2083 = vrot.slane %v2032, 4
    %v2084 = vsel %vm541, %v2044, %v2083
    %v2086 = vunpack.c.l.s4 1934713408
    %v2087 = vunpack.c.0.s8 %v2086
    %v2088 = vperm.slane %v2082, %v2087
    %v2090 = vunpack.c.l.s4 1934713408
    %v2091 = vunpack.c.0.s8 %v2090
    %v2092 = vperm.slane %v2084, %v2091
    %v2093 = vrot.slane %v2076, 4
    %v2094 = vsel %vm541, %v2093, %v2052
    %v2095 = vrot.slane %v2052, 4
    %v2096 = vsel %vm541, %v2076, %v2095
    %v2097 = vrot.slane %v2080, 4
    %v2098 = vsel %vm541, %v2097, %v2056
    %v2099 = vrot.slane %v2056, 4
    %v2100 = vsel %vm541, %v2080, %v2099
    %v2101 = vrot.slane %v2088, 4
    %v2102 = vsel %vm541, %v2101, %v2064
    %v2103 = vrot.slane %v2064, 4
    %v2104 = vsel %vm541, %v2088, %v2103
    %v2105 = vrot.slane %v2092, 4
    %v2106 = vsel %vm541, %v2105, %v2068
    %v2107 = vrot.slane %v2068, 4
    %v2108 = vsel %vm541, %v2092, %v2107
    %v2109 = vrot.slane %v281, 4
    %v2110 = vsel %vm541, %v2109, %v186
    %v2111 = vrot.slane %v186, 4
    %v2112 = vsel %vm541, %v281, %v2111
    %v2114 = vunpack.c.l.s4 1983009808
    %v2115 = vunpack.c.0.s8 %v2114
    %v2116 = vperm.slane %v2110, %v2115
    %v2118 = vunpack.c.l.s4 1983009808
    %v2119 = vunpack.c.0.s8 %v2118
    %v2120 = vperm.slane %v2112, %v2119
    %v2121 = vrot.slane %v329, 4
    %v2122 = vsel %vm541, %v2121, %v233
    %v2123 = vrot.slane %v233, 4
    %v2124 = vsel %vm541, %v329, %v2123
    %v2126 = vunpack.c.l.s4 1983009808
    %v2127 = vunpack.c.0.s8 %v2126
    %v2128 = vperm.slane %v2122, %v2127
    %v2130 = vunpack.c.l.s4 1983009808
    %v2131 = vunpack.c.0.s8 %v2130
    %v2132 = vperm.slane %v2124, %v2131
    %v2133 = vrot.slane %v473, 4
    %v2134 = vsel %vm541, %v2133, %v377
    %v2135 = vrot.slane %v377, 4
    %v2136 = vsel %vm541, %v473, %v2135
    %v2138 = vunpack.c.l.s4 1983009808
    %v2139 = vunpack.c.0.s8 %v2138
    %v2140 = vperm.slane %v2134, %v2139
    %v2142 = vunpack.c.l.s4 1983009808
    %v2143 = vunpack.c.0.s8 %v2142
    %v2144 = vperm.slane %v2136, %v2143
    %v2145 = vrot.slane %v521, 4
    %v2146 = vsel %vm541, %v2145, %v425
    %v2147 = vrot.slane %v425, 4
    %v2148 = vsel %vm541, %v521, %v2147
    %v2150 = vunpack.c.l.s4 1983009808
    %v2151 = vunpack.c.0.s8 %v2150
    %v2152 = vperm.slane %v2146, %v2151
    %v2154 = vunpack.c.l.s4 1983009808
    %v2155 = vunpack.c.0.s8 %v2154
    %v2156 = vperm.slane %v2148, %v2155
    %v2157 = vrot.slane %v2128, 4
    %v2158 = vsel %vm541, %v2157, %v2116
    %v2159 = vrot.slane %v2116, 4
    %v2160 = vsel %vm541, %v2128, %v2159
    %v2162 = vunpack.c.l.s4 1934713408
    %v2163 = vunpack.c.0.s8 %v2162
    %v2164 = vperm.slane %v2158, %v2163
    %v2166 = vunpack.c.l.s4 1934713408
    %v2167 = vunpack.c.0.s8 %v2166
    %v2168 = vperm.slane %v2160, %v2167
    %v2169 = vrot.slane %v2132, 4
    %v2170 = vsel %vm541, %v2169, %v2120
    %v2171 = vrot.slane %v2120, 4
    %v2172 = vsel %vm541, %v2132, %v2171
    %v2174 = vunpack.c.l.s4 1934713408
    %v2175 = vunpack.c.0.s8 %v2174
    %v2176 = vperm.slane %v2170, %v2175
    %v2178 = vunpack.c.l.s4 1934713408
    %v2179 = vunpack.c.0.s8 %v2178
    %v2180 = vperm.slane %v2172, %v2179
    %v2181 = vrot.slane %v2152, 4
    %v2182 = vsel %vm541, %v2181, %v2140
    %v2183 = vrot.slane %v2140, 4
    %v2184 = vsel %vm541, %v2152, %v2183
    %v2186 = vunpack.c.l.s4 1934713408
    %v2187 = vunpack.c.0.s8 %v2186
    %v2188 = vperm.slane %v2182, %v2187
    %v2190 = vunpack.c.l.s4 1934713408
    %v2191 = vunpack.c.0.s8 %v2190
    %v2192 = vperm.slane %v2184, %v2191
    %v2193 = vrot.slane %v2156, 4
    %v2194 = vsel %vm541, %v2193, %v2144
    %v2195 = vrot.slane %v2144, 4
    %v2196 = vsel %vm541, %v2156, %v2195
    %v2198 = vunpack.c.l.s4 1934713408
    %v2199 = vunpack.c.0.s8 %v2198
    %v2200 = vperm.slane %v2194, %v2199
    %v2202 = vunpack.c.l.s4 1934713408
    %v2203 = vunpack.c.0.s8 %v2202
    %v2204 = vperm.slane %v2196, %v2203
    %v2205 = vrot.slane %v2188, 4
    %v2206 = vsel %vm541, %v2205, %v2164
    %v2207 = vrot.slane %v2164, 4
    %v2208 = vsel %vm541, %v2188, %v2207
    %v2209 = vrot.slane %v2192, 4
    %v2210 = vsel %vm541, %v2209, %v2168
    %v2211 = vrot.slane %v2168, 4
    %v2212 = vsel %vm541, %v2192, %v2211
    %v2213 = vrot.slane %v2200, 4
    %v2214 = vsel %vm541, %v2213, %v2176
    %v2215 = vrot.slane %v2176, 4
    %v2216 = vsel %vm541, %v2200, %v2215
    %v2217 = vrot.slane %v2204, 4
    %v2218 = vsel %vm541, %v2217, %v2180
    %v2219 = vrot.slane %v2180, 4
    %v2220 = vsel %vm541, %v2204, %v2219
    %v2221 = vrot.slane %v283, 4
    %v2222 = vsel %vm541, %v2221, %v187
    %v2223 = vrot.slane %v187, 4
    %v2224 = vsel %vm541, %v283, %v2223
    %v2226 = vunpack.c.l.s4 1983009808
    %v2227 = vunpack.c.0.s8 %v2226
    %v2228 = vperm.slane %v2222, %v2227
    %v2230 = vunpack.c.l.s4 1983009808
    %v2231 = vunpack.c.0.s8 %v2230
    %v2232 = vperm.slane %v2224, %v2231
    %v2233 = vrot.slane %v331, 4
    %v2234 = vsel %vm541, %v2233, %v235
    %v2235 = vrot.slane %v235, 4
    %v2236 = vsel %vm541, %v331, %v2235
    %v2238 = vunpack.c.l.s4 1983009808
    %v2239 = vunpack.c.0.s8 %v2238
    %v2240 = vperm.slane %v2234, %v2239
    %v2242 = vunpack.c.l.s4 1983009808
    %v2243 = vunpack.c.0.s8 %v2242
    %v2244 = vperm.slane %v2236, %v2243
    %v2245 = vrot.slane %v475, 4
    %v2246 = vsel %vm541, %v2245, %v379
    %v2247 = vrot.slane %v379, 4
    %v2248 = vsel %vm541, %v475, %v2247
    %v2250 = vunpack.c.l.s4 1983009808
    %v2251 = vunpack.c.0.s8 %v2250
    %v2252 = vperm.slane %v2246, %v2251
    %v2254 = vunpack.c.l.s4 1983009808
    %v2255 = vunpack.c.0.s8 %v2254
    %v2256 = vperm.slane %v2248, %v2255
    %v2257 = vrot.slane %v523, 4
    %v2258 = vsel %vm541, %v2257, %v427
    %v2259 = vrot.slane %v427, 4
    %v2260 = vsel %vm541, %v523, %v2259
    %v2262 = vunpack.c.l.s4 1983009808
    %v2263 = vunpack.c.0.s8 %v2262
    %v2264 = vperm.slane %v2258, %v2263
    %v2266 = vunpack.c.l.s4 1983009808
    %v2267 = vunpack.c.0.s8 %v2266
    %v2268 = vperm.slane %v2260, %v2267
    %v2269 = vrot.slane %v2240, 4
    %v2270 = vsel %vm541, %v2269, %v2228
    %v2271 = vrot.slane %v2228, 4
    %v2272 = vsel %vm541, %v2240, %v2271
    %v2274 = vunpack.c.l.s4 1934713408
    %v2275 = vunpack.c.0.s8 %v2274
    %v2276 = vperm.slane %v2270, %v2275
    %v2278 = vunpack.c.l.s4 1934713408
    %v2279 = vunpack.c.0.s8 %v2278
    %v2280 = vperm.slane %v2272, %v2279
    %v2281 = vrot.slane %v2244, 4
    %v2282 = vsel %vm541, %v2281, %v2232
    %v2283 = vrot.slane %v2232, 4
    %v2284 = vsel %vm541, %v2244, %v2283
    %v2286 = vunpack.c.l.s4 1934713408
    %v2287 = vunpack.c.0.s8 %v2286
    %v2288 = vperm.slane %v2282, %v2287
    %v2290 = vunpack.c.l.s4 1934713408
    %v2291 = vunpack.c.0.s8 %v2290
    %v2292 = vperm.slane %v2284, %v2291
    %v2293 = vrot.slane %v2264, 4
    %v2294 = vsel %vm541, %v2293, %v2252
    %v2295 = vrot.slane %v2252, 4
    %v2296 = vsel %vm541, %v2264, %v2295
    %v2298 = vunpack.c.l.s4 1934713408
    %v2299 = vunpack.c.0.s8 %v2298
    %v2300 = vperm.slane %v2294, %v2299
    %v2302 = vunpack.c.l.s4 1934713408
    %v2303 = vunpack.c.0.s8 %v2302
    %v2304 = vperm.slane %v2296, %v2303
    %v2305 = vrot.slane %v2268, 4
    %v2306 = vsel %vm541, %v2305, %v2256
    %v2307 = vrot.slane %v2256, 4
    %v2308 = vsel %vm541, %v2268, %v2307
    %v2310 = vunpack.c.l.s4 1934713408
    %v2311 = vunpack.c.0.s8 %v2310
    %v2312 = vperm.slane %v2306, %v2311
    %v2314 = vunpack.c.l.s4 1934713408
    %v2315 = vunpack.c.0.s8 %v2314
    %v2316 = vperm.slane %v2308, %v2315
    %v2317 = vrot.slane %v2300, 4
    %v2318 = vsel %vm541, %v2317, %v2276
    %v2319 = vrot.slane %v2276, 4
    %v2320 = vsel %vm541, %v2300, %v2319
    %v2321 = vrot.slane %v2304, 4
    %v2322 = vsel %vm541, %v2321, %v2280
    %v2323 = vrot.slane %v2280, 4
    %v2324 = vsel %vm541, %v2304, %v2323
    %v2325 = vrot.slane %v2312, 4
    %v2326 = vsel %vm541, %v2325, %v2288
    %v2327 = vrot.slane %v2288, 4
    %v2328 = vsel %vm541, %v2312, %v2327
    %v2329 = vrot.slane %v2316, 4
    %v2330 = vsel %vm541, %v2329, %v2292
    %v2331 = vrot.slane %v2292, 4
    %v2332 = vsel %vm541, %v2316, %v2331
    %v2349 = vrot.slane %v34, 1
    %v2350 = vrot.slane %v34, 2
    %v2351 = vrot.slane %v34, 3
    %v2352 = vrot.slane %v34, 4
    %v2353 = vrot.slane %v34, 5
    %v2354 = vrot.slane %v34, 6
    %v2355 = vrot.slane %v34, 7
    %v2356 = vrot.slane %v35, 1
    %v2357 = vrot.slane %v35, 2
    %v2358 = vrot.slane %v35, 3
    %v2359 = vrot.slane %v35, 4
    %v2360 = vrot.slane %v35, 5
    %v2361 = vrot.slane %v35, 6
    %v2362 = vrot.slane %v35, 7
    %v2363 = vrot.slane %v36, 1
    %v2364 = vrot.slane %v36, 2
    %v2365 = vrot.slane %v36, 3
    %v2366 = vrot.slane %v36, 4
    %v2367 = vrot.slane %v36, 5
    %v2368 = vrot.slane %v36, 6
    %v2369 = vrot.slane %v36, 7
    %v2370 = vrot.slane %v37, 1
    %v2371 = vrot.slane %v37, 2
    %v2372 = vrot.slane %v37, 3
    %v2373 = vrot.slane %v37, 4
    %v2374 = vrot.slane %v37, 5
    %v2375 = vrot.slane %v37, 6
    %v2376 = vrot.slane %v37, 7
    %v2377 = vrot.slane %v38, 1
    %v2378 = vrot.slane %v38, 2
    %v2379 = vrot.slane %v38, 3
    %v2380 = vrot.slane %v38, 4
    %v2381 = vrot.slane %v38, 5
    %v2382 = vrot.slane %v38, 6
    %v2383 = vrot.slane %v38, 7
    %v2384 = vrot.slane %v39, 1
    %v2385 = vrot.slane %v39, 2
    %v2386 = vrot.slane %v39, 3
    %v2387 = vrot.slane %v39, 4
    %v2388 = vrot.slane %v39, 5
    %v2389 = vrot.slane %v39, 6
    %v2390 = vrot.slane %v39, 7
    %v2391 = vrot.slane %v40, 1
    %v2392 = vrot.slane %v40, 2
    %v2393 = vrot.slane %v40, 3
    %v2394 = vrot.slane %v40, 4
    %v2395 = vrot.slane %v40, 5
    %v2396 = vrot.slane %v40, 6
    %v2397 = vrot.slane %v40, 7
    %v2398 = vrot.slane %v41, 1
    %v2399 = vrot.slane %v41, 2
    %v2400 = vrot.slane %v41, 3
    %v2401 = vrot.slane %v41, 4
    %v2402 = vrot.slane %v41, 5
    %v2403 = vrot.slane %v41, 6
    %v2404 = vrot.slane %v41, 7
    %v2405 = vrot.slane %v42, 1
    %v2406 = vrot.slane %v42, 2
    %v2407 = vrot.slane %v42, 3
    %v2408 = vrot.slane %v42, 4
    %v2409 = vrot.slane %v42, 5
    %v2410 = vrot.slane %v42, 6
    %v2411 = vrot.slane %v42, 7
    %v2412 = vrot.slane %v43, 1
    %v2413 = vrot.slane %v43, 2
    %v2414 = vrot.slane %v43, 3
    %v2415 = vrot.slane %v43, 4
    %v2416 = vrot.slane %v43, 5
    %v2417 = vrot.slane %v43, 6
    %v2418 = vrot.slane %v43, 7
    %v2419 = vrot.slane %v44, 1
    %v2420 = vrot.slane %v44, 2
    %v2421 = vrot.slane %v44, 3
    %v2422 = vrot.slane %v44, 4
    %v2423 = vrot.slane %v44, 5
    %v2424 = vrot.slane %v44, 6
    %v2425 = vrot.slane %v44, 7
    %v2426 = vrot.slane %v45, 1
    %v2427 = vrot.slane %v45, 2
    %v2428 = vrot.slane %v45, 3
    %v2429 = vrot.slane %v45, 4
    %v2430 = vrot.slane %v45, 5
    %v2431 = vrot.slane %v45, 6
    %v2432 = vrot.slane %v45, 7
    %v2433 = vrot.slane %v46, 1
    %v2434 = vrot.slane %v46, 2
    %v2435 = vrot.slane %v46, 3
    %v2436 = vrot.slane %v46, 4
    %v2437 = vrot.slane %v46, 5
    %v2438 = vrot.slane %v46, 6
    %v2439 = vrot.slane %v46, 7
    %v2440 = vrot.slane %v47, 1
    %v2441 = vrot.slane %v47, 2
    %v2442 = vrot.slane %v47, 3
    %v2443 = vrot.slane %v47, 4
    %v2444 = vrot.slane %v47, 5
    %v2445 = vrot.slane %v47, 6
    %v2446 = vrot.slane %v47, 7
    %v2447 = vrot.slane %v48, 1
    %v2448 = vrot.slane %v48, 2
    %v2449 = vrot.slane %v48, 3
    %v2450 = vrot.slane %v48, 4
    %v2451 = vrot.slane %v48, 5
    %v2452 = vrot.slane %v48, 6
    %v2453 = vrot.slane %v48, 7
    %v2454 = vrot.slane %v49, 1
    %v2455 = vrot.slane %v49, 2
    %v2456 = vrot.slane %v49, 3
    %v2457 = vrot.slane %v49, 4
    %v2458 = vrot.slane %v49, 5
    %v2459 = vrot.slane %v49, 6
    %v2460 = vrot.slane %v49, 7
    %v2461 = vperm.slane %v34, 0
    %v2462 = vperm.slane %v2349, 0
    %v2463 = vperm.slane %v2350, 0
    %v2464 = vperm.slane %v2351, 0
    %v2465 = vperm.slane %v2352, 0
    %v2466 = vperm.slane %v2353, 0
    %v2467 = vperm.slane %v2354, 0
    %v2468 = vperm.slane %v2355, 0
    %v2469 = vperm.slane %v35, 0
    %v2470 = vperm.slane %v2356, 0
    %v2471 = vperm.slane %v2357, 0
    %v2472 = vperm.slane %v2358, 0
    %v2473 = vperm.slane %v2359, 0
    %v2474 = vperm.slane %v2360, 0
    %v2475 = vperm.slane %v2361, 0
    %v2476 = vperm.slane %v2362, 0
    %v2477 = vperm.slane %v36, 0
    %v2478 = vperm.slane %v2363, 0
    %v2479 = vperm.slane %v2364, 0
    %v2480 = vperm.slane %v2365, 0
    %v2481 = vperm.slane %v2366, 0
    %v2482 = vperm.slane %v2367, 0
    %v2483 = vperm.slane %v2368, 0
    %v2484 = vperm.slane %v2369, 0
    %v2485 = vperm.slane %v37, 0
    %v2486 = vperm.slane %v2370, 0
    %v2487 = vperm.slane %v2371, 0
    %v2488 = vperm.slane %v2372, 0
    %v2489 = vperm.slane %v2373, 0
    %v2490 = vperm.slane %v2374, 0
    %v2491 = vperm.slane %v2375, 0
    %v2492 = vperm.slane %v2376, 0
    %v2493 = vperm.slane %v38, 0
    %v2494 = vperm.slane %v2377, 0
    %v2495 = vperm.slane %v2378, 0
    %v2496 = vperm.slane %v2379, 0
    %v2497 = vperm.slane %v2380, 0
    %v2498 = vperm.slane %v2381, 0
    %v2499 = vperm.slane %v2382, 0
    %v2500 = vperm.slane %v2383, 0
    %v2501 = vperm.slane %v39, 0
    %v2502 = vperm.slane %v2384, 0
    %v2503 = vperm.slane %v2385, 0
    %v2504 = vperm.slane %v2386, 0
    %v2505 = vperm.slane %v2387, 0
    %v2506 = vperm.slane %v2388, 0
    %v2507 = vperm.slane %v2389, 0
    %v2508 = vperm.slane %v2390, 0
    %v2509 = vperm.slane %v40, 0
    %v2510 = vperm.slane %v2391, 0
    %v2511 = vperm.slane %v2392, 0
    %v2512 = vperm.slane %v2393, 0
    %v2513 = vperm.slane %v2394, 0
    %v2514 = vperm.slane %v2395, 0
    %v2515 = vperm.slane %v2396, 0
    %v2516 = vperm.slane %v2397, 0
    %v2517 = vperm.slane %v41, 0
    %v2518 = vperm.slane %v2398, 0
    %v2519 = vperm.slane %v2399, 0
    %v2520 = vperm.slane %v2400, 0
    %v2521 = vperm.slane %v2401, 0
    %v2522 = vperm.slane %v2402, 0
    %v2523 = vperm.slane %v2403, 0
    %v2524 = vperm.slane %v2404, 0
    %v2525 = vperm.slane %v42, 0
    %v2526 = vperm.slane %v2405, 0
    %v2527 = vperm.slane %v2406, 0
    %v2528 = vperm.slane %v2407, 0
    %v2529 = vperm.slane %v2408, 0
    %v2530 = vperm.slane %v2409, 0
    %v2531 = vperm.slane %v2410, 0
    %v2532 = vperm.slane %v2411, 0
    %v2533 = vperm.slane %v43, 0
    %v2534 = vperm.slane %v2412, 0
    %v2535 = vperm.slane %v2413, 0
    %v2536 = vperm.slane %v2414, 0
    %v2537 = vperm.slane %v2415, 0
    %v2538 = vperm.slane %v2416, 0
    %v2539 = vperm.slane %v2417, 0
    %v2540 = vperm.slane %v2418, 0
    %v2541 = vperm.slane %v44, 0
    %v2542 = vperm.slane %v2419, 0
    %v2543 = vperm.slane %v2420, 0
    %v2544 = vperm.slane %v2421, 0
    %v2545 = vperm.slane %v2422, 0
    %v2546 = vperm.slane %v2423, 0
    %v2547 = vperm.slane %v2424, 0
    %v2548 = vperm.slane %v2425, 0
    %v2549 = vperm.slane %v45, 0
    %v2550 = vperm.slane %v2426, 0
    %v2551 = vperm.slane %v2427, 0
    %v2552 = vperm.slane %v2428, 0
    %v2553 = vperm.slane %v2429, 0
    %v2554 = vperm.slane %v2430, 0
    %v2555 = vperm.slane %v2431, 0
    %v2556 = vperm.slane %v2432, 0
    %v2557 = vperm.slane %v46, 0
    %v2558 = vperm.slane %v2433, 0
    %v2559 = vperm.slane %v2434, 0
    %v2560 = vperm.slane %v2435, 0
    %v2561 = vperm.slane %v2436, 0
    %v2562 = vperm.slane %v2437, 0
    %v2563 = vperm.slane %v2438, 0
    %v2564 = vperm.slane %v2439, 0
    %v2565 = vperm.slane %v47, 0
    %v2566 = vperm.slane %v2440, 0
    %v2567 = vperm.slane %v2441, 0
    %v2568 = vperm.slane %v2442, 0
    %v2569 = vperm.slane %v2443, 0
    %v2570 = vperm.slane %v2444, 0
    %v2571 = vperm.slane %v2445, 0
    %v2572 = vperm.slane %v2446, 0
    %v2573 = vperm.slane %v48, 0
    %v2574 = vperm.slane %v2447, 0
    %v2575 = vperm.slane %v2448, 0
    %v2576 = vperm.slane %v2449, 0
    %v2577 = vperm.slane %v2450, 0
    %v2578 = vperm.slane %v2451, 0
    %v2579 = vperm.slane %v2452, 0
    %v2580 = vperm.slane %v2453, 0
    %v2581 = vperm.slane %v49, 0
    %v2582 = vperm.slane %v2454, 0
    %v2583 = vperm.slane %v2455, 0
    %v2584 = vperm.slane %v2456, 0
    %v2585 = vperm.slane %v2457, 0
    %v2586 = vperm.slane %v2458, 0
    %v2587 = vperm.slane %v2459, 0
    %v2588 = vperm.slane %v2460, 0
    %v2717 = vmul.f32 %v638, %v2461
    %v2718 = vmul.f32 %v640, %v2462
    %v2719 = vmul.f32 %v642, %v2463
    %v2720 = vmul.f32 %v644, %v2464
    %v2721 = vmul.f32 %v646, %v2465
    %v2722 = vmul.f32 %v648, %v2466
    %v2723 = vmul.f32 %v650, %v2467
    %v2724 = vmul.f32 %v652, %v2468
    %v2725 = vmul.f32 %v750, %v2469
    %v2726 = vmul.f32 %v752, %v2470
    %v2727 = vmul.f32 %v754, %v2471
    %v2728 = vmul.f32 %v756, %v2472
    %v2729 = vmul.f32 %v758, %v2473
    %v2730 = vmul.f32 %v760, %v2474
    %v2731 = vmul.f32 %v762, %v2475
    %v2732 = vmul.f32 %v764, %v2476
    %v2733 = vmul.f32 %v862, %v2477
    %v2734 = vmul.f32 %v864, %v2478
    %v2735 = vmul.f32 %v866, %v2479
    %v2736 = vmul.f32 %v868, %v2480
    %v2737 = vmul.f32 %v870, %v2481
    %v2738 = vmul.f32 %v872, %v2482
    %v2739 = vmul.f32 %v874, %v2483
    %v2740 = vmul.f32 %v876, %v2484
    %v2741 = vmul.f32 %v974, %v2485
    %v2742 = vmul.f32 %v976, %v2486
    %v2743 = vmul.f32 %v978, %v2487
    %v2744 = vmul.f32 %v980, %v2488
    %v2745 = vmul.f32 %v982, %v2489
    %v2746 = vmul.f32 %v984, %v2490
    %v2747 = vmul.f32 %v986, %v2491
    %v2748 = vmul.f32 %v988, %v2492
    %v2749 = vmul.f32 %v1086, %v2493
    %v2750 = vmul.f32 %v1088, %v2494
    %v2751 = vmul.f32 %v1090, %v2495
    %v2752 = vmul.f32 %v1092, %v2496
    %v2753 = vmul.f32 %v1094, %v2497
    %v2754 = vmul.f32 %v1096, %v2498
    %v2755 = vmul.f32 %v1098, %v2499
    %v2756 = vmul.f32 %v1100, %v2500
    %v2757 = vmul.f32 %v1198, %v2501
    %v2758 = vmul.f32 %v1200, %v2502
    %v2759 = vmul.f32 %v1202, %v2503
    %v2760 = vmul.f32 %v1204, %v2504
    %v2761 = vmul.f32 %v1206, %v2505
    %v2762 = vmul.f32 %v1208, %v2506
    %v2763 = vmul.f32 %v1210, %v2507
    %v2764 = vmul.f32 %v1212, %v2508
    %v2765 = vmul.f32 %v1310, %v2509
    %v2766 = vmul.f32 %v1312, %v2510
    %v2767 = vmul.f32 %v1314, %v2511
    %v2768 = vmul.f32 %v1316, %v2512
    %v2769 = vmul.f32 %v1318, %v2513
    %v2770 = vmul.f32 %v1320, %v2514
    %v2771 = vmul.f32 %v1322, %v2515
    %v2772 = vmul.f32 %v1324, %v2516
    %v2773 = vmul.f32 %v1422, %v2517
    %v2774 = vmul.f32 %v1424, %v2518
    %v2775 = vmul.f32 %v1426, %v2519
    %v2776 = vmul.f32 %v1428, %v2520
    %v2777 = vmul.f32 %v1430, %v2521
    %v2778 = vmul.f32 %v1432, %v2522
    %v2779 = vmul.f32 %v1434, %v2523
    %v2780 = vmul.f32 %v1436, %v2524
    %v2781 = vmul.f32 %v1534, %v2525
    %v2782 = vmul.f32 %v1536, %v2526
    %v2783 = vmul.f32 %v1538, %v2527
    %v2784 = vmul.f32 %v1540, %v2528
    %v2785 = vmul.f32 %v1542, %v2529
    %v2786 = vmul.f32 %v1544, %v2530
    %v2787 = vmul.f32 %v1546, %v2531
    %v2788 = vmul.f32 %v1548, %v2532
    %v2789 = vmul.f32 %v1646, %v2533
    %v2790 = vmul.f32 %v1648, %v2534
    %v2791 = vmul.f32 %v1650, %v2535
    %v2792 = vmul.f32 %v1652, %v2536
    %v2793 = vmul.f32 %v1654, %v2537
    %v2794 = vmul.f32 %v1656, %v2538
    %v2795 = vmul.f32 %v1658, %v2539
    %v2796 = vmul.f32 %v1660, %v2540
    %v2797 = vmul.f32 %v1758, %v2541
    %v2798 = vmul.f32 %v1760, %v2542
    %v2799 = vmul.f32 %v1762, %v2543
    %v2800 = vmul.f32 %v1764, %v2544
    %v2801 = vmul.f32 %v1766, %v2545
    %v2802 = vmul.f32 %v1768, %v2546
    %v2803 = vmul.f32 %v1770, %v2547
    %v2804 = vmul.f32 %v1772, %v2548
    %v2805 = vmul.f32 %v1870, %v2549
    %v2806 = vmul.f32 %v1872, %v2550
    %v2807 = vmul.f32 %v1874, %v2551
    %v2808 = vmul.f32 %v1876, %v2552
    %v2809 = vmul.f32 %v1878, %v2553
    %v2810 = vmul.f32 %v1880, %v2554
    %v2811 = vmul.f32 %v1882, %v2555
    %v2812 = vmul.f32 %v1884, %v2556
    %v2813 = vmul.f32 %v1982, %v2557
    %v2814 = vmul.f32 %v1984, %v2558
    %v2815 = vmul.f32 %v1986, %v2559
    %v2816 = vmul.f32 %v1988, %v2560
    %v2817 = vmul.f32 %v1990, %v2561
    %v2818 = vmul.f32 %v1992, %v2562
    %v2819 = vmul.f32 %v1994, %v2563
    %v2820 = vmul.f32 %v1996, %v2564
    %v2821 = vmul.f32 %v2094, %v2565
    %v2822 = vmul.f32 %v2096, %v2566
    %v2823 = vmul.f32 %v2098, %v2567
    %v2824 = vmul.f32 %v2100, %v2568
    %v2825 = vmul.f32 %v2102, %v2569
    %v2826 = vmul.f32 %v2104, %v2570
    %v2827 = vmul.f32 %v2106, %v2571
    %v2828 = vmul.f32 %v2108, %v2572
    %v2829 = vmul.f32 %v2206, %v2573
    %v2830 = vmul.f32 %v2208, %v2574
    %v2831 = vmul.f32 %v2210, %v2575
    %v2832 = vmul.f32 %v2212, %v2576
    %v2833 = vmul.f32 %v2214, %v2577
    %v2834 = vmul.f32 %v2216, %v2578
    %v2835 = vmul.f32 %v2218, %v2579
    %v2836 = vmul.f32 %v2220, %v2580
    %v2837 = vmul.f32 %v2318, %v2581
    %v2838 = vmul.f32 %v2320, %v2582
    %v2839 = vmul.f32 %v2322, %v2583
    %v2840 = vmul.f32 %v2324, %v2584
    %v2841 = vmul.f32 %v2326, %v2585
    %v2842 = vmul.f32 %v2328, %v2586
    %v2843 = vmul.f32 %v2330, %v2587
    %v2844 = vmul.f32 %v2332, %v2588
    %vm2845 = vcmask 64512
    %v2846 = vsel %vm2845, %v2717, 0.0
    %2847 = vadd.xlane.f32.xlu0 %v2846
    %v2848 = vpop.xlane.xlu0 %2847
    %v2849 = vsel %vm2845, %v2718, 0.0
    %2850 = vadd.xlane.f32.xlu0 %v2849
    %v2851 = vpop.xlane.xlu0 %2850
    %v2852 = vsel %vm2845, %v2719, 0.0
    %2853 = vadd.xlane.f32.xlu0 %v2852
    %v2854 = vpop.xlane.xlu0 %2853
    %v2855 = vsel %vm2845, %v2720, 0.0
    %2856 = vadd.xlane.f32.xlu0 %v2855
    %v2857 = vpop.xlane.xlu0 %2856
    %v2858 = vsel %vm2845, %v2721, 0.0
    %2859 = vadd.xlane.f32.xlu0 %v2858
    %v2860 = vpop.xlane.xlu0 %2859
    %v2861 = vsel %vm2845, %v2722, 0.0
    %2862 = vadd.xlane.f32.xlu0 %v2861
    %v2863 = vpop.xlane.xlu0 %2862
    %v2864 = vsel %vm2845, %v2723, 0.0
    %2865 = vadd.xlane.f32.xlu0 %v2864
    %v2866 = vpop.xlane.xlu0 %2865
    %v2867 = vsel %vm2845, %v2724, 0.0
    %2868 = vadd.xlane.f32.xlu0 %v2867
    %v2869 = vpop.xlane.xlu0 %2868
    %v2870 = vsel %vm2845, %v2725, 0.0
    %2871 = vadd.xlane.f32.xlu0 %v2870
    %v2872 = vpop.xlane.xlu0 %2871
    %v2873 = vsel %vm2845, %v2726, 0.0
    %2874 = vadd.xlane.f32.xlu0 %v2873
    %v2875 = vpop.xlane.xlu0 %2874
    %v2876 = vsel %vm2845, %v2727, 0.0
    %2877 = vadd.xlane.f32.xlu0 %v2876
    %v2878 = vpop.xlane.xlu0 %2877
    %v2879 = vsel %vm2845, %v2728, 0.0
    %2880 = vadd.xlane.f32.xlu0 %v2879
    %v2881 = vpop.xlane.xlu0 %2880
    %v2882 = vsel %vm2845, %v2729, 0.0
    %2883 = vadd.xlane.f32.xlu0 %v2882
    %v2884 = vpop.xlane.xlu0 %2883
    %v2885 = vsel %vm2845, %v2730, 0.0
    %2886 = vadd.xlane.f32.xlu0 %v2885
    %v2887 = vpop.xlane.xlu0 %2886
    %v2888 = vsel %vm2845, %v2731, 0.0
    %2889 = vadd.xlane.f32.xlu0 %v2888
    %v2890 = vpop.xlane.xlu0 %2889
    %v2891 = vsel %vm2845, %v2732, 0.0
    %2892 = vadd.xlane.f32.xlu0 %v2891
    %v2893 = vpop.xlane.xlu0 %2892
    %v2894 = vsel %vm2845, %v2733, 0.0
    %2895 = vadd.xlane.f32.xlu0 %v2894
    %v2896 = vpop.xlane.xlu0 %2895
    %v2897 = vsel %vm2845, %v2734, 0.0
    %2898 = vadd.xlane.f32.xlu0 %v2897
    %v2899 = vpop.xlane.xlu0 %2898
    %v2900 = vsel %vm2845, %v2735, 0.0
    %2901 = vadd.xlane.f32.xlu0 %v2900
    %v2902 = vpop.xlane.xlu0 %2901
    %v2903 = vsel %vm2845, %v2736, 0.0
    %2904 = vadd.xlane.f32.xlu0 %v2903
    %v2905 = vpop.xlane.xlu0 %2904
    %v2906 = vsel %vm2845, %v2737, 0.0
    %2907 = vadd.xlane.f32.xlu0 %v2906
    %v2908 = vpop.xlane.xlu0 %2907
    %v2909 = vsel %vm2845, %v2738, 0.0
    %2910 = vadd.xlane.f32.xlu0 %v2909
    %v2911 = vpop.xlane.xlu0 %2910
    %v2912 = vsel %vm2845, %v2739, 0.0
    %2913 = vadd.xlane.f32.xlu0 %v2912
    %v2914 = vpop.xlane.xlu0 %2913
    %v2915 = vsel %vm2845, %v2740, 0.0
    %2916 = vadd.xlane.f32.xlu0 %v2915
    %v2917 = vpop.xlane.xlu0 %2916
    %v2918 = vsel %vm2845, %v2741, 0.0
    %2919 = vadd.xlane.f32.xlu0 %v2918
    %v2920 = vpop.xlane.xlu0 %2919
    %v2921 = vsel %vm2845, %v2742, 0.0
    %2922 = vadd.xlane.f32.xlu0 %v2921
    %v2923 = vpop.xlane.xlu0 %2922
    %v2924 = vsel %vm2845, %v2743, 0.0
    %2925 = vadd.xlane.f32.xlu0 %v2924
    %v2926 = vpop.xlane.xlu0 %2925
    %v2927 = vsel %vm2845, %v2744, 0.0
    %2928 = vadd.xlane.f32.xlu0 %v2927
    %v2929 = vpop.xlane.xlu0 %2928
    %v2930 = vsel %vm2845, %v2745, 0.0
    %2931 = vadd.xlane.f32.xlu0 %v2930
    %v2932 = vpop.xlane.xlu0 %2931
    %v2933 = vsel %vm2845, %v2746, 0.0
    %2934 = vadd.xlane.f32.xlu0 %v2933
    %v2935 = vpop.xlane.xlu0 %2934
    %v2936 = vsel %vm2845, %v2747, 0.0
    %2937 = vadd.xlane.f32.xlu0 %v2936
    %v2938 = vpop.xlane.xlu0 %2937
    %v2939 = vsel %vm2845, %v2748, 0.0
    %2940 = vadd.xlane.f32.xlu0 %v2939
    %v2941 = vpop.xlane.xlu0 %2940
    %v2942 = vsel %vm2845, %v2749, 0.0
    %2943 = vadd.xlane.f32.xlu0 %v2942
    %v2944 = vpop.xlane.xlu0 %2943
    %v2945 = vsel %vm2845, %v2750, 0.0
    %2946 = vadd.xlane.f32.xlu0 %v2945
    %v2947 = vpop.xlane.xlu0 %2946
    %v2948 = vsel %vm2845, %v2751, 0.0
    %2949 = vadd.xlane.f32.xlu0 %v2948
    %v2950 = vpop.xlane.xlu0 %2949
    %v2951 = vsel %vm2845, %v2752, 0.0
    %2952 = vadd.xlane.f32.xlu0 %v2951
    %v2953 = vpop.xlane.xlu0 %2952
    %v2954 = vsel %vm2845, %v2753, 0.0
    %2955 = vadd.xlane.f32.xlu0 %v2954
    %v2956 = vpop.xlane.xlu0 %2955
    %v2957 = vsel %vm2845, %v2754, 0.0
    %2958 = vadd.xlane.f32.xlu0 %v2957
    %v2959 = vpop.xlane.xlu0 %2958
    %v2960 = vsel %vm2845, %v2755, 0.0
    %2961 = vadd.xlane.f32.xlu0 %v2960
    %v2962 = vpop.xlane.xlu0 %2961
    %v2963 = vsel %vm2845, %v2756, 0.0
    %2964 = vadd.xlane.f32.xlu0 %v2963
    %v2965 = vpop.xlane.xlu0 %2964
    %v2966 = vsel %vm2845, %v2757, 0.0
    %2967 = vadd.xlane.f32.xlu0 %v2966
    %v2968 = vpop.xlane.xlu0 %2967
    %v2969 = vsel %vm2845, %v2758, 0.0
    %2970 = vadd.xlane.f32.xlu0 %v2969
    %v2971 = vpop.xlane.xlu0 %2970
    %v2972 = vsel %vm2845, %v2759, 0.0
    %2973 = vadd.xlane.f32.xlu0 %v2972
    %v2974 = vpop.xlane.xlu0 %2973
    %v2975 = vsel %vm2845, %v2760, 0.0
    %2976 = vadd.xlane.f32.xlu0 %v2975
    %v2977 = vpop.xlane.xlu0 %2976
    %v2978 = vsel %vm2845, %v2761, 0.0
    %2979 = vadd.xlane.f32.xlu0 %v2978
    %v2980 = vpop.xlane.xlu0 %2979
    %v2981 = vsel %vm2845, %v2762, 0.0
    %2982 = vadd.xlane.f32.xlu0 %v2981
    %v2983 = vpop.xlane.xlu0 %2982
    %v2984 = vsel %vm2845, %v2763, 0.0
    %2985 = vadd.xlane.f32.xlu0 %v2984
    %v2986 = vpop.xlane.xlu0 %2985
    %v2987 = vsel %vm2845, %v2764, 0.0
    %2988 = vadd.xlane.f32.xlu0 %v2987
    %v2989 = vpop.xlane.xlu0 %2988
    %v2990 = vsel %vm2845, %v2765, 0.0
    %2991 = vadd.xlane.f32.xlu0 %v2990
    %v2992 = vpop.xlane.xlu0 %2991
    %v2993 = vsel %vm2845, %v2766, 0.0
    %2994 = vadd.xlane.f32.xlu0 %v2993
    %v2995 = vpop.xlane.xlu0 %2994
    %v2996 = vsel %vm2845, %v2767, 0.0
    %2997 = vadd.xlane.f32.xlu0 %v2996
    %v2998 = vpop.xlane.xlu0 %2997
    %v2999 = vsel %vm2845, %v2768, 0.0
    %3000 = vadd.xlane.f32.xlu0 %v2999
    %v3001 = vpop.xlane.xlu0 %3000
    %v3002 = vsel %vm2845, %v2769, 0.0
    %3003 = vadd.xlane.f32.xlu0 %v3002
    %v3004 = vpop.xlane.xlu0 %3003
    %v3005 = vsel %vm2845, %v2770, 0.0
    %3006 = vadd.xlane.f32.xlu0 %v3005
    %v3007 = vpop.xlane.xlu0 %3006
    %v3008 = vsel %vm2845, %v2771, 0.0
    %3009 = vadd.xlane.f32.xlu0 %v3008
    %v3010 = vpop.xlane.xlu0 %3009
    %v3011 = vsel %vm2845, %v2772, 0.0
    %3012 = vadd.xlane.f32.xlu0 %v3011
    %v3013 = vpop.xlane.xlu0 %3012
    %v3014 = vsel %vm2845, %v2773, 0.0
    %3015 = vadd.xlane.f32.xlu0 %v3014
    %v3016 = vpop.xlane.xlu0 %3015
    %v3017 = vsel %vm2845, %v2774, 0.0
    %3018 = vadd.xlane.f32.xlu0 %v3017
    %v3019 = vpop.xlane.xlu0 %3018
    %v3020 = vsel %vm2845, %v2775, 0.0
    %3021 = vadd.xlane.f32.xlu0 %v3020
    %v3022 = vpop.xlane.xlu0 %3021
    %v3023 = vsel %vm2845, %v2776, 0.0
    %3024 = vadd.xlane.f32.xlu0 %v3023
    %v3025 = vpop.xlane.xlu0 %3024
    %v3026 = vsel %vm2845, %v2777, 0.0
    %3027 = vadd.xlane.f32.xlu0 %v3026
    %v3028 = vpop.xlane.xlu0 %3027
    %v3029 = vsel %vm2845, %v2778, 0.0
    %3030 = vadd.xlane.f32.xlu0 %v3029
    %v3031 = vpop.xlane.xlu0 %3030
    %v3032 = vsel %vm2845, %v2779, 0.0
    %3033 = vadd.xlane.f32.xlu0 %v3032
    %v3034 = vpop.xlane.xlu0 %3033
    %v3035 = vsel %vm2845, %v2780, 0.0
    %3036 = vadd.xlane.f32.xlu0 %v3035
    %v3037 = vpop.xlane.xlu0 %3036
    %v3038 = vsel %vm2845, %v2781, 0.0
    %3039 = vadd.xlane.f32.xlu0 %v3038
    %v3040 = vpop.xlane.xlu0 %3039
    %v3041 = vsel %vm2845, %v2782, 0.0
    %3042 = vadd.xlane.f32.xlu0 %v3041
    %v3043 = vpop.xlane.xlu0 %3042
    %v3044 = vsel %vm2845, %v2783, 0.0
    %3045 = vadd.xlane.f32.xlu0 %v3044
    %v3046 = vpop.xlane.xlu0 %3045
    %v3047 = vsel %vm2845, %v2784, 0.0
    %3048 = vadd.xlane.f32.xlu0 %v3047
    %v3049 = vpop.xlane.xlu0 %3048
    %v3050 = vsel %vm2845, %v2785, 0.0
    %3051 = vadd.xlane.f32.xlu0 %v3050
    %v3052 = vpop.xlane.xlu0 %3051
    %v3053 = vsel %vm2845, %v2786, 0.0
    %3054 = vadd.xlane.f32.xlu0 %v3053
    %v3055 = vpop.xlane.xlu0 %3054
    %v3056 = vsel %vm2845, %v2787, 0.0
    %3057 = vadd.xlane.f32.xlu0 %v3056
    %v3058 = vpop.xlane.xlu0 %3057
    %v3059 = vsel %vm2845, %v2788, 0.0
    %3060 = vadd.xlane.f32.xlu0 %v3059
    %v3061 = vpop.xlane.xlu0 %3060
    %v3062 = vsel %vm2845, %v2789, 0.0
    %3063 = vadd.xlane.f32.xlu0 %v3062
    %v3064 = vpop.xlane.xlu0 %3063
    %v3065 = vsel %vm2845, %v2790, 0.0
    %3066 = vadd.xlane.f32.xlu0 %v3065
    %v3067 = vpop.xlane.xlu0 %3066
    %v3068 = vsel %vm2845, %v2791, 0.0
    %3069 = vadd.xlane.f32.xlu0 %v3068
    %v3070 = vpop.xlane.xlu0 %3069
    %v3071 = vsel %vm2845, %v2792, 0.0
    %3072 = vadd.xlane.f32.xlu0 %v3071
    %v3073 = vpop.xlane.xlu0 %3072
    %v3074 = vsel %vm2845, %v2793, 0.0
    %3075 = vadd.xlane.f32.xlu0 %v3074
    %v3076 = vpop.xlane.xlu0 %3075
    %v3077 = vsel %vm2845, %v2794, 0.0
    %3078 = vadd.xlane.f32.xlu0 %v3077
    %v3079 = vpop.xlane.xlu0 %3078
    %v3080 = vsel %vm2845, %v2795, 0.0
    %3081 = vadd.xlane.f32.xlu0 %v3080
    %v3082 = vpop.xlane.xlu0 %3081
    %v3083 = vsel %vm2845, %v2796, 0.0
    %3084 = vadd.xlane.f32.xlu0 %v3083
    %v3085 = vpop.xlane.xlu0 %3084
    %v3086 = vsel %vm2845, %v2797, 0.0
    %3087 = vadd.xlane.f32.xlu0 %v3086
    %v3088 = vpop.xlane.xlu0 %3087
    %v3089 = vsel %vm2845, %v2798, 0.0
    %3090 = vadd.xlane.f32.xlu0 %v3089
    %v3091 = vpop.xlane.xlu0 %3090
    %v3092 = vsel %vm2845, %v2799, 0.0
    %3093 = vadd.xlane.f32.xlu0 %v3092
    %v3094 = vpop.xlane.xlu0 %3093
    %v3095 = vsel %vm2845, %v2800, 0.0
    %3096 = vadd.xlane.f32.xlu0 %v3095
    %v3097 = vpop.xlane.xlu0 %3096
    %v3098 = vsel %vm2845, %v2801, 0.0
    %3099 = vadd.xlane.f32.xlu0 %v3098
    %v3100 = vpop.xlane.xlu0 %3099
    %v3101 = vsel %vm2845, %v2802, 0.0
    %3102 = vadd.xlane.f32.xlu0 %v3101
    %v3103 = vpop.xlane.xlu0 %3102
    %v3104 = vsel %vm2845, %v2803, 0.0
    %3105 = vadd.xlane.f32.xlu0 %v3104
    %v3106 = vpop.xlane.xlu0 %3105
    %v3107 = vsel %vm2845, %v2804, 0.0
    %3108 = vadd.xlane.f32.xlu0 %v3107
    %v3109 = vpop.xlane.xlu0 %3108
    %v3110 = vsel %vm2845, %v2805, 0.0
    %3111 = vadd.xlane.f32.xlu0 %v3110
    %v3112 = vpop.xlane.xlu0 %3111
    %v3113 = vsel %vm2845, %v2806, 0.0
    %3114 = vadd.xlane.f32.xlu0 %v3113
    %v3115 = vpop.xlane.xlu0 %3114
    %v3116 = vsel %vm2845, %v2807, 0.0
    %3117 = vadd.xlane.f32.xlu0 %v3116
    %v3118 = vpop.xlane.xlu0 %3117
    %v3119 = vsel %vm2845, %v2808, 0.0
    %3120 = vadd.xlane.f32.xlu0 %v3119
    %v3121 = vpop.xlane.xlu0 %3120
    %v3122 = vsel %vm2845, %v2809, 0.0
    %3123 = vadd.xlane.f32.xlu0 %v3122
    %v3124 = vpop.xlane.xlu0 %3123
    %v3125 = vsel %vm2845, %v2810, 0.0
    %3126 = vadd.xlane.f32.xlu0 %v3125
    %v3127 = vpop.xlane.xlu0 %3126
    %v3128 = vsel %vm2845, %v2811, 0.0
    %3129 = vadd.xlane.f32.xlu0 %v3128
    %v3130 = vpop.xlane.xlu0 %3129
    %v3131 = vsel %vm2845, %v2812, 0.0
    %3132 = vadd.xlane.f32.xlu0 %v3131
    %v3133 = vpop.xlane.xlu0 %3132
    %v3134 = vsel %vm2845, %v2813, 0.0
    %3135 = vadd.xlane.f32.xlu0 %v3134
    %v3136 = vpop.xlane.xlu0 %3135
    %v3137 = vsel %vm2845, %v2814, 0.0
    %3138 = vadd.xlane.f32.xlu0 %v3137
    %v3139 = vpop.xlane.xlu0 %3138
    %v3140 = vsel %vm2845, %v2815, 0.0
    %3141 = vadd.xlane.f32.xlu0 %v3140
    %v3142 = vpop.xlane.xlu0 %3141
    %v3143 = vsel %vm2845, %v2816, 0.0
    %3144 = vadd.xlane.f32.xlu0 %v3143
    %v3145 = vpop.xlane.xlu0 %3144
    %v3146 = vsel %vm2845, %v2817, 0.0
    %3147 = vadd.xlane.f32.xlu0 %v3146
    %v3148 = vpop.xlane.xlu0 %3147
    %v3149 = vsel %vm2845, %v2818, 0.0
    %3150 = vadd.xlane.f32.xlu0 %v3149
    %v3151 = vpop.xlane.xlu0 %3150
    %v3152 = vsel %vm2845, %v2819, 0.0
    %3153 = vadd.xlane.f32.xlu0 %v3152
    %v3154 = vpop.xlane.xlu0 %3153
    %v3155 = vsel %vm2845, %v2820, 0.0
    %3156 = vadd.xlane.f32.xlu0 %v3155
    %v3157 = vpop.xlane.xlu0 %3156
    %v3158 = vsel %vm2845, %v2821, 0.0
    %3159 = vadd.xlane.f32.xlu0 %v3158
    %v3160 = vpop.xlane.xlu0 %3159
    %v3161 = vsel %vm2845, %v2822, 0.0
    %3162 = vadd.xlane.f32.xlu0 %v3161
    %v3163 = vpop.xlane.xlu0 %3162
    %v3164 = vsel %vm2845, %v2823, 0.0
    %3165 = vadd.xlane.f32.xlu0 %v3164
    %v3166 = vpop.xlane.xlu0 %3165
    %v3167 = vsel %vm2845, %v2824, 0.0
    %3168 = vadd.xlane.f32.xlu0 %v3167
    %v3169 = vpop.xlane.xlu0 %3168
    %v3170 = vsel %vm2845, %v2825, 0.0
    %3171 = vadd.xlane.f32.xlu0 %v3170
    %v3172 = vpop.xlane.xlu0 %3171
    %v3173 = vsel %vm2845, %v2826, 0.0
    %3174 = vadd.xlane.f32.xlu0 %v3173
    %v3175 = vpop.xlane.xlu0 %3174
    %v3176 = vsel %vm2845, %v2827, 0.0
    %3177 = vadd.xlane.f32.xlu0 %v3176
    %v3178 = vpop.xlane.xlu0 %3177
    %v3179 = vsel %vm2845, %v2828, 0.0
    %3180 = vadd.xlane.f32.xlu0 %v3179
    %v3181 = vpop.xlane.xlu0 %3180
    %v3182 = vsel %vm2845, %v2829, 0.0
    %3183 = vadd.xlane.f32.xlu0 %v3182
    %v3184 = vpop.xlane.xlu0 %3183
    %v3185 = vsel %vm2845, %v2830, 0.0
    %3186 = vadd.xlane.f32.xlu0 %v3185
    %v3187 = vpop.xlane.xlu0 %3186
    %v3188 = vsel %vm2845, %v2831, 0.0
    %3189 = vadd.xlane.f32.xlu0 %v3188
    %v3190 = vpop.xlane.xlu0 %3189
    %v3191 = vsel %vm2845, %v2832, 0.0
    %3192 = vadd.xlane.f32.xlu0 %v3191
    %v3193 = vpop.xlane.xlu0 %3192
    %v3194 = vsel %vm2845, %v2833, 0.0
    %3195 = vadd.xlane.f32.xlu0 %v3194
    %v3196 = vpop.xlane.xlu0 %3195
    %v3197 = vsel %vm2845, %v2834, 0.0
    %3198 = vadd.xlane.f32.xlu0 %v3197
    %v3199 = vpop.xlane.xlu0 %3198
    %v3200 = vsel %vm2845, %v2835, 0.0
    %3201 = vadd.xlane.f32.xlu0 %v3200
    %v3202 = vpop.xlane.xlu0 %3201
    %v3203 = vsel %vm2845, %v2836, 0.0
    %3204 = vadd.xlane.f32.xlu0 %v3203
    %v3205 = vpop.xlane.xlu0 %3204
    %v3206 = vsel %vm2845, %v2837, 0.0
    %3207 = vadd.xlane.f32.xlu0 %v3206
    %v3208 = vpop.xlane.xlu0 %3207
    %v3209 = vsel %vm2845, %v2838, 0.0
    %3210 = vadd.xlane.f32.xlu0 %v3209
    %v3211 = vpop.xlane.xlu0 %3210
    %v3212 = vsel %vm2845, %v2839, 0.0
    %3213 = vadd.xlane.f32.xlu0 %v3212
    %v3214 = vpop.xlane.xlu0 %3213
    %v3215 = vsel %vm2845, %v2840, 0.0
    %3216 = vadd.xlane.f32.xlu0 %v3215
    %v3217 = vpop.xlane.xlu0 %3216
    %v3218 = vsel %vm2845, %v2841, 0.0
    %3219 = vadd.xlane.f32.xlu0 %v3218
    %v3220 = vpop.xlane.xlu0 %3219
    %v3221 = vsel %vm2845, %v2842, 0.0
    %3222 = vadd.xlane.f32.xlu0 %v3221
    %v3223 = vpop.xlane.xlu0 %3222
    %v3224 = vsel %vm2845, %v2843, 0.0
    %3225 = vadd.xlane.f32.xlu0 %v3224
    %v3226 = vpop.xlane.xlu0 %3225
    %v3227 = vsel %vm2845, %v2844, 0.0
    %3228 = vadd.xlane.f32.xlu0 %v3227
    %v3229 = vpop.xlane.xlu0 %3228
    %v3230 = vperm.slane %v172, 0
    %v3231 = vlaneseq
    %v3232 = vshrl.u32 %v3231, 7
    %v3233 = vadd.s32 %v3232, 64
    %3234 = vset.pattern.permute.xlu0 %v3233
    %3235 = vperm.xlu0 %3234, %v3230
    %v3236 = vpop.permute.xlu0 %3235
    %v3237 = vperm.slane %v172, 1
    %v3238 = vlaneseq
    %v3239 = vshrl.u32 %v3238, 7
    %v3240 = vadd.s32 %v3239, 64
    %3241 = vset.pattern.permute.xlu0 %v3240
    %3242 = vperm.xlu0 %3241, %v3237
    %v3243 = vpop.permute.xlu0 %3242
    %v3244 = vperm.slane %v172, 2
    %v3245 = vlaneseq
    %v3246 = vshrl.u32 %v3245, 7
    %v3247 = vadd.s32 %v3246, 64
    %3248 = vset.pattern.permute.xlu0 %v3247
    %3249 = vperm.xlu0 %3248, %v3244
    %v3250 = vpop.permute.xlu0 %3249
    %v3251 = vperm.slane %v172, 3
    %v3252 = vlaneseq
    %v3253 = vshrl.u32 %v3252, 7
    %v3254 = vadd.s32 %v3253, 64
    %3255 = vset.pattern.permute.xlu0 %v3254
    %3256 = vperm.xlu0 %3255, %v3251
    %v3257 = vpop.permute.xlu0 %3256
    %v3258 = vperm.slane %v172, 4
    %v3259 = vlaneseq
    %v3260 = vshrl.u32 %v3259, 7
    %v3261 = vadd.s32 %v3260, 64
    %3262 = vset.pattern.permute.xlu0 %v3261
    %3263 = vperm.xlu0 %3262, %v3258
    %v3264 = vpop.permute.xlu0 %3263
    %v3265 = vperm.slane %v172, 5
    %v3266 = vlaneseq
    %v3267 = vshrl.u32 %v3266, 7
    %v3268 = vadd.s32 %v3267, 64
    %3269 = vset.pattern.permute.xlu0 %v3268
    %3270 = vperm.xlu0 %3269, %v3265
    %v3271 = vpop.permute.xlu0 %3270
    %v3272 = vperm.slane %v172, 6
    %v3273 = vlaneseq
    %v3274 = vshrl.u32 %v3273, 7
    %v3275 = vadd.s32 %v3274, 64
    %3276 = vset.pattern.permute.xlu0 %v3275
    %3277 = vperm.xlu0 %3276, %v3272
    %v3278 = vpop.permute.xlu0 %3277
    %v3279 = vperm.slane %v172, 7
    %v3280 = vlaneseq
    %v3281 = vshrl.u32 %v3280, 7
    %v3282 = vadd.s32 %v3281, 64
    %3283 = vset.pattern.permute.xlu0 %v3282
    %3284 = vperm.xlu0 %3283, %v3279
    %v3285 = vpop.permute.xlu0 %3284
    %v3286 = vperm.slane %v173, 0
    %v3287 = vlaneseq
    %v3288 = vshrl.u32 %v3287, 7
    %v3289 = vadd.s32 %v3288, 64
    %3290 = vset.pattern.permute.xlu0 %v3289
    %3291 = vperm.xlu0 %3290, %v3286
    %v3292 = vpop.permute.xlu0 %3291
    %v3293 = vperm.slane %v173, 1
    %v3294 = vlaneseq
    %v3295 = vshrl.u32 %v3294, 7
    %v3296 = vadd.s32 %v3295, 64
    %3297 = vset.pattern.permute.xlu0 %v3296
    %3298 = vperm.xlu0 %3297, %v3293
    %v3299 = vpop.permute.xlu0 %3298
    %v3300 = vperm.slane %v173, 2
    %v3301 = vlaneseq
    %v3302 = vshrl.u32 %v3301, 7
    %v3303 = vadd.s32 %v3302, 64
    %3304 = vset.pattern.permute.xlu0 %v3303
    %3305 = vperm.xlu0 %3304, %v3300
    %v3306 = vpop.permute.xlu0 %3305
    %v3307 = vperm.slane %v173, 3
    %v3308 = vlaneseq
    %v3309 = vshrl.u32 %v3308, 7
    %v3310 = vadd.s32 %v3309, 64
    %3311 = vset.pattern.permute.xlu0 %v3310
    %3312 = vperm.xlu0 %3311, %v3307
    %v3313 = vpop.permute.xlu0 %3312
    %v3314 = vperm.slane %v173, 4
    %v3315 = vlaneseq
    %v3316 = vshrl.u32 %v3315, 7
    %v3317 = vadd.s32 %v3316, 64
    %3318 = vset.pattern.permute.xlu0 %v3317
    %3319 = vperm.xlu0 %3318, %v3314
    %v3320 = vpop.permute.xlu0 %3319
    %v3321 = vperm.slane %v173, 5
    %v3322 = vlaneseq
    %v3323 = vshrl.u32 %v3322, 7
    %v3324 = vadd.s32 %v3323, 64
    %3325 = vset.pattern.permute.xlu0 %v3324
    %3326 = vperm.xlu0 %3325, %v3321
    %v3327 = vpop.permute.xlu0 %3326
    %v3328 = vperm.slane %v173, 6
    %v3329 = vlaneseq
    %v3330 = vshrl.u32 %v3329, 7
    %v3331 = vadd.s32 %v3330, 64
    %3332 = vset.pattern.permute.xlu0 %v3331
    %3333 = vperm.xlu0 %3332, %v3328
    %v3334 = vpop.permute.xlu0 %3333
    %v3335 = vperm.slane %v173, 7
    %v3336 = vlaneseq
    %v3337 = vshrl.u32 %v3336, 7
    %v3338 = vadd.s32 %v3337, 64
    %3339 = vset.pattern.permute.xlu0 %v3338
    %3340 = vperm.xlu0 %3339, %v3335
    %v3341 = vpop.permute.xlu0 %3340
    %v3342 = vperm.slane %v174, 0
    %v3343 = vlaneseq
    %v3344 = vshrl.u32 %v3343, 7
    %v3345 = vadd.s32 %v3344, 64
    %3346 = vset.pattern.permute.xlu0 %v3345
    %3347 = vperm.xlu0 %3346, %v3342
    %v3348 = vpop.permute.xlu0 %3347
    %v3349 = vperm.slane %v174, 1
    %v3350 = vlaneseq
    %v3351 = vshrl.u32 %v3350, 7
    %v3352 = vadd.s32 %v3351, 64
    %3353 = vset.pattern.permute.xlu0 %v3352
    %3354 = vperm.xlu0 %3353, %v3349
    %v3355 = vpop.permute.xlu0 %3354
    %v3356 = vperm.slane %v174, 2
    %v3357 = vlaneseq
    %v3358 = vshrl.u32 %v3357, 7
    %v3359 = vadd.s32 %v3358, 64
    %3360 = vset.pattern.permute.xlu0 %v3359
    %3361 = vperm.xlu0 %3360, %v3356
    %v3362 = vpop.permute.xlu0 %3361
    %v3363 = vperm.slane %v174, 3
    %v3364 = vlaneseq
    %v3365 = vshrl.u32 %v3364, 7
    %v3366 = vadd.s32 %v3365, 64
    %3367 = vset.pattern.permute.xlu0 %v3366
    %3368 = vperm.xlu0 %3367, %v3363
    %v3369 = vpop.permute.xlu0 %3368
    %v3370 = vperm.slane %v174, 4
    %v3371 = vlaneseq
    %v3372 = vshrl.u32 %v3371, 7
    %v3373 = vadd.s32 %v3372, 64
    %3374 = vset.pattern.permute.xlu0 %v3373
    %3375 = vperm.xlu0 %3374, %v3370
    %v3376 = vpop.permute.xlu0 %3375
    %v3377 = vperm.slane %v174, 5
    %v3378 = vlaneseq
    %v3379 = vshrl.u32 %v3378, 7
    %v3380 = vadd.s32 %v3379, 64
    %3381 = vset.pattern.permute.xlu0 %v3380
    %3382 = vperm.xlu0 %3381, %v3377
    %v3383 = vpop.permute.xlu0 %3382
    %v3384 = vperm.slane %v174, 6
    %v3385 = vlaneseq
    %v3386 = vshrl.u32 %v3385, 7
    %v3387 = vadd.s32 %v3386, 64
    %3388 = vset.pattern.permute.xlu0 %v3387
    %3389 = vperm.xlu0 %3388, %v3384
    %v3390 = vpop.permute.xlu0 %3389
    %v3391 = vperm.slane %v174, 7
    %v3392 = vlaneseq
    %v3393 = vshrl.u32 %v3392, 7
    %v3394 = vadd.s32 %v3393, 64
    %3395 = vset.pattern.permute.xlu0 %v3394
    %3396 = vperm.xlu0 %3395, %v3391
    %v3397 = vpop.permute.xlu0 %3396
    %v3398 = vperm.slane %v175, 0
    %v3399 = vlaneseq
    %v3400 = vshrl.u32 %v3399, 7
    %v3401 = vadd.s32 %v3400, 64
    %3402 = vset.pattern.permute.xlu0 %v3401
    %3403 = vperm.xlu0 %3402, %v3398
    %v3404 = vpop.permute.xlu0 %3403
    %v3405 = vperm.slane %v175, 1
    %v3406 = vlaneseq
    %v3407 = vshrl.u32 %v3406, 7
    %v3408 = vadd.s32 %v3407, 64
    %3409 = vset.pattern.permute.xlu0 %v3408
    %3410 = vperm.xlu0 %3409, %v3405
    %v3411 = vpop.permute.xlu0 %3410
    %v3412 = vperm.slane %v175, 2
    %v3413 = vlaneseq
    %v3414 = vshrl.u32 %v3413, 7
    %v3415 = vadd.s32 %v3414, 64
    %3416 = vset.pattern.permute.xlu0 %v3415
    %3417 = vperm.xlu0 %3416, %v3412
    %v3418 = vpop.permute.xlu0 %3417
    %v3419 = vperm.slane %v175, 3
    %v3420 = vlaneseq
    %v3421 = vshrl.u32 %v3420, 7
    %v3422 = vadd.s32 %v3421, 64
    %3423 = vset.pattern.permute.xlu0 %v3422
    %3424 = vperm.xlu0 %3423, %v3419
    %v3425 = vpop.permute.xlu0 %3424
    %v3426 = vperm.slane %v175, 4
    %v3427 = vlaneseq
    %v3428 = vshrl.u32 %v3427, 7
    %v3429 = vadd.s32 %v3428, 64
    %3430 = vset.pattern.permute.xlu0 %v3429
    %3431 = vperm.xlu0 %3430, %v3426
    %v3432 = vpop.permute.xlu0 %3431
    %v3433 = vperm.slane %v175, 5
    %v3434 = vlaneseq
    %v3435 = vshrl.u32 %v3434, 7
    %v3436 = vadd.s32 %v3435, 64
    %3437 = vset.pattern.permute.xlu0 %v3436
    %3438 = vperm.xlu0 %3437, %v3433
    %v3439 = vpop.permute.xlu0 %3438
    %v3440 = vperm.slane %v175, 6
    %v3441 = vlaneseq
    %v3442 = vshrl.u32 %v3441, 7
    %v3443 = vadd.s32 %v3442, 64
    %3444 = vset.pattern.permute.xlu0 %v3443
    %3445 = vperm.xlu0 %3444, %v3440
    %v3446 = vpop.permute.xlu0 %3445
    %v3447 = vperm.slane %v175, 7
    %v3448 = vlaneseq
    %v3449 = vshrl.u32 %v3448, 7
    %v3450 = vadd.s32 %v3449, 64
    %3451 = vset.pattern.permute.xlu0 %v3450
    %3452 = vperm.xlu0 %3451, %v3447
    %v3453 = vpop.permute.xlu0 %3452
    %v3454 = vperm.slane %v176, 0
    %v3455 = vlaneseq
    %v3456 = vshrl.u32 %v3455, 7
    %v3457 = vadd.s32 %v3456, 64
    %3458 = vset.pattern.permute.xlu0 %v3457
    %3459 = vperm.xlu0 %3458, %v3454
    %v3460 = vpop.permute.xlu0 %3459
    %v3461 = vperm.slane %v176, 1
    %v3462 = vlaneseq
    %v3463 = vshrl.u32 %v3462, 7
    %v3464 = vadd.s32 %v3463, 64
    %3465 = vset.pattern.permute.xlu0 %v3464
    %3466 = vperm.xlu0 %3465, %v3461
    %v3467 = vpop.permute.xlu0 %3466
    %v3468 = vperm.slane %v176, 2
    %v3469 = vlaneseq
    %v3470 = vshrl.u32 %v3469, 7
    %v3471 = vadd.s32 %v3470, 64
    %3472 = vset.pattern.permute.xlu0 %v3471
    %3473 = vperm.xlu0 %3472, %v3468
    %v3474 = vpop.permute.xlu0 %3473
    %v3475 = vperm.slane %v176, 3
    %v3476 = vlaneseq
    %v3477 = vshrl.u32 %v3476, 7
    %v3478 = vadd.s32 %v3477, 64
    %3479 = vset.pattern.permute.xlu0 %v3478
    %3480 = vperm.xlu0 %3479, %v3475
    %v3481 = vpop.permute.xlu0 %3480
    %v3482 = vperm.slane %v176, 4
    %v3483 = vlaneseq
    %v3484 = vshrl.u32 %v3483, 7
    %v3485 = vadd.s32 %v3484, 64
    %3486 = vset.pattern.permute.xlu0 %v3485
    %3487 = vperm.xlu0 %3486, %v3482
    %v3488 = vpop.permute.xlu0 %3487
    %v3489 = vperm.slane %v176, 5
    %v3490 = vlaneseq
    %v3491 = vshrl.u32 %v3490, 7
    %v3492 = vadd.s32 %v3491, 64
    %3493 = vset.pattern.permute.xlu0 %v3492
    %3494 = vperm.xlu0 %3493, %v3489
    %v3495 = vpop.permute.xlu0 %3494
    %v3496 = vperm.slane %v176, 6
    %v3497 = vlaneseq
    %v3498 = vshrl.u32 %v3497, 7
    %v3499 = vadd.s32 %v3498, 64
    %3500 = vset.pattern.permute.xlu0 %v3499
    %3501 = vperm.xlu0 %3500, %v3496
    %v3502 = vpop.permute.xlu0 %3501
    %v3503 = vperm.slane %v176, 7
    %v3504 = vlaneseq
    %v3505 = vshrl.u32 %v3504, 7
    %v3506 = vadd.s32 %v3505, 64
    %3507 = vset.pattern.permute.xlu0 %v3506
    %3508 = vperm.xlu0 %3507, %v3503
    %v3509 = vpop.permute.xlu0 %3508
    %v3510 = vperm.slane %v177, 0
    %v3511 = vlaneseq
    %v3512 = vshrl.u32 %v3511, 7
    %v3513 = vadd.s32 %v3512, 64
    %3514 = vset.pattern.permute.xlu0 %v3513
    %3515 = vperm.xlu0 %3514, %v3510
    %v3516 = vpop.permute.xlu0 %3515
    %v3517 = vperm.slane %v177, 1
    %v3518 = vlaneseq
    %v3519 = vshrl.u32 %v3518, 7
    %v3520 = vadd.s32 %v3519, 64
    %3521 = vset.pattern.permute.xlu0 %v3520
    %3522 = vperm.xlu0 %3521, %v3517
    %v3523 = vpop.permute.xlu0 %3522
    %v3524 = vperm.slane %v177, 2
    %v3525 = vlaneseq
    %v3526 = vshrl.u32 %v3525, 7
    %v3527 = vadd.s32 %v3526, 64
    %3528 = vset.pattern.permute.xlu0 %v3527
    %3529 = vperm.xlu0 %3528, %v3524
    %v3530 = vpop.permute.xlu0 %3529
    %v3531 = vperm.slane %v177, 3
    %v3532 = vlaneseq
    %v3533 = vshrl.u32 %v3532, 7
    %v3534 = vadd.s32 %v3533, 64
    %3535 = vset.pattern.permute.xlu0 %v3534
    %3536 = vperm.xlu0 %3535, %v3531
    %v3537 = vpop.permute.xlu0 %3536
    %v3538 = vperm.slane %v177, 4
    %v3539 = vlaneseq
    %v3540 = vshrl.u32 %v3539, 7
    %v3541 = vadd.s32 %v3540, 64
    %3542 = vset.pattern.permute.xlu0 %v3541
    %3543 = vperm.xlu0 %3542, %v3538
    %v3544 = vpop.permute.xlu0 %3543
    %v3545 = vperm.slane %v177, 5
    %v3546 = vlaneseq
    %v3547 = vshrl.u32 %v3546, 7
    %v3548 = vadd.s32 %v3547, 64
    %3549 = vset.pattern.permute.xlu0 %v3548
    %3550 = vperm.xlu0 %3549, %v3545
    %v3551 = vpop.permute.xlu0 %3550
    %v3552 = vperm.slane %v177, 6
    %v3553 = vlaneseq
    %v3554 = vshrl.u32 %v3553, 7
    %v3555 = vadd.s32 %v3554, 64
    %3556 = vset.pattern.permute.xlu0 %v3555
    %3557 = vperm.xlu0 %3556, %v3552
    %v3558 = vpop.permute.xlu0 %3557
    %v3559 = vperm.slane %v177, 7
    %v3560 = vlaneseq
    %v3561 = vshrl.u32 %v3560, 7
    %v3562 = vadd.s32 %v3561, 64
    %3563 = vset.pattern.permute.xlu0 %v3562
    %3564 = vperm.xlu0 %3563, %v3559
    %v3565 = vpop.permute.xlu0 %3564
    %v3566 = vperm.slane %v178, 0
    %v3567 = vlaneseq
    %v3568 = vshrl.u32 %v3567, 7
    %v3569 = vadd.s32 %v3568, 64
    %3570 = vset.pattern.permute.xlu0 %v3569
    %3571 = vperm.xlu0 %3570, %v3566
    %v3572 = vpop.permute.xlu0 %3571
    %v3573 = vperm.slane %v178, 1
    %v3574 = vlaneseq
    %v3575 = vshrl.u32 %v3574, 7
    %v3576 = vadd.s32 %v3575, 64
    %3577 = vset.pattern.permute.xlu0 %v3576
    %3578 = vperm.xlu0 %3577, %v3573
    %v3579 = vpop.permute.xlu0 %3578
    %v3580 = vperm.slane %v178, 2
    %v3581 = vlaneseq
    %v3582 = vshrl.u32 %v3581, 7
    %v3583 = vadd.s32 %v3582, 64
    %3584 = vset.pattern.permute.xlu0 %v3583
    %3585 = vperm.xlu0 %3584, %v3580
    %v3586 = vpop.permute.xlu0 %3585
    %v3587 = vperm.slane %v178, 3
    %v3588 = vlaneseq
    %v3589 = vshrl.u32 %v3588, 7
    %v3590 = vadd.s32 %v3589, 64
    %3591 = vset.pattern.permute.xlu0 %v3590
    %3592 = vperm.xlu0 %3591, %v3587
    %v3593 = vpop.permute.xlu0 %3592
    %v3594 = vperm.slane %v178, 4
    %v3595 = vlaneseq
    %v3596 = vshrl.u32 %v3595, 7
    %v3597 = vadd.s32 %v3596, 64
    %3598 = vset.pattern.permute.xlu0 %v3597
    %3599 = vperm.xlu0 %3598, %v3594
    %v3600 = vpop.permute.xlu0 %3599
    %v3601 = vperm.slane %v178, 5
    %v3602 = vlaneseq
    %v3603 = vshrl.u32 %v3602, 7
    %v3604 = vadd.s32 %v3603, 64
    %3605 = vset.pattern.permute.xlu0 %v3604
    %3606 = vperm.xlu0 %3605, %v3601
    %v3607 = vpop.permute.xlu0 %3606
    %v3608 = vperm.slane %v178, 6
    %v3609 = vlaneseq
    %v3610 = vshrl.u32 %v3609, 7
    %v3611 = vadd.s32 %v3610, 64
    %3612 = vset.pattern.permute.xlu0 %v3611
    %3613 = vperm.xlu0 %3612, %v3608
    %v3614 = vpop.permute.xlu0 %3613
    %v3615 = vperm.slane %v178, 7
    %v3616 = vlaneseq
    %v3617 = vshrl.u32 %v3616, 7
    %v3618 = vadd.s32 %v3617, 64
    %3619 = vset.pattern.permute.xlu0 %v3618
    %3620 = vperm.xlu0 %3619, %v3615
    %v3621 = vpop.permute.xlu0 %3620
    %v3622 = vperm.slane %v179, 0
    %v3623 = vlaneseq
    %v3624 = vshrl.u32 %v3623, 7
    %v3625 = vadd.s32 %v3624, 64
    %3626 = vset.pattern.permute.xlu0 %v3625
    %3627 = vperm.xlu0 %3626, %v3622
    %v3628 = vpop.permute.xlu0 %3627
    %v3629 = vperm.slane %v179, 1
    %v3630 = vlaneseq
    %v3631 = vshrl.u32 %v3630, 7
    %v3632 = vadd.s32 %v3631, 64
    %3633 = vset.pattern.permute.xlu0 %v3632
    %3634 = vperm.xlu0 %3633, %v3629
    %v3635 = vpop.permute.xlu0 %3634
    %v3636 = vperm.slane %v179, 2
    %v3637 = vlaneseq
    %v3638 = vshrl.u32 %v3637, 7
    %v3639 = vadd.s32 %v3638, 64
    %3640 = vset.pattern.permute.xlu0 %v3639
    %3641 = vperm.xlu0 %3640, %v3636
    %v3642 = vpop.permute.xlu0 %3641
    %v3643 = vperm.slane %v179, 3
    %v3644 = vlaneseq
    %v3645 = vshrl.u32 %v3644, 7
    %v3646 = vadd.s32 %v3645, 64
    %3647 = vset.pattern.permute.xlu0 %v3646
    %3648 = vperm.xlu0 %3647, %v3643
    %v3649 = vpop.permute.xlu0 %3648
    %v3650 = vperm.slane %v179, 4
    %v3651 = vlaneseq
    %v3652 = vshrl.u32 %v3651, 7
    %v3653 = vadd.s32 %v3652, 64
    %3654 = vset.pattern.permute.xlu0 %v3653
    %3655 = vperm.xlu0 %3654, %v3650
    %v3656 = vpop.permute.xlu0 %3655
    %v3657 = vperm.slane %v179, 5
    %v3658 = vlaneseq
    %v3659 = vshrl.u32 %v3658, 7
    %v3660 = vadd.s32 %v3659, 64
    %3661 = vset.pattern.permute.xlu0 %v3660
    %3662 = vperm.xlu0 %3661, %v3657
    %v3663 = vpop.permute.xlu0 %3662
    %v3664 = vperm.slane %v179, 6
    %v3665 = vlaneseq
    %v3666 = vshrl.u32 %v3665, 7
    %v3667 = vadd.s32 %v3666, 64
    %3668 = vset.pattern.permute.xlu0 %v3667
    %3669 = vperm.xlu0 %3668, %v3664
    %v3670 = vpop.permute.xlu0 %3669
    %v3671 = vperm.slane %v179, 7
    %v3672 = vlaneseq
    %v3673 = vshrl.u32 %v3672, 7
    %v3674 = vadd.s32 %v3673, 64
    %3675 = vset.pattern.permute.xlu0 %v3674
    %3676 = vperm.xlu0 %3675, %v3671
    %v3677 = vpop.permute.xlu0 %3676
    %v3678 = vperm.slane %v180, 0
    %v3679 = vlaneseq
    %v3680 = vshrl.u32 %v3679, 7
    %v3681 = vadd.s32 %v3680, 64
    %3682 = vset.pattern.permute.xlu0 %v3681
    %3683 = vperm.xlu0 %3682, %v3678
    %v3684 = vpop.permute.xlu0 %3683
    %v3685 = vperm.slane %v180, 1
    %v3686 = vlaneseq
    %v3687 = vshrl.u32 %v3686, 7
    %v3688 = vadd.s32 %v3687, 64
    %3689 = vset.pattern.permute.xlu0 %v3688
    %3690 = vperm.xlu0 %3689, %v3685
    %v3691 = vpop.permute.xlu0 %3690
    %v3692 = vperm.slane %v180, 2
    %v3693 = vlaneseq
    %v3694 = vshrl.u32 %v3693, 7
    %v3695 = vadd.s32 %v3694, 64
    %3696 = vset.pattern.permute.xlu0 %v3695
    %3697 = vperm.xlu0 %3696, %v3692
    %v3698 = vpop.permute.xlu0 %3697
    %v3699 = vperm.slane %v180, 3
    %v3700 = vlaneseq
    %v3701 = vshrl.u32 %v3700, 7
    %v3702 = vadd.s32 %v3701, 64
    %3703 = vset.pattern.permute.xlu0 %v3702
    %3704 = vperm.xlu0 %3703, %v3699
    %v3705 = vpop.permute.xlu0 %3704
    %v3706 = vperm.slane %v180, 4
    %v3707 = vlaneseq
    %v3708 = vshrl.u32 %v3707, 7
    %v3709 = vadd.s32 %v3708, 64
    %3710 = vset.pattern.permute.xlu0 %v3709
    %3711 = vperm.xlu0 %3710, %v3706
    %v3712 = vpop.permute.xlu0 %3711
    %v3713 = vperm.slane %v180, 5
    %v3714 = vlaneseq
    %v3715 = vshrl.u32 %v3714, 7
    %v3716 = vadd.s32 %v3715, 64
    %3717 = vset.pattern.permute.xlu0 %v3716
    %3718 = vperm.xlu0 %3717, %v3713
    %v3719 = vpop.permute.xlu0 %3718
    %v3720 = vperm.slane %v180, 6
    %v3721 = vlaneseq
    %v3722 = vshrl.u32 %v3721, 7
    %v3723 = vadd.s32 %v3722, 64
    %3724 = vset.pattern.permute.xlu0 %v3723
    %3725 = vperm.xlu0 %3724, %v3720
    %v3726 = vpop.permute.xlu0 %3725
    %v3727 = vperm.slane %v180, 7
    %v3728 = vlaneseq
    %v3729 = vshrl.u32 %v3728, 7
    %v3730 = vadd.s32 %v3729, 64
    %3731 = vset.pattern.permute.xlu0 %v3730
    %3732 = vperm.xlu0 %3731, %v3727
    %v3733 = vpop.permute.xlu0 %3732
    %v3734 = vperm.slane %v181, 0
    %v3735 = vlaneseq
    %v3736 = vshrl.u32 %v3735, 7
    %v3737 = vadd.s32 %v3736, 64
    %3738 = vset.pattern.permute.xlu0 %v3737
    %3739 = vperm.xlu0 %3738, %v3734
    %v3740 = vpop.permute.xlu0 %3739
    %v3741 = vperm.slane %v181, 1
    %v3742 = vlaneseq
    %v3743 = vshrl.u32 %v3742, 7
    %v3744 = vadd.s32 %v3743, 64
    %3745 = vset.pattern.permute.xlu0 %v3744
    %3746 = vperm.xlu0 %3745, %v3741
    %v3747 = vpop.permute.xlu0 %3746
    %v3748 = vperm.slane %v181, 2
    %v3749 = vlaneseq
    %v3750 = vshrl.u32 %v3749, 7
    %v3751 = vadd.s32 %v3750, 64
    %3752 = vset.pattern.permute.xlu0 %v3751
    %3753 = vperm.xlu0 %3752, %v3748
    %v3754 = vpop.permute.xlu0 %3753
    %v3755 = vperm.slane %v181, 3
    %v3756 = vlaneseq
    %v3757 = vshrl.u32 %v3756, 7
    %v3758 = vadd.s32 %v3757, 64
    %3759 = vset.pattern.permute.xlu0 %v3758
    %3760 = vperm.xlu0 %3759, %v3755
    %v3761 = vpop.permute.xlu0 %3760
    %v3762 = vperm.slane %v181, 4
    %v3763 = vlaneseq
    %v3764 = vshrl.u32 %v3763, 7
    %v3765 = vadd.s32 %v3764, 64
    %3766 = vset.pattern.permute.xlu0 %v3765
    %3767 = vperm.xlu0 %3766, %v3762
    %v3768 = vpop.permute.xlu0 %3767
    %v3769 = vperm.slane %v181, 5
    %v3770 = vlaneseq
    %v3771 = vshrl.u32 %v3770, 7
    %v3772 = vadd.s32 %v3771, 64
    %3773 = vset.pattern.permute.xlu0 %v3772
    %3774 = vperm.xlu0 %3773, %v3769
    %v3775 = vpop.permute.xlu0 %3774
    %v3776 = vperm.slane %v181, 6
    %v3777 = vlaneseq
    %v3778 = vshrl.u32 %v3777, 7
    %v3779 = vadd.s32 %v3778, 64
    %3780 = vset.pattern.permute.xlu0 %v3779
    %3781 = vperm.xlu0 %3780, %v3776
    %v3782 = vpop.permute.xlu0 %3781
    %v3783 = vperm.slane %v181, 7
    %v3784 = vlaneseq
    %v3785 = vshrl.u32 %v3784, 7
    %v3786 = vadd.s32 %v3785, 64
    %3787 = vset.pattern.permute.xlu0 %v3786
    %3788 = vperm.xlu0 %3787, %v3783
    %v3789 = vpop.permute.xlu0 %3788
    %v3790 = vperm.slane %v182, 0
    %v3791 = vlaneseq
    %v3792 = vshrl.u32 %v3791, 7
    %v3793 = vadd.s32 %v3792, 64
    %3794 = vset.pattern.permute.xlu0 %v3793
    %3795 = vperm.xlu0 %3794, %v3790
    %v3796 = vpop.permute.xlu0 %3795
    %v3797 = vperm.slane %v182, 1
    %v3798 = vlaneseq
    %v3799 = vshrl.u32 %v3798, 7
    %v3800 = vadd.s32 %v3799, 64
    %3801 = vset.pattern.permute.xlu0 %v3800
    %3802 = vperm.xlu0 %3801, %v3797
    %v3803 = vpop.permute.xlu0 %3802
    %v3804 = vperm.slane %v182, 2
    %v3805 = vlaneseq
    %v3806 = vshrl.u32 %v3805, 7
    %v3807 = vadd.s32 %v3806, 64
    %3808 = vset.pattern.permute.xlu0 %v3807
    %3809 = vperm.xlu0 %3808, %v3804
    %v3810 = vpop.permute.xlu0 %3809
    %v3811 = vperm.slane %v182, 3
    %v3812 = vlaneseq
    %v3813 = vshrl.u32 %v3812, 7
    %v3814 = vadd.s32 %v3813, 64
    %3815 = vset.pattern.permute.xlu0 %v3814
    %3816 = vperm.xlu0 %3815, %v3811
    %v3817 = vpop.permute.xlu0 %3816
    %v3818 = vperm.slane %v182, 4
    %v3819 = vlaneseq
    %v3820 = vshrl.u32 %v3819, 7
    %v3821 = vadd.s32 %v3820, 64
    %3822 = vset.pattern.permute.xlu0 %v3821
    %3823 = vperm.xlu0 %3822, %v3818
    %v3824 = vpop.permute.xlu0 %3823
    %v3825 = vperm.slane %v182, 5
    %v3826 = vlaneseq
    %v3827 = vshrl.u32 %v3826, 7
    %v3828 = vadd.s32 %v3827, 64
    %3829 = vset.pattern.permute.xlu0 %v3828
    %3830 = vperm.xlu0 %3829, %v3825
    %v3831 = vpop.permute.xlu0 %3830
    %v3832 = vperm.slane %v182, 6
    %v3833 = vlaneseq
    %v3834 = vshrl.u32 %v3833, 7
    %v3835 = vadd.s32 %v3834, 64
    %3836 = vset.pattern.permute.xlu0 %v3835
    %3837 = vperm.xlu0 %3836, %v3832
    %v3838 = vpop.permute.xlu0 %3837
    %v3839 = vperm.slane %v182, 7
    %v3840 = vlaneseq
    %v3841 = vshrl.u32 %v3840, 7
    %v3842 = vadd.s32 %v3841, 64
    %3843 = vset.pattern.permute.xlu0 %v3842
    %3844 = vperm.xlu0 %3843, %v3839
    %v3845 = vpop.permute.xlu0 %3844
    %v3846 = vperm.slane %v183, 0
    %v3847 = vlaneseq
    %v3848 = vshrl.u32 %v3847, 7
    %v3849 = vadd.s32 %v3848, 64
    %3850 = vset.pattern.permute.xlu0 %v3849
    %3851 = vperm.xlu0 %3850, %v3846
    %v3852 = vpop.permute.xlu0 %3851
    %v3853 = vperm.slane %v183, 1
    %v3854 = vlaneseq
    %v3855 = vshrl.u32 %v3854, 7
    %v3856 = vadd.s32 %v3855, 64
    %3857 = vset.pattern.permute.xlu0 %v3856
    %3858 = vperm.xlu0 %3857, %v3853
    %v3859 = vpop.permute.xlu0 %3858
    %v3860 = vperm.slane %v183, 2
    %v3861 = vlaneseq
    %v3862 = vshrl.u32 %v3861, 7
    %v3863 = vadd.s32 %v3862, 64
    %3864 = vset.pattern.permute.xlu0 %v3863
    %3865 = vperm.xlu0 %3864, %v3860
    %v3866 = vpop.permute.xlu0 %3865
    %v3867 = vperm.slane %v183, 3
    %v3868 = vlaneseq
    %v3869 = vshrl.u32 %v3868, 7
    %v3870 = vadd.s32 %v3869, 64
    %3871 = vset.pattern.permute.xlu0 %v3870
    %3872 = vperm.xlu0 %3871, %v3867
    %v3873 = vpop.permute.xlu0 %3872
    %v3874 = vperm.slane %v183, 4
    %v3875 = vlaneseq
    %v3876 = vshrl.u32 %v3875, 7
    %v3877 = vadd.s32 %v3876, 64
    %3878 = vset.pattern.permute.xlu0 %v3877
    %3879 = vperm.xlu0 %3878, %v3874
    %v3880 = vpop.permute.xlu0 %3879
    %v3881 = vperm.slane %v183, 5
    %v3882 = vlaneseq
    %v3883 = vshrl.u32 %v3882, 7
    %v3884 = vadd.s32 %v3883, 64
    %3885 = vset.pattern.permute.xlu0 %v3884
    %3886 = vperm.xlu0 %3885, %v3881
    %v3887 = vpop.permute.xlu0 %3886
    %v3888 = vperm.slane %v183, 6
    %v3889 = vlaneseq
    %v3890 = vshrl.u32 %v3889, 7
    %v3891 = vadd.s32 %v3890, 64
    %3892 = vset.pattern.permute.xlu0 %v3891
    %3893 = vperm.xlu0 %3892, %v3888
    %v3894 = vpop.permute.xlu0 %3893
    %v3895 = vperm.slane %v183, 7
    %v3896 = vlaneseq
    %v3897 = vshrl.u32 %v3896, 7
    %v3898 = vadd.s32 %v3897, 64
    %3899 = vset.pattern.permute.xlu0 %v3898
    %3900 = vperm.xlu0 %3899, %v3895
    %v3901 = vpop.permute.xlu0 %3900
    %v3902 = vperm.slane %v184, 0
    %v3903 = vlaneseq
    %v3904 = vshrl.u32 %v3903, 7
    %v3905 = vadd.s32 %v3904, 64
    %3906 = vset.pattern.permute.xlu0 %v3905
    %3907 = vperm.xlu0 %3906, %v3902
    %v3908 = vpop.permute.xlu0 %3907
    %v3909 = vperm.slane %v184, 1
    %v3910 = vlaneseq
    %v3911 = vshrl.u32 %v3910, 7
    %v3912 = vadd.s32 %v3911, 64
    %3913 = vset.pattern.permute.xlu0 %v3912
    %3914 = vperm.xlu0 %3913, %v3909
    %v3915 = vpop.permute.xlu0 %3914
    %v3916 = vperm.slane %v184, 2
    %v3917 = vlaneseq
    %v3918 = vshrl.u32 %v3917, 7
    %v3919 = vadd.s32 %v3918, 64
    %3920 = vset.pattern.permute.xlu0 %v3919
    %3921 = vperm.xlu0 %3920, %v3916
    %v3922 = vpop.permute.xlu0 %3921
    %v3923 = vperm.slane %v184, 3
    %v3924 = vlaneseq
    %v3925 = vshrl.u32 %v3924, 7
    %v3926 = vadd.s32 %v3925, 64
    %3927 = vset.pattern.permute.xlu0 %v3926
    %3928 = vperm.xlu0 %3927, %v3923
    %v3929 = vpop.permute.xlu0 %3928
    %v3930 = vperm.slane %v184, 4
    %v3931 = vlaneseq
    %v3932 = vshrl.u32 %v3931, 7
    %v3933 = vadd.s32 %v3932, 64
    %3934 = vset.pattern.permute.xlu0 %v3933
    %3935 = vperm.xlu0 %3934, %v3930
    %v3936 = vpop.permute.xlu0 %3935
    %v3937 = vperm.slane %v184, 5
    %v3938 = vlaneseq
    %v3939 = vshrl.u32 %v3938, 7
    %v3940 = vadd.s32 %v3939, 64
    %3941 = vset.pattern.permute.xlu0 %v3940
    %3942 = vperm.xlu0 %3941, %v3937
    %v3943 = vpop.permute.xlu0 %3942
    %v3944 = vperm.slane %v184, 6
    %v3945 = vlaneseq
    %v3946 = vshrl.u32 %v3945, 7
    %v3947 = vadd.s32 %v3946, 64
    %3948 = vset.pattern.permute.xlu0 %v3947
    %3949 = vperm.xlu0 %3948, %v3944
    %v3950 = vpop.permute.xlu0 %3949
    %v3951 = vperm.slane %v184, 7
    %v3952 = vlaneseq
    %v3953 = vshrl.u32 %v3952, 7
    %v3954 = vadd.s32 %v3953, 64
    %3955 = vset.pattern.permute.xlu0 %v3954
    %3956 = vperm.xlu0 %3955, %v3951
    %v3957 = vpop.permute.xlu0 %3956
    %v3958 = vperm.slane %v185, 0
    %v3959 = vlaneseq
    %v3960 = vshrl.u32 %v3959, 7
    %v3961 = vadd.s32 %v3960, 64
    %3962 = vset.pattern.permute.xlu0 %v3961
    %3963 = vperm.xlu0 %3962, %v3958
    %v3964 = vpop.permute.xlu0 %3963
    %v3965 = vperm.slane %v185, 1
    %v3966 = vlaneseq
    %v3967 = vshrl.u32 %v3966, 7
    %v3968 = vadd.s32 %v3967, 64
    %3969 = vset.pattern.permute.xlu0 %v3968
    %3970 = vperm.xlu0 %3969, %v3965
    %v3971 = vpop.permute.xlu0 %3970
    %v3972 = vperm.slane %v185, 2
    %v3973 = vlaneseq
    %v3974 = vshrl.u32 %v3973, 7
    %v3975 = vadd.s32 %v3974, 64
    %3976 = vset.pattern.permute.xlu0 %v3975
    %3977 = vperm.xlu0 %3976, %v3972
    %v3978 = vpop.permute.xlu0 %3977
    %v3979 = vperm.slane %v185, 3
    %v3980 = vlaneseq
    %v3981 = vshrl.u32 %v3980, 7
    %v3982 = vadd.s32 %v3981, 64
    %3983 = vset.pattern.permute.xlu0 %v3982
    %3984 = vperm.xlu0 %3983, %v3979
    %v3985 = vpop.permute.xlu0 %3984
    %v3986 = vperm.slane %v185, 4
    %v3987 = vlaneseq
    %v3988 = vshrl.u32 %v3987, 7
    %v3989 = vadd.s32 %v3988, 64
    %3990 = vset.pattern.permute.xlu0 %v3989
    %3991 = vperm.xlu0 %3990, %v3986
    %v3992 = vpop.permute.xlu0 %3991
    %v3993 = vperm.slane %v185, 5
    %v3994 = vlaneseq
    %v3995 = vshrl.u32 %v3994, 7
    %v3996 = vadd.s32 %v3995, 64
    %3997 = vset.pattern.permute.xlu0 %v3996
    %3998 = vperm.xlu0 %3997, %v3993
    %v3999 = vpop.permute.xlu0 %3998
    %v4000 = vperm.slane %v185, 6
    %v4001 = vlaneseq
    %v4002 = vshrl.u32 %v4001, 7
    %v4003 = vadd.s32 %v4002, 64
    %4004 = vset.pattern.permute.xlu0 %v4003
    %4005 = vperm.xlu0 %4004, %v4000
    %v4006 = vpop.permute.xlu0 %4005
    %v4007 = vperm.slane %v185, 7
    %v4008 = vlaneseq
    %v4009 = vshrl.u32 %v4008, 7
    %v4010 = vadd.s32 %v4009, 64
    %4011 = vset.pattern.permute.xlu0 %v4010
    %4012 = vperm.xlu0 %4011, %v4007
    %v4013 = vpop.permute.xlu0 %4012
    %v4014 = vperm.slane %v186, 0
    %v4015 = vlaneseq
    %v4016 = vshrl.u32 %v4015, 7
    %v4017 = vadd.s32 %v4016, 64
    %4018 = vset.pattern.permute.xlu0 %v4017
    %4019 = vperm.xlu0 %4018, %v4014
    %v4020 = vpop.permute.xlu0 %4019
    %v4021 = vperm.slane %v186, 1
    %v4022 = vlaneseq
    %v4023 = vshrl.u32 %v4022, 7
    %v4024 = vadd.s32 %v4023, 64
    %4025 = vset.pattern.permute.xlu0 %v4024
    %4026 = vperm.xlu0 %4025, %v4021
    %v4027 = vpop.permute.xlu0 %4026
    %v4028 = vperm.slane %v186, 2
    %v4029 = vlaneseq
    %v4030 = vshrl.u32 %v4029, 7
    %v4031 = vadd.s32 %v4030, 64
    %4032 = vset.pattern.permute.xlu0 %v4031
    %4033 = vperm.xlu0 %4032, %v4028
    %v4034 = vpop.permute.xlu0 %4033
    %v4035 = vperm.slane %v186, 3
    %v4036 = vlaneseq
    %v4037 = vshrl.u32 %v4036, 7
    %v4038 = vadd.s32 %v4037, 64
    %4039 = vset.pattern.permute.xlu0 %v4038
    %4040 = vperm.xlu0 %4039, %v4035
    %v4041 = vpop.permute.xlu0 %4040
    %v4042 = vperm.slane %v186, 4
    %v4043 = vlaneseq
    %v4044 = vshrl.u32 %v4043, 7
    %v4045 = vadd.s32 %v4044, 64
    %4046 = vset.pattern.permute.xlu0 %v4045
    %4047 = vperm.xlu0 %4046, %v4042
    %v4048 = vpop.permute.xlu0 %4047
    %v4049 = vperm.slane %v186, 5
    %v4050 = vlaneseq
    %v4051 = vshrl.u32 %v4050, 7
    %v4052 = vadd.s32 %v4051, 64
    %4053 = vset.pattern.permute.xlu0 %v4052
    %4054 = vperm.xlu0 %4053, %v4049
    %v4055 = vpop.permute.xlu0 %4054
    %v4056 = vperm.slane %v186, 6
    %v4057 = vlaneseq
    %v4058 = vshrl.u32 %v4057, 7
    %v4059 = vadd.s32 %v4058, 64
    %4060 = vset.pattern.permute.xlu0 %v4059
    %4061 = vperm.xlu0 %4060, %v4056
    %v4062 = vpop.permute.xlu0 %4061
    %v4063 = vperm.slane %v186, 7
    %v4064 = vlaneseq
    %v4065 = vshrl.u32 %v4064, 7
    %v4066 = vadd.s32 %v4065, 64
    %4067 = vset.pattern.permute.xlu0 %v4066
    %4068 = vperm.xlu0 %4067, %v4063
    %v4069 = vpop.permute.xlu0 %4068
    %v4070 = vperm.slane %v187, 0
    %v4071 = vlaneseq
    %v4072 = vshrl.u32 %v4071, 7
    %v4073 = vadd.s32 %v4072, 64
    %4074 = vset.pattern.permute.xlu0 %v4073
    %4075 = vperm.xlu0 %4074, %v4070
    %v4076 = vpop.permute.xlu0 %4075
    %v4077 = vperm.slane %v187, 1
    %v4078 = vlaneseq
    %v4079 = vshrl.u32 %v4078, 7
    %v4080 = vadd.s32 %v4079, 64
    %4081 = vset.pattern.permute.xlu0 %v4080
    %4082 = vperm.xlu0 %4081, %v4077
    %v4083 = vpop.permute.xlu0 %4082
    %v4084 = vperm.slane %v187, 2
    %v4085 = vlaneseq
    %v4086 = vshrl.u32 %v4085, 7
    %v4087 = vadd.s32 %v4086, 64
    %4088 = vset.pattern.permute.xlu0 %v4087
    %4089 = vperm.xlu0 %4088, %v4084
    %v4090 = vpop.permute.xlu0 %4089
    %v4091 = vperm.slane %v187, 3
    %v4092 = vlaneseq
    %v4093 = vshrl.u32 %v4092, 7
    %v4094 = vadd.s32 %v4093, 64
    %4095 = vset.pattern.permute.xlu0 %v4094
    %4096 = vperm.xlu0 %4095, %v4091
    %v4097 = vpop.permute.xlu0 %4096
    %v4098 = vperm.slane %v187, 4
    %v4099 = vlaneseq
    %v4100 = vshrl.u32 %v4099, 7
    %v4101 = vadd.s32 %v4100, 64
    %4102 = vset.pattern.permute.xlu0 %v4101
    %4103 = vperm.xlu0 %4102, %v4098
    %v4104 = vpop.permute.xlu0 %4103
    %v4105 = vperm.slane %v187, 5
    %v4106 = vlaneseq
    %v4107 = vshrl.u32 %v4106, 7
    %v4108 = vadd.s32 %v4107, 64
    %4109 = vset.pattern.permute.xlu0 %v4108
    %4110 = vperm.xlu0 %4109, %v4105
    %v4111 = vpop.permute.xlu0 %4110
    %v4112 = vperm.slane %v187, 6
    %v4113 = vlaneseq
    %v4114 = vshrl.u32 %v4113, 7
    %v4115 = vadd.s32 %v4114, 64
    %4116 = vset.pattern.permute.xlu0 %v4115
    %4117 = vperm.xlu0 %4116, %v4112
    %v4118 = vpop.permute.xlu0 %4117
    %v4119 = vperm.slane %v187, 7
    %v4120 = vlaneseq
    %v4121 = vshrl.u32 %v4120, 7
    %v4122 = vadd.s32 %v4121, 64
    %4123 = vset.pattern.permute.xlu0 %v4122
    %4124 = vperm.xlu0 %4123, %v4119
    %v4125 = vpop.permute.xlu0 %4124
    %v4254 = vadd.f32 %v2848, %v3236
    %v4255 = vadd.f32 %v2851, %v3243
    %v4256 = vadd.f32 %v2854, %v3250
    %v4257 = vadd.f32 %v2857, %v3257
    %v4258 = vadd.f32 %v2860, %v3264
    %v4259 = vadd.f32 %v2863, %v3271
    %v4260 = vadd.f32 %v2866, %v3278
    %v4261 = vadd.f32 %v2869, %v3285
    %v4262 = vadd.f32 %v2872, %v3292
    %v4263 = vadd.f32 %v2875, %v3299
    %v4264 = vadd.f32 %v2878, %v3306
    %v4265 = vadd.f32 %v2881, %v3313
    %v4266 = vadd.f32 %v2884, %v3320
    %v4267 = vadd.f32 %v2887, %v3327
    %v4268 = vadd.f32 %v2890, %v3334
    %v4269 = vadd.f32 %v2893, %v3341
    %v4270 = vadd.f32 %v2896, %v3348
    %v4271 = vadd.f32 %v2899, %v3355
    %v4272 = vadd.f32 %v2902, %v3362
    %v4273 = vadd.f32 %v2905, %v3369
    %v4274 = vadd.f32 %v2908, %v3376
    %v4275 = vadd.f32 %v2911, %v3383
    %v4276 = vadd.f32 %v2914, %v3390
    %v4277 = vadd.f32 %v2917, %v3397
    %v4278 = vadd.f32 %v2920, %v3404
    %v4279 = vadd.f32 %v2923, %v3411
    %v4280 = vadd.f32 %v2926, %v3418
    %v4281 = vadd.f32 %v2929, %v3425
    %v4282 = vadd.f32 %v2932, %v3432
    %v4283 = vadd.f32 %v2935, %v3439
    %v4284 = vadd.f32 %v2938, %v3446
    %v4285 = vadd.f32 %v2941, %v3453
    %v4286 = vadd.f32 %v2944, %v3460
    %v4287 = vadd.f32 %v2947, %v3467
    %v4288 = vadd.f32 %v2950, %v3474
    %v4289 = vadd.f32 %v2953, %v3481
    %v4290 = vadd.f32 %v2956, %v3488
    %v4291 = vadd.f32 %v2959, %v3495
    %v4292 = vadd.f32 %v2962, %v3502
    %v4293 = vadd.f32 %v2965, %v3509
    %v4294 = vadd.f32 %v2968, %v3516
    %v4295 = vadd.f32 %v2971, %v3523
    %v4296 = vadd.f32 %v2974, %v3530
    %v4297 = vadd.f32 %v2977, %v3537
    %v4298 = vadd.f32 %v2980, %v3544
    %v4299 = vadd.f32 %v2983, %v3551
    %v4300 = vadd.f32 %v2986, %v3558
    %v4301 = vadd.f32 %v2989, %v3565
    %v4302 = vadd.f32 %v2992, %v3572
    %v4303 = vadd.f32 %v2995, %v3579
    %v4304 = vadd.f32 %v2998, %v3586
    %v4305 = vadd.f32 %v3001, %v3593
    %v4306 = vadd.f32 %v3004, %v3600
    %v4307 = vadd.f32 %v3007, %v3607
    %v4308 = vadd.f32 %v3010, %v3614
    %v4309 = vadd.f32 %v3013, %v3621
    %v4310 = vadd.f32 %v3016, %v3628
    %v4311 = vadd.f32 %v3019, %v3635
    %v4312 = vadd.f32 %v3022, %v3642
    %v4313 = vadd.f32 %v3025, %v3649
    %v4314 = vadd.f32 %v3028, %v3656
    %v4315 = vadd.f32 %v3031, %v3663
    %v4316 = vadd.f32 %v3034, %v3670
    %v4317 = vadd.f32 %v3037, %v3677
    %v4318 = vadd.f32 %v3040, %v3684
    %v4319 = vadd.f32 %v3043, %v3691
    %v4320 = vadd.f32 %v3046, %v3698
    %v4321 = vadd.f32 %v3049, %v3705
    %v4322 = vadd.f32 %v3052, %v3712
    %v4323 = vadd.f32 %v3055, %v3719
    %v4324 = vadd.f32 %v3058, %v3726
    %v4325 = vadd.f32 %v3061, %v3733
    %v4326 = vadd.f32 %v3064, %v3740
    %v4327 = vadd.f32 %v3067, %v3747
    %v4328 = vadd.f32 %v3070, %v3754
    %v4329 = vadd.f32 %v3073, %v3761
    %v4330 = vadd.f32 %v3076, %v3768
    %v4331 = vadd.f32 %v3079, %v3775
    %v4332 = vadd.f32 %v3082, %v3782
    %v4333 = vadd.f32 %v3085, %v3789
    %v4334 = vadd.f32 %v3088, %v3796
    %v4335 = vadd.f32 %v3091, %v3803
    %v4336 = vadd.f32 %v3094, %v3810
    %v4337 = vadd.f32 %v3097, %v3817
    %v4338 = vadd.f32 %v3100, %v3824
    %v4339 = vadd.f32 %v3103, %v3831
    %v4340 = vadd.f32 %v3106, %v3838
    %v4341 = vadd.f32 %v3109, %v3845
    %v4342 = vadd.f32 %v3112, %v3852
    %v4343 = vadd.f32 %v3115, %v3859
    %v4344 = vadd.f32 %v3118, %v3866
    %v4345 = vadd.f32 %v3121, %v3873
    %v4346 = vadd.f32 %v3124, %v3880
    %v4347 = vadd.f32 %v3127, %v3887
    %v4348 = vadd.f32 %v3130, %v3894
    %v4349 = vadd.f32 %v3133, %v3901
    %v4350 = vadd.f32 %v3136, %v3908
    %v4351 = vadd.f32 %v3139, %v3915
    %v4352 = vadd.f32 %v3142, %v3922
    %v4353 = vadd.f32 %v3145, %v3929
    %v4354 = vadd.f32 %v3148, %v3936
    %v4355 = vadd.f32 %v3151, %v3943
    %v4356 = vadd.f32 %v3154, %v3950
    %v4357 = vadd.f32 %v3157, %v3957
    %v4358 = vadd.f32 %v3160, %v3964
    %v4359 = vadd.f32 %v3163, %v3971
    %v4360 = vadd.f32 %v3166, %v3978
    %v4361 = vadd.f32 %v3169, %v3985
    %v4362 = vadd.f32 %v3172, %v3992
    %v4363 = vadd.f32 %v3175, %v3999
    %v4364 = vadd.f32 %v3178, %v4006
    %v4365 = vadd.f32 %v3181, %v4013
    %v4366 = vadd.f32 %v3184, %v4020
    %v4367 = vadd.f32 %v3187, %v4027
    %v4368 = vadd.f32 %v3190, %v4034
    %v4369 = vadd.f32 %v3193, %v4041
    %v4370 = vadd.f32 %v3196, %v4048
    %v4371 = vadd.f32 %v3199, %v4055
    %v4372 = vadd.f32 %v3202, %v4062
    %v4373 = vadd.f32 %v3205, %v4069
    %v4374 = vadd.f32 %v3208, %v4076
    %v4375 = vadd.f32 %v3211, %v4083
    %v4376 = vadd.f32 %v3214, %v4090
    %v4377 = vadd.f32 %v3217, %v4097
    %v4378 = vadd.f32 %v3220, %v4104
    %v4379 = vadd.f32 %v3223, %v4111
    %v4380 = vadd.f32 %v3226, %v4118
    %v4381 = vadd.f32 %v3229, %v4125
    %4510 = vset.pattern.permute.xlu0 0
    %4511 = vperm.xlu0 %4510, %v4254
    %v4512 = vpop.permute.xlu0 %4511
    %4513 = vset.pattern.permute.xlu0 0
    %4514 = vperm.xlu0 %4513, %v4255
    %v4515 = vpop.permute.xlu0 %4514
    %4516 = vset.pattern.permute.xlu0 0
    %4517 = vperm.xlu0 %4516, %v4256
    %v4518 = vpop.permute.xlu0 %4517
    %4519 = vset.pattern.permute.xlu0 0
    %4520 = vperm.xlu0 %4519, %v4257
    %v4521 = vpop.permute.xlu0 %4520
    %4522 = vset.pattern.permute.xlu0 0
    %4523 = vperm.xlu0 %4522, %v4258
    %v4524 = vpop.permute.xlu0 %4523
    %4525 = vset.pattern.permute.xlu0 0
    %4526 = vperm.xlu0 %4525, %v4259
    %v4527 = vpop.permute.xlu0 %4526
    %4528 = vset.pattern.permute.xlu0 0
    %4529 = vperm.xlu0 %4528, %v4260
    %v4530 = vpop.permute.xlu0 %4529
    %4531 = vset.pattern.permute.xlu0 0
    %4532 = vperm.xlu0 %4531, %v4261
    %v4533 = vpop.permute.xlu0 %4532
    %4534 = vset.pattern.permute.xlu0 0
    %4535 = vperm.xlu0 %4534, %v4262
    %v4536 = vpop.permute.xlu0 %4535
    %4537 = vset.pattern.permute.xlu0 0
    %4538 = vperm.xlu0 %4537, %v4263
    %v4539 = vpop.permute.xlu0 %4538
    %4540 = vset.pattern.permute.xlu0 0
    %4541 = vperm.xlu0 %4540, %v4264
    %v4542 = vpop.permute.xlu0 %4541
    %4543 = vset.pattern.permute.xlu0 0
    %4544 = vperm.xlu0 %4543, %v4265
    %v4545 = vpop.permute.xlu0 %4544
    %4546 = vset.pattern.permute.xlu0 0
    %4547 = vperm.xlu0 %4546, %v4266
    %v4548 = vpop.permute.xlu0 %4547
    %4549 = vset.pattern.permute.xlu0 0
    %4550 = vperm.xlu0 %4549, %v4267
    %v4551 = vpop.permute.xlu0 %4550
    %4552 = vset.pattern.permute.xlu0 0
    %4553 = vperm.xlu0 %4552, %v4268
    %v4554 = vpop.permute.xlu0 %4553
    %4555 = vset.pattern.permute.xlu0 0
    %4556 = vperm.xlu0 %4555, %v4269
    %v4557 = vpop.permute.xlu0 %4556
    %4558 = vset.pattern.permute.xlu0 0
    %4559 = vperm.xlu0 %4558, %v4270
    %v4560 = vpop.permute.xlu0 %4559
    %4561 = vset.pattern.permute.xlu0 0
    %4562 = vperm.xlu0 %4561, %v4271
    %v4563 = vpop.permute.xlu0 %4562
    %4564 = vset.pattern.permute.xlu0 0
    %4565 = vperm.xlu0 %4564, %v4272
    %v4566 = vpop.permute.xlu0 %4565
    %4567 = vset.pattern.permute.xlu0 0
    %4568 = vperm.xlu0 %4567, %v4273
    %v4569 = vpop.permute.xlu0 %4568
    %4570 = vset.pattern.permute.xlu0 0
    %4571 = vperm.xlu0 %4570, %v4274
    %v4572 = vpop.permute.xlu0 %4571
    %4573 = vset.pattern.permute.xlu0 0
    %4574 = vperm.xlu0 %4573, %v4275
    %v4575 = vpop.permute.xlu0 %4574
    %4576 = vset.pattern.permute.xlu0 0
    %4577 = vperm.xlu0 %4576, %v4276
    %v4578 = vpop.permute.xlu0 %4577
    %4579 = vset.pattern.permute.xlu0 0
    %4580 = vperm.xlu0 %4579, %v4277
    %v4581 = vpop.permute.xlu0 %4580
    %4582 = vset.pattern.permute.xlu0 0
    %4583 = vperm.xlu0 %4582, %v4278
    %v4584 = vpop.permute.xlu0 %4583
    %4585 = vset.pattern.permute.xlu0 0
    %4586 = vperm.xlu0 %4585, %v4279
    %v4587 = vpop.permute.xlu0 %4586
    %4588 = vset.pattern.permute.xlu0 0
    %4589 = vperm.xlu0 %4588, %v4280
    %v4590 = vpop.permute.xlu0 %4589
    %4591 = vset.pattern.permute.xlu0 0
    %4592 = vperm.xlu0 %4591, %v4281
    %v4593 = vpop.permute.xlu0 %4592
    %4594 = vset.pattern.permute.xlu0 0
    %4595 = vperm.xlu0 %4594, %v4282
    %v4596 = vpop.permute.xlu0 %4595
    %4597 = vset.pattern.permute.xlu0 0
    %4598 = vperm.xlu0 %4597, %v4283
    %v4599 = vpop.permute.xlu0 %4598
    %4600 = vset.pattern.permute.xlu0 0
    %4601 = vperm.xlu0 %4600, %v4284
    %v4602 = vpop.permute.xlu0 %4601
    %4603 = vset.pattern.permute.xlu0 0
    %4604 = vperm.xlu0 %4603, %v4285
    %v4605 = vpop.permute.xlu0 %4604
    %4606 = vset.pattern.permute.xlu0 0
    %4607 = vperm.xlu0 %4606, %v4286
    %v4608 = vpop.permute.xlu0 %4607
    %4609 = vset.pattern.permute.xlu0 0
    %4610 = vperm.xlu0 %4609, %v4287
    %v4611 = vpop.permute.xlu0 %4610
    %4612 = vset.pattern.permute.xlu0 0
    %4613 = vperm.xlu0 %4612, %v4288
    %v4614 = vpop.permute.xlu0 %4613
    %4615 = vset.pattern.permute.xlu0 0
    %4616 = vperm.xlu0 %4615, %v4289
    %v4617 = vpop.permute.xlu0 %4616
    %4618 = vset.pattern.permute.xlu0 0
    %4619 = vperm.xlu0 %4618, %v4290
    %v4620 = vpop.permute.xlu0 %4619
    %4621 = vset.pattern.permute.xlu0 0
    %4622 = vperm.xlu0 %4621, %v4291
    %v4623 = vpop.permute.xlu0 %4622
    %4624 = vset.pattern.permute.xlu0 0
    %4625 = vperm.xlu0 %4624, %v4292
    %v4626 = vpop.permute.xlu0 %4625
    %4627 = vset.pattern.permute.xlu0 0
    %4628 = vperm.xlu0 %4627, %v4293
    %v4629 = vpop.permute.xlu0 %4628
    %4630 = vset.pattern.permute.xlu0 0
    %4631 = vperm.xlu0 %4630, %v4294
    %v4632 = vpop.permute.xlu0 %4631
    %4633 = vset.pattern.permute.xlu0 0
    %4634 = vperm.xlu0 %4633, %v4295
    %v4635 = vpop.permute.xlu0 %4634
    %4636 = vset.pattern.permute.xlu0 0
    %4637 = vperm.xlu0 %4636, %v4296
    %v4638 = vpop.permute.xlu0 %4637
    %4639 = vset.pattern.permute.xlu0 0
    %4640 = vperm.xlu0 %4639, %v4297
    %v4641 = vpop.permute.xlu0 %4640
    %4642 = vset.pattern.permute.xlu0 0
    %4643 = vperm.xlu0 %4642, %v4298
    %v4644 = vpop.permute.xlu0 %4643
    %4645 = vset.pattern.permute.xlu0 0
    %4646 = vperm.xlu0 %4645, %v4299
    %v4647 = vpop.permute.xlu0 %4646
    %4648 = vset.pattern.permute.xlu0 0
    %4649 = vperm.xlu0 %4648, %v4300
    %v4650 = vpop.permute.xlu0 %4649
    %4651 = vset.pattern.permute.xlu0 0
    %4652 = vperm.xlu0 %4651, %v4301
    %v4653 = vpop.permute.xlu0 %4652
    %4654 = vset.pattern.permute.xlu0 0
    %4655 = vperm.xlu0 %4654, %v4302
    %v4656 = vpop.permute.xlu0 %4655
    %4657 = vset.pattern.permute.xlu0 0
    %4658 = vperm.xlu0 %4657, %v4303
    %v4659 = vpop.permute.xlu0 %4658
    %4660 = vset.pattern.permute.xlu0 0
    %4661 = vperm.xlu0 %4660, %v4304
    %v4662 = vpop.permute.xlu0 %4661
    %4663 = vset.pattern.permute.xlu0 0
    %4664 = vperm.xlu0 %4663, %v4305
    %v4665 = vpop.permute.xlu0 %4664
    %4666 = vset.pattern.permute.xlu0 0
    %4667 = vperm.xlu0 %4666, %v4306
    %v4668 = vpop.permute.xlu0 %4667
    %4669 = vset.pattern.permute.xlu0 0
    %4670 = vperm.xlu0 %4669, %v4307
    %v4671 = vpop.permute.xlu0 %4670
    %4672 = vset.pattern.permute.xlu0 0
    %4673 = vperm.xlu0 %4672, %v4308
    %v4674 = vpop.permute.xlu0 %4673
    %4675 = vset.pattern.permute.xlu0 0
    %4676 = vperm.xlu0 %4675, %v4309
    %v4677 = vpop.permute.xlu0 %4676
    %4678 = vset.pattern.permute.xlu0 0
    %4679 = vperm.xlu0 %4678, %v4310
    %v4680 = vpop.permute.xlu0 %4679
    %4681 = vset.pattern.permute.xlu0 0
    %4682 = vperm.xlu0 %4681, %v4311
    %v4683 = vpop.permute.xlu0 %4682
    %4684 = vset.pattern.permute.xlu0 0
    %4685 = vperm.xlu0 %4684, %v4312
    %v4686 = vpop.permute.xlu0 %4685
    %4687 = vset.pattern.permute.xlu0 0
    %4688 = vperm.xlu0 %4687, %v4313
    %v4689 = vpop.permute.xlu0 %4688
    %4690 = vset.pattern.permute.xlu0 0
    %4691 = vperm.xlu0 %4690, %v4314
    %v4692 = vpop.permute.xlu0 %4691
    %4693 = vset.pattern.permute.xlu0 0
    %4694 = vperm.xlu0 %4693, %v4315
    %v4695 = vpop.permute.xlu0 %4694
    %4696 = vset.pattern.permute.xlu0 0
    %4697 = vperm.xlu0 %4696, %v4316
    %v4698 = vpop.permute.xlu0 %4697
    %4699 = vset.pattern.permute.xlu0 0
    %4700 = vperm.xlu0 %4699, %v4317
    %v4701 = vpop.permute.xlu0 %4700
    %4702 = vset.pattern.permute.xlu0 0
    %4703 = vperm.xlu0 %4702, %v4318
    %v4704 = vpop.permute.xlu0 %4703
    %4705 = vset.pattern.permute.xlu0 0
    %4706 = vperm.xlu0 %4705, %v4319
    %v4707 = vpop.permute.xlu0 %4706
    %4708 = vset.pattern.permute.xlu0 0
    %4709 = vperm.xlu0 %4708, %v4320
    %v4710 = vpop.permute.xlu0 %4709
    %4711 = vset.pattern.permute.xlu0 0
    %4712 = vperm.xlu0 %4711, %v4321
    %v4713 = vpop.permute.xlu0 %4712
    %4714 = vset.pattern.permute.xlu0 0
    %4715 = vperm.xlu0 %4714, %v4322
    %v4716 = vpop.permute.xlu0 %4715
    %4717 = vset.pattern.permute.xlu0 0
    %4718 = vperm.xlu0 %4717, %v4323
    %v4719 = vpop.permute.xlu0 %4718
    %4720 = vset.pattern.permute.xlu0 0
    %4721 = vperm.xlu0 %4720, %v4324
    %v4722 = vpop.permute.xlu0 %4721
    %4723 = vset.pattern.permute.xlu0 0
    %4724 = vperm.xlu0 %4723, %v4325
    %v4725 = vpop.permute.xlu0 %4724
    %4726 = vset.pattern.permute.xlu0 0
    %4727 = vperm.xlu0 %4726, %v4326
    %v4728 = vpop.permute.xlu0 %4727
    %4729 = vset.pattern.permute.xlu0 0
    %4730 = vperm.xlu0 %4729, %v4327
    %v4731 = vpop.permute.xlu0 %4730
    %4732 = vset.pattern.permute.xlu0 0
    %4733 = vperm.xlu0 %4732, %v4328
    %v4734 = vpop.permute.xlu0 %4733
    %4735 = vset.pattern.permute.xlu0 0
    %4736 = vperm.xlu0 %4735, %v4329
    %v4737 = vpop.permute.xlu0 %4736
    %4738 = vset.pattern.permute.xlu0 0
    %4739 = vperm.xlu0 %4738, %v4330
    %v4740 = vpop.permute.xlu0 %4739
    %4741 = vset.pattern.permute.xlu0 0
    %4742 = vperm.xlu0 %4741, %v4331
    %v4743 = vpop.permute.xlu0 %4742
    %4744 = vset.pattern.permute.xlu0 0
    %4745 = vperm.xlu0 %4744, %v4332
    %v4746 = vpop.permute.xlu0 %4745
    %4747 = vset.pattern.permute.xlu0 0
    %4748 = vperm.xlu0 %4747, %v4333
    %v4749 = vpop.permute.xlu0 %4748
    %4750 = vset.pattern.permute.xlu0 0
    %4751 = vperm.xlu0 %4750, %v4334
    %v4752 = vpop.permute.xlu0 %4751
    %4753 = vset.pattern.permute.xlu0 0
    %4754 = vperm.xlu0 %4753, %v4335
    %v4755 = vpop.permute.xlu0 %4754
    %4756 = vset.pattern.permute.xlu0 0
    %4757 = vperm.xlu0 %4756, %v4336
    %v4758 = vpop.permute.xlu0 %4757
    %4759 = vset.pattern.permute.xlu0 0
    %4760 = vperm.xlu0 %4759, %v4337
    %v4761 = vpop.permute.xlu0 %4760
    %4762 = vset.pattern.permute.xlu0 0
    %4763 = vperm.xlu0 %4762, %v4338
    %v4764 = vpop.permute.xlu0 %4763
    %4765 = vset.pattern.permute.xlu0 0
    %4766 = vperm.xlu0 %4765, %v4339
    %v4767 = vpop.permute.xlu0 %4766
    %4768 = vset.pattern.permute.xlu0 0
    %4769 = vperm.xlu0 %4768, %v4340
    %v4770 = vpop.permute.xlu0 %4769
    %4771 = vset.pattern.permute.xlu0 0
    %4772 = vperm.xlu0 %4771, %v4341
    %v4773 = vpop.permute.xlu0 %4772
    %4774 = vset.pattern.permute.xlu0 0
    %4775 = vperm.xlu0 %4774, %v4342
    %v4776 = vpop.permute.xlu0 %4775
    %4777 = vset.pattern.permute.xlu0 0
    %4778 = vperm.xlu0 %4777, %v4343
    %v4779 = vpop.permute.xlu0 %4778
    %4780 = vset.pattern.permute.xlu0 0
    %4781 = vperm.xlu0 %4780, %v4344
    %v4782 = vpop.permute.xlu0 %4781
    %4783 = vset.pattern.permute.xlu0 0
    %4784 = vperm.xlu0 %4783, %v4345
    %v4785 = vpop.permute.xlu0 %4784
    %4786 = vset.pattern.permute.xlu0 0
    %4787 = vperm.xlu0 %4786, %v4346
    %v4788 = vpop.permute.xlu0 %4787
    %4789 = vset.pattern.permute.xlu0 0
    %4790 = vperm.xlu0 %4789, %v4347
    %v4791 = vpop.permute.xlu0 %4790
    %4792 = vset.pattern.permute.xlu0 0
    %4793 = vperm.xlu0 %4792, %v4348
    %v4794 = vpop.permute.xlu0 %4793
    %4795 = vset.pattern.permute.xlu0 0
    %4796 = vperm.xlu0 %4795, %v4349
    %v4797 = vpop.permute.xlu0 %4796
    %4798 = vset.pattern.permute.xlu0 0
    %4799 = vperm.xlu0 %4798, %v4350
    %v4800 = vpop.permute.xlu0 %4799
    %4801 = vset.pattern.permute.xlu0 0
    %4802 = vperm.xlu0 %4801, %v4351
    %v4803 = vpop.permute.xlu0 %4802
    %4804 = vset.pattern.permute.xlu0 0
    %4805 = vperm.xlu0 %4804, %v4352
    %v4806 = vpop.permute.xlu0 %4805
    %4807 = vset.pattern.permute.xlu0 0
    %4808 = vperm.xlu0 %4807, %v4353
    %v4809 = vpop.permute.xlu0 %4808
    %4810 = vset.pattern.permute.xlu0 0
    %4811 = vperm.xlu0 %4810, %v4354
    %v4812 = vpop.permute.xlu0 %4811
    %4813 = vset.pattern.permute.xlu0 0
    %4814 = vperm.xlu0 %4813, %v4355
    %v4815 = vpop.permute.xlu0 %4814
    %4816 = vset.pattern.permute.xlu0 0
    %4817 = vperm.xlu0 %4816, %v4356
    %v4818 = vpop.permute.xlu0 %4817
    %4819 = vset.pattern.permute.xlu0 0
    %4820 = vperm.xlu0 %4819, %v4357
    %v4821 = vpop.permute.xlu0 %4820
    %4822 = vset.pattern.permute.xlu0 0
    %4823 = vperm.xlu0 %4822, %v4358
    %v4824 = vpop.permute.xlu0 %4823
    %4825 = vset.pattern.permute.xlu0 0
    %4826 = vperm.xlu0 %4825, %v4359
    %v4827 = vpop.permute.xlu0 %4826
    %4828 = vset.pattern.permute.xlu0 0
    %4829 = vperm.xlu0 %4828, %v4360
    %v4830 = vpop.permute.xlu0 %4829
    %4831 = vset.pattern.permute.xlu0 0
    %4832 = vperm.xlu0 %4831, %v4361
    %v4833 = vpop.permute.xlu0 %4832
    %4834 = vset.pattern.permute.xlu0 0
    %4835 = vperm.xlu0 %4834, %v4362
    %v4836 = vpop.permute.xlu0 %4835
    %4837 = vset.pattern.permute.xlu0 0
    %4838 = vperm.xlu0 %4837, %v4363
    %v4839 = vpop.permute.xlu0 %4838
    %4840 = vset.pattern.permute.xlu0 0
    %4841 = vperm.xlu0 %4840, %v4364
    %v4842 = vpop.permute.xlu0 %4841
    %4843 = vset.pattern.permute.xlu0 0
    %4844 = vperm.xlu0 %4843, %v4365
    %v4845 = vpop.permute.xlu0 %4844
    %4846 = vset.pattern.permute.xlu0 0
    %4847 = vperm.xlu0 %4846, %v4366
    %v4848 = vpop.permute.xlu0 %4847
    %4849 = vset.pattern.permute.xlu0 0
    %4850 = vperm.xlu0 %4849, %v4367
    %v4851 = vpop.permute.xlu0 %4850
    %4852 = vset.pattern.permute.xlu0 0
    %4853 = vperm.xlu0 %4852, %v4368
    %v4854 = vpop.permute.xlu0 %4853
    %4855 = vset.pattern.permute.xlu0 0
    %4856 = vperm.xlu0 %4855, %v4369
    %v4857 = vpop.permute.xlu0 %4856
    %4858 = vset.pattern.permute.xlu0 0
    %4859 = vperm.xlu0 %4858, %v4370
    %v4860 = vpop.permute.xlu0 %4859
    %4861 = vset.pattern.permute.xlu0 0
    %4862 = vperm.xlu0 %4861, %v4371
    %v4863 = vpop.permute.xlu0 %4862
    %4864 = vset.pattern.permute.xlu0 0
    %4865 = vperm.xlu0 %4864, %v4372
    %v4866 = vpop.permute.xlu0 %4865
    %4867 = vset.pattern.permute.xlu0 0
    %4868 = vperm.xlu0 %4867, %v4373
    %v4869 = vpop.permute.xlu0 %4868
    %4870 = vset.pattern.permute.xlu0 0
    %4871 = vperm.xlu0 %4870, %v4374
    %v4872 = vpop.permute.xlu0 %4871
    %4873 = vset.pattern.permute.xlu0 0
    %4874 = vperm.xlu0 %4873, %v4375
    %v4875 = vpop.permute.xlu0 %4874
    %4876 = vset.pattern.permute.xlu0 0
    %4877 = vperm.xlu0 %4876, %v4376
    %v4878 = vpop.permute.xlu0 %4877
    %4879 = vset.pattern.permute.xlu0 0
    %4880 = vperm.xlu0 %4879, %v4377
    %v4881 = vpop.permute.xlu0 %4880
    %4882 = vset.pattern.permute.xlu0 0
    %4883 = vperm.xlu0 %4882, %v4378
    %v4884 = vpop.permute.xlu0 %4883
    %4885 = vset.pattern.permute.xlu0 0
    %4886 = vperm.xlu0 %4885, %v4379
    %v4887 = vpop.permute.xlu0 %4886
    %4888 = vset.pattern.permute.xlu0 0
    %4889 = vperm.xlu0 %4888, %v4380
    %v4890 = vpop.permute.xlu0 %4889
    %4891 = vset.pattern.permute.xlu0 0
    %4892 = vperm.xlu0 %4891, %v4381
    %v4893 = vpop.permute.xlu0 %4892
    %v4894 = vlaneseq
    %v4895 = vand.u32 %v4894, 127
    %v4896 = vperm.slane %v4512, %v4895
    %v4897 = vadd.s32 %v4895, 4294967288
    %v4898 = vperm.slane %v4515, %v4897
    %vm4899 = vcmask 130112
    %v4900 = vsel %vm4899, %v4898, %v4896
    %v4901 = vadd.s32 %v4895, 4294967280
    %v4902 = vperm.slane %v4518, %v4901
    %vm4903 = vcmask 195712
    %v4904 = vsel %vm4903, %v4902, %v4900
    %v4905 = vadd.s32 %v4895, 4294967272
    %v4906 = vperm.slane %v4521, %v4905
    %vm4907 = vcmask 261312
    %v4908 = vsel %vm4907, %v4906, %v4904
    %v4909 = vadd.s32 %v4895, 4294967264
    %v4910 = vperm.slane %v4524, %v4909
    %vm4911 = vcmask 326912
    %v4912 = vsel %vm4911, %v4910, %v4908
    %v4913 = vadd.s32 %v4895, 4294967256
    %v4914 = vperm.slane %v4527, %v4913
    %vm4915 = vcmask 392512
    %v4916 = vsel %vm4915, %v4914, %v4912
    %v4917 = vadd.s32 %v4895, 4294967248
    %v4918 = vperm.slane %v4530, %v4917
    %vm4919 = vcmask 458112
    %v4920 = vsel %vm4919, %v4918, %v4916
    %v4921 = vadd.s32 %v4895, 4294967240
    %v4922 = vperm.slane %v4533, %v4921
    %vm4923 = vcmask 523712
    %v4924 = vsel %vm4923, %v4922, %v4920
    %v4925 = vadd.s32 %v4895, 4294967232
    %v4926 = vperm.slane %v4536, %v4925
    %vm4927 = vcmask 589312
    %v4928 = vsel %vm4927, %v4926, %v4924
    %v4929 = vadd.s32 %v4895, 4294967224
    %v4930 = vperm.slane %v4539, %v4929
    %vm4931 = vcmask 654912
    %v4932 = vsel %vm4931, %v4930, %v4928
    %v4933 = vadd.s32 %v4895, 4294967216
    %v4934 = vperm.slane %v4542, %v4933
    %vm4935 = vcmask 720512
    %v4936 = vsel %vm4935, %v4934, %v4932
    %v4937 = vadd.s32 %v4895, 4294967208
    %v4938 = vperm.slane %v4545, %v4937
    %vm4939 = vcmask 786112
    %v4940 = vsel %vm4939, %v4938, %v4936
    %v4941 = vadd.s32 %v4895, 4294967200
    %v4942 = vperm.slane %v4548, %v4941
    %vm4943 = vcmask 851712
    %v4944 = vsel %vm4943, %v4942, %v4940
    %v4945 = vadd.s32 %v4895, 4294967192
    %v4946 = vperm.slane %v4551, %v4945
    %vm4947 = vcmask 917312
    %v4948 = vsel %vm4947, %v4946, %v4944
    %v4949 = vadd.s32 %v4895, 4294967184
    %v4950 = vperm.slane %v4554, %v4949
    %vm4951 = vcmask 982912
    %v4952 = vsel %vm4951, %v4950, %v4948
    %v4953 = vadd.s32 %v4895, 4294967176
    %v4954 = vperm.slane %v4557, %v4953
    %vm4955 = vcmask 1048512
    %v4956 = vsel %vm4955, %v4954, %v4952
    %v4957 = vperm.slane %v4560, %v4895
    %v4958 = vperm.slane %v4563, %v4897
    %v4959 = vsel %vm4899, %v4958, %v4957
    %v4960 = vperm.slane %v4566, %v4901
    %v4961 = vsel %vm4903, %v4960, %v4959
    %v4962 = vperm.slane %v4569, %v4905
    %v4963 = vsel %vm4907, %v4962, %v4961
    %v4964 = vperm.slane %v4572, %v4909
    %v4965 = vsel %vm4911, %v4964, %v4963
    %v4966 = vperm.slane %v4575, %v4913
    %v4967 = vsel %vm4915, %v4966, %v4965
    %v4968 = vperm.slane %v4578, %v4917
    %v4969 = vsel %vm4919, %v4968, %v4967
    %v4970 = vperm.slane %v4581, %v4921
    %v4971 = vsel %vm4923, %v4970, %v4969
    %v4972 = vperm.slane %v4584, %v4925
    %v4973 = vsel %vm4927, %v4972, %v4971
    %v4974 = vperm.slane %v4587, %v4929
    %v4975 = vsel %vm4931, %v4974, %v4973
    %v4976 = vperm.slane %v4590, %v4933
    %v4977 = vsel %vm4935, %v4976, %v4975
    %v4978 = vperm.slane %v4593, %v4937
    %v4979 = vsel %vm4939, %v4978, %v4977
    %v4980 = vperm.slane %v4596, %v4941
    %v4981 = vsel %vm4943, %v4980, %v4979
    %v4982 = vperm.slane %v4599, %v4945
    %v4983 = vsel %vm4947, %v4982, %v4981
    %v4984 = vperm.slane %v4602, %v4949
    %v4985 = vsel %vm4951, %v4984, %v4983
    %v4986 = vperm.slane %v4605, %v4953
    %v4987 = vsel %vm4955, %v4986, %v4985
    %v4988 = vperm.slane %v4608, %v4895
    %v4989 = vperm.slane %v4611, %v4897
    %v4990 = vsel %vm4899, %v4989, %v4988
    %v4991 = vperm.slane %v4614, %v4901
    %v4992 = vsel %vm4903, %v4991, %v4990
    %v4993 = vperm.slane %v4617, %v4905
    %v4994 = vsel %vm4907, %v4993, %v4992
    %v4995 = vperm.slane %v4620, %v4909
    %v4996 = vsel %vm4911, %v4995, %v4994
    %v4997 = vperm.slane %v4623, %v4913
    %v4998 = vsel %vm4915, %v4997, %v4996
    %v4999 = vperm.slane %v4626, %v4917
    %v5000 = vsel %vm4919, %v4999, %v4998
    %v5001 = vperm.slane %v4629, %v4921
    %v5002 = vsel %vm4923, %v5001, %v5000
    %v5003 = vperm.slane %v4632, %v4925
    %v5004 = vsel %vm4927, %v5003, %v5002
    %v5005 = vperm.slane %v4635, %v4929
    %v5006 = vsel %vm4931, %v5005, %v5004
    %v5007 = vperm.slane %v4638, %v4933
    %v5008 = vsel %vm4935, %v5007, %v5006
    %v5009 = vperm.slane %v4641, %v4937
    %v5010 = vsel %vm4939, %v5009, %v5008
    %v5011 = vperm.slane %v4644, %v4941
    %v5012 = vsel %vm4943, %v5011, %v5010
    %v5013 = vperm.slane %v4647, %v4945
    %v5014 = vsel %vm4947, %v5013, %v5012
    %v5015 = vperm.slane %v4650, %v4949
    %v5016 = vsel %vm4951, %v5015, %v5014
    %v5017 = vperm.slane %v4653, %v4953
    %v5018 = vsel %vm4955, %v5017, %v5016
    %v5019 = vperm.slane %v4656, %v4895
    %v5020 = vperm.slane %v4659, %v4897
    %v5021 = vsel %vm4899, %v5020, %v5019
    %v5022 = vperm.slane %v4662, %v4901
    %v5023 = vsel %vm4903, %v5022, %v5021
    %v5024 = vperm.slane %v4665, %v4905
    %v5025 = vsel %vm4907, %v5024, %v5023
    %v5026 = vperm.slane %v4668, %v4909
    %v5027 = vsel %vm4911, %v5026, %v5025
    %v5028 = vperm.slane %v4671, %v4913
    %v5029 = vsel %vm4915, %v5028, %v5027
    %v5030 = vperm.slane %v4674, %v4917
    %v5031 = vsel %vm4919, %v5030, %v5029
    %v5032 = vperm.slane %v4677, %v4921
    %v5033 = vsel %vm4923, %v5032, %v5031
    %v5034 = vperm.slane %v4680, %v4925
    %v5035 = vsel %vm4927, %v5034, %v5033
    %v5036 = vperm.slane %v4683, %v4929
    %v5037 = vsel %vm4931, %v5036, %v5035
    %v5038 = vperm.slane %v4686, %v4933
    %v5039 = vsel %vm4935, %v5038, %v5037
    %v5040 = vperm.slane %v4689, %v4937
    %v5041 = vsel %vm4939, %v5040, %v5039
    %v5042 = vperm.slane %v4692, %v4941
    %v5043 = vsel %vm4943, %v5042, %v5041
    %v5044 = vperm.slane %v4695, %v4945
    %v5045 = vsel %vm4947, %v5044, %v5043
    %v5046 = vperm.slane %v4698, %v4949
    %v5047 = vsel %vm4951, %v5046, %v5045
    %v5048 = vperm.slane %v4701, %v4953
    %v5049 = vsel %vm4955, %v5048, %v5047
    %v5050 = vperm.slane %v4704, %v4895
    %v5051 = vperm.slane %v4707, %v4897
    %v5052 = vsel %vm4899, %v5051, %v5050
    %v5053 = vperm.slane %v4710, %v4901
    %v5054 = vsel %vm4903, %v5053, %v5052
    %v5055 = vperm.slane %v4713, %v4905
    %v5056 = vsel %vm4907, %v5055, %v5054
    %v5057 = vperm.slane %v4716, %v4909
    %v5058 = vsel %vm4911, %v5057, %v5056
    %v5059 = vperm.slane %v4719, %v4913
    %v5060 = vsel %vm4915, %v5059, %v5058
    %v5061 = vperm.slane %v4722, %v4917
    %v5062 = vsel %vm4919, %v5061, %v5060
    %v5063 = vperm.slane %v4725, %v4921
    %v5064 = vsel %vm4923, %v5063, %v5062
    %v5065 = vperm.slane %v4728, %v4925
    %v5066 = vsel %vm4927, %v5065, %v5064
    %v5067 = vperm.slane %v4731, %v4929
    %v5068 = vsel %vm4931, %v5067, %v5066
    %v5069 = vperm.slane %v4734, %v4933
    %v5070 = vsel %vm4935, %v5069, %v5068
    %v5071 = vperm.slane %v4737, %v4937
    %v5072 = vsel %vm4939, %v5071, %v5070
    %v5073 = vperm.slane %v4740, %v4941
    %v5074 = vsel %vm4943, %v5073, %v5072
    %v5075 = vperm.slane %v4743, %v4945
    %v5076 = vsel %vm4947, %v5075, %v5074
    %v5077 = vperm.slane %v4746, %v4949
    %v5078 = vsel %vm4951, %v5077, %v5076
    %v5079 = vperm.slane %v4749, %v4953
    %v5080 = vsel %vm4955, %v5079, %v5078
    %v5081 = vperm.slane %v4752, %v4895
    %v5082 = vperm.slane %v4755, %v4897
    %v5083 = vsel %vm4899, %v5082, %v5081
    %v5084 = vperm.slane %v4758, %v4901
    %v5085 = vsel %vm4903, %v5084, %v5083
    %v5086 = vperm.slane %v4761, %v4905
    %v5087 = vsel %vm4907, %v5086, %v5085
    %v5088 = vperm.slane %v4764, %v4909
    %v5089 = vsel %vm4911, %v5088, %v5087
    %v5090 = vperm.slane %v4767, %v4913
    %v5091 = vsel %vm4915, %v5090, %v5089
    %v5092 = vperm.slane %v4770, %v4917
    %v5093 = vsel %vm4919, %v5092, %v5091
    %v5094 = vperm.slane %v4773, %v4921
    %v5095 = vsel %vm4923, %v5094, %v5093
    %v5096 = vperm.slane %v4776, %v4925
    %v5097 = vsel %vm4927, %v5096, %v5095
    %v5098 = vperm.slane %v4779, %v4929
    %v5099 = vsel %vm4931, %v5098, %v5097
    %v5100 = vperm.slane %v4782, %v4933
    %v5101 = vsel %vm4935, %v5100, %v5099
    %v5102 = vperm.slane %v4785, %v4937
    %v5103 = vsel %vm4939, %v5102, %v5101
    %v5104 = vperm.slane %v4788, %v4941
    %v5105 = vsel %vm4943, %v5104, %v5103
    %v5106 = vperm.slane %v4791, %v4945
    %v5107 = vsel %vm4947, %v5106, %v5105
    %v5108 = vperm.slane %v4794, %v4949
    %v5109 = vsel %vm4951, %v5108, %v5107
    %v5110 = vperm.slane %v4797, %v4953
    %v5111 = vsel %vm4955, %v5110, %v5109
    %v5112 = vperm.slane %v4800, %v4895
    %v5113 = vperm.slane %v4803, %v4897
    %v5114 = vsel %vm4899, %v5113, %v5112
    %v5115 = vperm.slane %v4806, %v4901
    %v5116 = vsel %vm4903, %v5115, %v5114
    %v5117 = vperm.slane %v4809, %v4905
    %v5118 = vsel %vm4907, %v5117, %v5116
    %v5119 = vperm.slane %v4812, %v4909
    %v5120 = vsel %vm4911, %v5119, %v5118
    %v5121 = vperm.slane %v4815, %v4913
    %v5122 = vsel %vm4915, %v5121, %v5120
    %v5123 = vperm.slane %v4818, %v4917
    %v5124 = vsel %vm4919, %v5123, %v5122
    %v5125 = vperm.slane %v4821, %v4921
    %v5126 = vsel %vm4923, %v5125, %v5124
    %v5127 = vperm.slane %v4824, %v4925
    %v5128 = vsel %vm4927, %v5127, %v5126
    %v5129 = vperm.slane %v4827, %v4929
    %v5130 = vsel %vm4931, %v5129, %v5128
    %v5131 = vperm.slane %v4830, %v4933
    %v5132 = vsel %vm4935, %v5131, %v5130
    %v5133 = vperm.slane %v4833, %v4937
    %v5134 = vsel %vm4939, %v5133, %v5132
    %v5135 = vperm.slane %v4836, %v4941
    %v5136 = vsel %vm4943, %v5135, %v5134
    %v5137 = vperm.slane %v4839, %v4945
    %v5138 = vsel %vm4947, %v5137, %v5136
    %v5139 = vperm.slane %v4842, %v4949
    %v5140 = vsel %vm4951, %v5139, %v5138
    %v5141 = vperm.slane %v4845, %v4953
    %v5142 = vsel %vm4955, %v5141, %v5140
    %v5143 = vperm.slane %v4848, %v4895
    %v5144 = vperm.slane %v4851, %v4897
    %v5145 = vsel %vm4899, %v5144, %v5143
    %v5146 = vperm.slane %v4854, %v4901
    %v5147 = vsel %vm4903, %v5146, %v5145
    %v5148 = vperm.slane %v4857, %v4905
    %v5149 = vsel %vm4907, %v5148, %v5147
    %v5150 = vperm.slane %v4860, %v4909
    %v5151 = vsel %vm4911, %v5150, %v5149
    %v5152 = vperm.slane %v4863, %v4913
    %v5153 = vsel %vm4915, %v5152, %v5151
    %v5154 = vperm.slane %v4866, %v4917
    %v5155 = vsel %vm4919, %v5154, %v5153
    %v5156 = vperm.slane %v4869, %v4921
    %v5157 = vsel %vm4923, %v5156, %v5155
    %v5158 = vperm.slane %v4872, %v4925
    %v5159 = vsel %vm4927, %v5158, %v5157
    %v5160 = vperm.slane %v4875, %v4929
    %v5161 = vsel %vm4931, %v5160, %v5159
    %v5162 = vperm.slane %v4878, %v4933
    %v5163 = vsel %vm4935, %v5162, %v5161
    %v5164 = vperm.slane %v4881, %v4937
    %v5165 = vsel %vm4939, %v5164, %v5163
    %v5166 = vperm.slane %v4884, %v4941
    %v5167 = vsel %vm4943, %v5166, %v5165
    %v5168 = vperm.slane %v4887, %v4945
    %v5169 = vsel %vm4947, %v5168, %v5167
    %v5170 = vperm.slane %v4890, %v4949
    %v5171 = vsel %vm4951, %v5170, %v5169
    %v5172 = vperm.slane %v4893, %v4953
    %v5173 = vsel %vm4955, %v5172, %v5171
    %vm5174 = vcmask 1041409
    %v5175 = vsel %vm5174, %v4987, %v4956
    %vm5176 = vcmask 1042434
    %v5177 = vsel %vm5176, %v5018, %v5175
    %vm5178 = vcmask 1043459
    %v5179 = vsel %vm5178, %v5049, %v5177
    %vm5180 = vcmask 1044484
    %v5181 = vsel %vm5180, %v5080, %v5179
    %vm5182 = vcmask 1045509
    %v5183 = vsel %vm5182, %v5111, %v5181
    %vm5184 = vcmask 1046534
    %v5185 = vsel %vm5184, %v5142, %v5183
    %vm5186 = vcmask 1047559
    %v5187 = vsel %vm5186, %v5173, %v5185
    %5189 = vst [vmem:[#allocation2] sm:$0xff] %v5187
    // Predicated region
    $region18: #{tpu_custom_call.1} parent=1 // pred_check
      _
    $region19: #{tpu_custom_call.1} parent=1 // pred_check_branch
      %5191 = sbr.rel (0) target = $region21
    $region20: #{tpu_custom_call.1} parent=1 // pred_region
      %5193 = vsyncadd [#allocation3], 0
      %s5195 = sshll.u32 [#allocation2], 4
      %s5196 = int_to_ptr.vmem [resolvable:$true] %s5195
      %s5197 = sshll.u32 %s4, 4
      %s5198 = int_to_ptr.hbm [resolvable:$true] %s5197
      %5200 = dma.vmem_to_hbm [thread:$0]  %s5196, 128, %s5198, [#allocation3]
    $region21: #{tpu_custom_call.1} parent=1 // pred_fallthru
      _
    // Predicated region
    $region22: #{tpu_custom_call.1} parent=1 // pred_check
      _
    $region23: #{tpu_custom_call.1} parent=1 // pred_check_branch
      %5202 = sbr.rel (0) target = $region25
    $region24: #{tpu_custom_call.1} parent=1 // pred_region
      %5204 = dma.done [#allocation3], 128
    $region25: #{tpu_custom_call.1} parent=1 // pred_fallthru
      _
    %5205 = vsyncpa [#allocation3], 1

</llo_original>
